<compile_context>
chip_gen: v7x
topology: tpu7x:2x2x1
jax: 0.10.0
libtpu: 0.0.40
codegen_flags: <defaults>
</compile_context>

<pallas_src>
import jax
import jax.numpy as jnp
from jax import lax
from jax.experimental import pallas as pl
from jax.experimental.pallas import tpu as pltpu


def _make_encoder_kernel(B, H, W, Cin, Cmid, Cout):
    M = B * H * W
    HW = H * W
    Kslab = 3 * Cmid

    def kernel(p_ref, keep_ref, w1_ref, b1_ref, w2_ref, b2_ref, o_ref):
        """relu(conv2(relu(conv1(x)))) for the whole (tiny) batch in one step.

        p_ref   : (M, 9*Cin)        bf16  conv1 im2col patches (M = B*H*W)
        keep_ref: (4, M, 1)         f32   0/1 edge masks [w>0, w<W-1, h>0, h<H-1]
        w1_ref  : (9*Cin, Cmid)     bf16  conv1 weights, (kh,kw,cin) flattened
        b1_ref  : (1, Cmid)         f32
        w2_ref  : (3, 3*Cmid, Cout) bf16  per-dy (kw,cin)-flattened conv2 weights
        b2_ref  : (1, Cout)         f32
        o_ref   : (B, Cout, H*W)    f32   NCHW output with H*W flattened
        """
        f32 = jnp.float32

        # ---- conv1: one K=27 MXU matmul over all B*H*W rows -----------------
        y1 = jnp.dot(p_ref[...], w1_ref[...], preferred_element_type=f32)
        y1 = jnp.maximum(y1 + b1_ref[...], 0.0)                      # (M, Cmid)

        # ---- dx = -1 / +1 column shifts: 1-row shifted copies + edge masks --
        # (masks also kill the batch/row wrap-around introduced by flattening)
        zrow = jnp.zeros((1, Cmid), f32)
        y1_m1 = jnp.concatenate([zrow, y1[:M - 1, :]], axis=0) * keep_ref[0]
        y1_p1 = jnp.concatenate([y1[1:, :], zrow], axis=0) * keep_ref[1]

        # Lane-wise slab: channel block kw holds y1[b, h, w + kw - 1].
        slab = jnp.concatenate([y1_m1, y1, y1_p1], axis=1).astype(jnp.bfloat16)

        # ---- dy = -1 / +1 row shifts: tile-aligned W-row shifts -------------
        zrows = jnp.zeros((W, Kslab), jnp.bfloat16)
        slab_up = jnp.concatenate([zrows, slab[:M - W, :]], axis=0)  # y1[h-1, .]
        slab_dn = jnp.concatenate([slab[W:, :], zrows], axis=0)      # y1[h+1, .]

        # ---- conv2: 3 accumulated K=192 matmuls (one per dy) ----------------
        # Top/bottom edge masks are applied to the matmul outputs, which is
        # equivalent to masking the shifted LHS rows (keeps the LHS bf16-clean).
        acc = keep_ref[2] * jnp.dot(slab_up, w2_ref[0], preferred_element_type=f32)
        acc = acc + jnp.dot(slab, w2_ref[1], preferred_element_type=f32)
        acc = acc + keep_ref[3] * jnp.dot(slab_dn, w2_ref[2], preferred_element_type=f32)
        y2 = jnp.maximum(acc + b2_ref[...], 0.0)                     # (M, Cout)

        # ---- fold NHWC->NCHW into the kernel: per image (HW, C) -> (C, HW) --
        for b in range(B):
            o_ref[b, :, :] = y2[b * HW:(b + 1) * HW, :].T

    return kernel


def encoder_forward(x_nchw, params):
    """Matches Encoder.forward: relu(conv2(relu(conv1(x)))). NCHW in / NCHW out."""
    w1, b1, w2, b2 = params                                  # w: (kh, kw, cin, cout)
    B, Cin, H, W = x_nchw.shape
    Cmid = w1.shape[-1]
    Cout = w2.shape[-1]
    M = B * H * W

    # --- wrapper glue: im2col for conv1 (tiny: ~27 KB at 16x16) --------------
    x = jnp.transpose(x_nchw, (0, 2, 3, 1))                  # NCHW -> NHWC
    xp = jnp.pad(x, ((0, 0), (1, 1), (1, 1), (0, 0)))
    patches = jnp.concatenate(
        [xp[:, dy:dy + H, dx:dx + W, :] for dy in range(3) for dx in range(3)],
        axis=-1).reshape(M, 9 * Cin).astype(jnp.bfloat16)    # (M, 27)
    # TODO(synk): for large H*W, build conv1 patches in-kernel from padded NHWC
    # input instead of materializing the 9x-replicated im2col in HBM.

    # --- 0/1 edge-keep masks, precomputed so the kernel does no iota/div -----
    r = jnp.arange(M, dtype=jnp.int32)
    wpos = r % W
    hpos = (r // W) % H
    keep = jnp.stack(
        [(wpos != 0), (wpos != W - 1), (hpos != 0), (hpos != H - 1)]
    ).astype(jnp.float32).reshape(4, M, 1)

    # --- weights / biases in kernel layout ------------------------------------
    w1f = w1.reshape(9 * Cin, Cmid).astype(jnp.bfloat16)        # (27, 64)
    w2f = w2.reshape(3, 3 * Cmid, Cout).astype(jnp.bfloat16)    # (3, 192, 128)
    b1r = b1.reshape(1, Cmid).astype(jnp.float32)
    b2r = b2.reshape(1, Cout).astype(jnp.float32)

    flops = 2 * M * (9 * Cin) * Cmid + 3 * (2 * M * (3 * Cmid) * Cout)
    bytes_accessed = (M * 9 * Cin * 2 + 4 * M * 4 + 9 * Cin * Cmid * 2
                      + 9 * Cmid * Cout * 2 + 4 * (Cmid + Cout) + M * Cout * 4)

    out = pl.pallas_call(
        _make_encoder_kernel(B, H, W, Cin, Cmid, Cout),
        out_shape=jax.ShapeDtypeStruct((B, Cout, H * W), jnp.float32),
        grid=(1,),  # single step: batch folded into M (best on 1-TC v5e/v6e)
        in_specs=[
            pl.BlockSpec((M, 9 * Cin), lambda i: (0, 0)),
            pl.BlockSpec((4, M, 1), lambda i: (0, 0, 0)),
            pl.BlockSpec((9 * Cin, Cmid), lambda i: (0, 0)),
            pl.BlockSpec((1, Cmid), lambda i: (0, 0)),
            pl.BlockSpec((3, 3 * Cmid, Cout), lambda i: (0, 0, 0)),
            pl.BlockSpec((1, Cout), lambda i: (0, 0)),
        ],
        out_specs=pl.BlockSpec((B, Cout, H * W), lambda i: (0, 0, 0)),
        compiler_params=pltpu.CompilerParams(
            dimension_semantics=("arbitrary",)),
        cost_estimate=pl.CostEstimate(
            flops=flops, transcendentals=0, bytes_accessed=bytes_accessed),
    )(patches, keep, w1f, b1r, w2f, b2r)

    # Free contiguous reshape (the transpose already happened inside the kernel).
    return out.reshape(B, Cout, H, W)


def init_params(key):
    """Deterministic synthetic parameters matching the PyTorch module shapes.

    conv1.weight: (64, 3, 3, 3)   -> stored as (3, 3, 3, 64)   (kh, kw, Cin, Cout)
    conv2.weight: (128, 64, 3, 3) -> stored as (3, 3, 64, 128)
    """
    k1, k2, k3, k4 = jax.random.split(key, 4)
    w1 = jax.random.normal(k1, (3, 3, 3, 64), jnp.float32) * 0.1
    b1 = jax.random.normal(k2, (64,), jnp.float32) * 0.01
    w2 = jax.random.normal(k3, (3, 3, 64, 128), jnp.float32) * 0.05
    b2 = jax.random.normal(k4, (128,), jnp.float32) * 0.01
    return (w1, b1, w2, b2)


def ref_forward(x_nchw, params):
    """Plain-JAX f32 reference (lax conv)."""
    w1, b1, w2, b2 = params

    def conv(x, w, b):
        y = lax.conv_general_dilated(
            x, jnp.transpose(w, (3, 2, 0, 1)),               # -> (Cout, Cin, kh, kw)
            window_strides=(1, 1), padding="SAME",
            dimension_numbers=("NCHW", "OIHW", "NCHW"))
        return jnp.maximum(y + b[None, :, None, None], 0.0)

    return conv(conv(x_nchw, w1, b1), w2, b2)


if __name__ == "__main__":
    key = jax.random.PRNGKey(0)
    k_in, k_par = jax.random.split(key)

    # Small shapes consistent with the module: batch=2, 3 input channels, 16x16.
    x = jax.random.normal(k_in, (2, 3, 16, 16), jnp.float32)
    params = init_params(k_par)

    out = jax.jit(encoder_forward)(x, params)
    out = jax.block_until_ready(out)

    assert out.shape == (2, 128, 16, 16), out.shape
    assert out.dtype == jnp.float32
    assert bool(jnp.all(out >= 0.0))  # ReLU output is non-negative

    # Cross-check against the f32 reference. Tolerance loosened because the
    # kernel uses bf16 MXU operands (f32 accumulation).
    ref = jax.block_until_ready(ref_forward(x, params))
    assert bool(jnp.allclose(out, ref, atol=5e-2, rtol=5e-2)), \
        float(jnp.max(jnp.abs(out - ref)))

    print("KERNEL_OK")
</pallas_src>

<mosaic_0001>
module attributes {stable_mosaic.version = 11 : i64} {
  func.func @kernel(%arg0: i32, %arg1: memref<512x27xbf16, #tpu.memory_space<vmem>>, %arg2: memref<4x512x1xf32, #tpu.memory_space<vmem>>, %arg3: memref<27x64xbf16, #tpu.memory_space<vmem>>, %arg4: memref<1x64xf32, #tpu.memory_space<vmem>>, %arg5: memref<3x192x128xbf16, #tpu.memory_space<vmem>>, %arg6: memref<1x128xf32, #tpu.memory_space<vmem>>, %arg7: memref<2x128x256xf32, #tpu.memory_space<vmem>>) attributes {dimension_semantics = [#tpu.dimension_semantics<arbitrary>], iteration_bounds = array<i64: 1>, scalar_prefetch = 0 : i64, scratch_operands = 0 : i64, tpu.core_type = #tpu.core_type<tc>, window_params = [{pipeline_mode = #tpu.pipeline_mode<synchronous>, transform_indices = @transform_0, window_bounds = array<i64: 512, 27>}, {pipeline_mode = #tpu.pipeline_mode<synchronous>, transform_indices = @transform_1, window_bounds = array<i64: 4, 512, 1>}, {pipeline_mode = #tpu.pipeline_mode<synchronous>, transform_indices = @transform_2, window_bounds = array<i64: 27, 64>}, {pipeline_mode = #tpu.pipeline_mode<synchronous>, transform_indices = @transform_3, window_bounds = array<i64: 1, 64>}, {pipeline_mode = #tpu.pipeline_mode<synchronous>, transform_indices = @transform_4, window_bounds = array<i64: 3, 192, 128>}, {pipeline_mode = #tpu.pipeline_mode<synchronous>, transform_indices = @transform_5, window_bounds = array<i64: 1, 128>}, {pipeline_mode = #tpu.pipeline_mode<synchronous>, transform_indices = @transform_6, window_bounds = array<i64: 2, 128, 256>}]} {
    %c0 = arith.constant 0 : index
    %c0_0 = arith.constant 0 : index
    %0 = vector.load %arg1[%c0, %c0_0] : memref<512x27xbf16, #tpu.memory_space<vmem>>, vector<512x27xbf16>
    %c0_1 = arith.constant 0 : index
    %c0_2 = arith.constant 0 : index
    %1 = vector.load %arg3[%c0_1, %c0_2] : memref<27x64xbf16, #tpu.memory_space<vmem>>, vector<27x64xbf16>
    %cst = arith.constant dense<0.000000e+00> : vector<512x64xf32>
    %2 = tpu.matmul %0, %1, %cst {dimension_numbers = #tpu.dot_dimension_numbers<[1], [0], [0], [1], [0, 0, 1, 1], [], []>} : vector<512x27xbf16>, vector<27x64xbf16>, vector<512x64xf32> -> vector<512x64xf32>
    %c0_3 = arith.constant 0 : index
    %c0_4 = arith.constant 0 : index
    %3 = vector.load %arg4[%c0_3, %c0_4] : memref<1x64xf32, #tpu.memory_space<vmem>>, vector<1x64xf32>
    %4 = vector.broadcast %3 : vector<1x64xf32> to vector<512x64xf32>
    %5 = arith.addf %2, %4 : vector<512x64xf32>
    %cst_5 = arith.constant 0.000000e+00 : f32
    %6 = vector.broadcast %cst_5 : f32 to vector<512x64xf32>
    %7 = arith.maximumf %5, %6 : vector<512x64xf32>
    %cst_6 = arith.constant 0.000000e+00 : f32
    %8 = vector.broadcast %cst_6 : f32 to vector<1x64xf32>
    %9 = vector.extract_strided_slice %7 {offsets = [0, 0], sizes = [511, 64], strides = [1, 1]} : vector<512x64xf32> to vector<511x64xf32>
    %10 = tpu.concatenate %8, %9 in 0 : vector<1x64xf32>, vector<511x64xf32> -> vector<512x64xf32>
    %c0_7 = arith.constant 0 : index
    %c0_8 = arith.constant 0 : index
    %c0_9 = arith.constant 0 : index
    %11 = vector.load %arg2[%c0_7, %c0_8, %c0_9] : memref<4x512x1xf32, #tpu.memory_space<vmem>>, vector<1x512x1xf32>
    %12 = vector.shape_cast %11 : vector<1x512x1xf32> to vector<512x1xf32>
    %13 = vector.broadcast %12 : vector<512x1xf32> to vector<512x64xf32>
    %14 = arith.mulf %10, %13 : vector<512x64xf32>
    %15 = vector.extract_strided_slice %7 {offsets = [1, 0], sizes = [511, 64], strides = [1, 1]} : vector<512x64xf32> to vector<511x64xf32>
    %16 = tpu.concatenate %15, %8 in 0 : vector<511x64xf32>, vector<1x64xf32> -> vector<512x64xf32>
    %c1 = arith.constant 1 : index
    %c0_10 = arith.constant 0 : index
    %c0_11 = arith.constant 0 : index
    %17 = vector.load %arg2[%c1, %c0_10, %c0_11] : memref<4x512x1xf32, #tpu.memory_space<vmem>>, vector<1x512x1xf32>
    %18 = vector.shape_cast %17 : vector<1x512x1xf32> to vector<512x1xf32>
    %19 = vector.broadcast %18 : vector<512x1xf32> to vector<512x64xf32>
    %20 = arith.mulf %16, %19 : vector<512x64xf32>
    %21 = tpu.concatenate %14, %7, %20 in 1 : vector<512x64xf32>, vector<512x64xf32>, vector<512x64xf32> -> vector<512x192xf32>
    %22 = arith.truncf %21 : vector<512x192xf32> to vector<512x192xbf16>
    %cst_12 = arith.constant 0.000000e+00 : bf16
    %23 = vector.broadcast %cst_12 : bf16 to vector<16x192xbf16>
    %24 = vector.extract_strided_slice %22 {offsets = [0, 0], sizes = [496, 192], strides = [1, 1]} : vector<512x192xbf16> to vector<496x192xbf16>
    %25 = tpu.concatenate %23, %24 in 0 : vector<16x192xbf16>, vector<496x192xbf16> -> vector<512x192xbf16>
    %26 = vector.extract_strided_slice %22 {offsets = [16, 0], sizes = [496, 192], strides = [1, 1]} : vector<512x192xbf16> to vector<496x192xbf16>
    %27 = tpu.concatenate %26, %23 in 0 : vector<496x192xbf16>, vector<16x192xbf16> -> vector<512x192xbf16>
    %c2 = arith.constant 2 : index
    %c0_13 = arith.constant 0 : index
    %c0_14 = arith.constant 0 : index
    %28 = vector.load %arg2[%c2, %c0_13, %c0_14] : memref<4x512x1xf32, #tpu.memory_space<vmem>>, vector<1x512x1xf32>
    %29 = vector.shape_cast %28 : vector<1x512x1xf32> to vector<512x1xf32>
    %c0_15 = arith.constant 0 : index
    %c0_16 = arith.constant 0 : index
    %c0_17 = arith.constant 0 : index
    %30 = vector.load %arg5[%c0_15, %c0_16, %c0_17] : memref<3x192x128xbf16, #tpu.memory_space<vmem>>, vector<1x192x128xbf16>
    %31 = vector.shape_cast %30 : vector<1x192x128xbf16> to vector<192x128xbf16>
    %cst_18 = arith.constant dense<0.000000e+00> : vector<512x128xf32>
    %32 = tpu.matmul %25, %31, %cst_18 {dimension_numbers = #tpu.dot_dimension_numbers<[1], [0], [0], [1], [0, 0, 1, 1], [], []>} : vector<512x192xbf16>, vector<192x128xbf16>, vector<512x128xf32> -> vector<512x128xf32>
    %33 = vector.broadcast %29 : vector<512x1xf32> to vector<512x128xf32>
    %34 = arith.mulf %33, %32 : vector<512x128xf32>
    %c1_19 = arith.constant 1 : index
    %c0_20 = arith.constant 0 : index
    %c0_21 = arith.constant 0 : index
    %35 = vector.load %arg5[%c1_19, %c0_20, %c0_21] : memref<3x192x128xbf16, #tpu.memory_space<vmem>>, vector<1x192x128xbf16>
    %36 = vector.shape_cast %35 : vector<1x192x128xbf16> to vector<192x128xbf16>
    %cst_22 = arith.constant dense<0.000000e+00> : vector<512x128xf32>
    %37 = tpu.matmul %22, %36, %cst_22 {dimension_numbers = #tpu.dot_dimension_numbers<[1], [0], [0], [1], [0, 0, 1, 1], [], []>} : vector<512x192xbf16>, vector<192x128xbf16>, vector<512x128xf32> -> vector<512x128xf32>
    %38 = arith.addf %34, %37 : vector<512x128xf32>
    %c3 = arith.constant 3 : index
    %c0_23 = arith.constant 0 : index
    %c0_24 = arith.constant 0 : index
    %39 = vector.load %arg2[%c3, %c0_23, %c0_24] : memref<4x512x1xf32, #tpu.memory_space<vmem>>, vector<1x512x1xf32>
    %40 = vector.shape_cast %39 : vector<1x512x1xf32> to vector<512x1xf32>
    %c2_25 = arith.constant 2 : index
    %c0_26 = arith.constant 0 : index
    %c0_27 = arith.constant 0 : index
    %41 = vector.load %arg5[%c2_25, %c0_26, %c0_27] : memref<3x192x128xbf16, #tpu.memory_space<vmem>>, vector<1x192x128xbf16>
    %42 = vector.shape_cast %41 : vector<1x192x128xbf16> to vector<192x128xbf16>
    %cst_28 = arith.constant dense<0.000000e+00> : vector<512x128xf32>
    %43 = tpu.matmul %27, %42, %cst_28 {dimension_numbers = #tpu.dot_dimension_numbers<[1], [0], [0], [1], [0, 0, 1, 1], [], []>} : vector<512x192xbf16>, vector<192x128xbf16>, vector<512x128xf32> -> vector<512x128xf32>
    %44 = vector.broadcast %40 : vector<512x1xf32> to vector<512x128xf32>
    %45 = arith.mulf %44, %43 : vector<512x128xf32>
    %46 = arith.addf %38, %45 : vector<512x128xf32>
    %c0_29 = arith.constant 0 : index
    %c0_30 = arith.constant 0 : index
    %47 = vector.load %arg6[%c0_29, %c0_30] : memref<1x128xf32, #tpu.memory_space<vmem>>, vector<1x128xf32>
    %48 = vector.broadcast %47 : vector<1x128xf32> to vector<512x128xf32>
    %49 = arith.addf %46, %48 : vector<512x128xf32>
    %cst_31 = arith.constant 0.000000e+00 : f32
    %50 = vector.broadcast %cst_31 : f32 to vector<512x128xf32>
    %51 = arith.maximumf %49, %50 : vector<512x128xf32>
    %52 = vector.extract_strided_slice %51 {offsets = [0, 0], sizes = [256, 128], strides = [1, 1]} : vector<512x128xf32> to vector<256x128xf32>
    %53 = tpu.transpose %52, [1, 0] : vector<256x128xf32> -> vector<128x256xf32>
    %c0_32 = arith.constant 0 : index
    %c0_33 = arith.constant 0 : index
    %c0_34 = arith.constant 0 : index
    %54 = vector.load %arg7[%c0_32, %c0_33, %c0_34] : memref<2x128x256xf32, #tpu.memory_space<vmem>>, vector<1x128x256xf32>
    %55 = vector.shape_cast %54 : vector<1x128x256xf32> to vector<128x256xf32>
    %56 = vector.shape_cast %53 : vector<128x256xf32> to vector<1x128x256xf32>
    tpu.vector_store %arg7[%c0_32, %c0_33, %c0_34], %56 {strides = array<i32>} : memref<2x128x256xf32, #tpu.memory_space<vmem>>, vector<1x128x256xf32>,
    %57 = vector.extract_strided_slice %51 {offsets = [256, 0], sizes = [256, 128], strides = [1, 1]} : vector<512x128xf32> to vector<256x128xf32>
    %58 = tpu.transpose %57, [1, 0] : vector<256x128xf32> -> vector<128x256xf32>
    %c1_35 = arith.constant 1 : index
    %c0_36 = arith.constant 0 : index
    %c0_37 = arith.constant 0 : index
    %59 = vector.load %arg7[%c1_35, %c0_36, %c0_37] : memref<2x128x256xf32, #tpu.memory_space<vmem>>, vector<1x128x256xf32>
    %60 = vector.shape_cast %59 : vector<1x128x256xf32> to vector<128x256xf32>
    %61 = vector.shape_cast %58 : vector<128x256xf32> to vector<1x128x256xf32>
    tpu.vector_store %arg7[%c1_35, %c0_36, %c0_37], %61 {strides = array<i32>} : memref<2x128x256xf32, #tpu.memory_space<vmem>>, vector<1x128x256xf32>,
    return
  }
  func.func @transform_0(%arg0: i32) -> (i32, i32) {
    %c0_i32 = arith.constant 0 : i32
    %c0_i32_0 = arith.constant 0 : i32
    %c0_i32_1 = arith.constant 0 : i32
    return %c0_i32, %c0_i32_0 : i32, i32
  }
  func.func @transform_1(%arg0: i32) -> (i32, i32, i32) {
    %c0_i32 = arith.constant 0 : i32
    %c0_i32_0 = arith.constant 0 : i32
    %c0_i32_1 = arith.constant 0 : i32
    %c0_i32_2 = arith.constant 0 : i32
    return %c0_i32, %c0_i32_0, %c0_i32_1 : i32, i32, i32
  }
  func.func @transform_2(%arg0: i32) -> (i32, i32) {
    %c0_i32 = arith.constant 0 : i32
    %c0_i32_0 = arith.constant 0 : i32
    %c0_i32_1 = arith.constant 0 : i32
    return %c0_i32, %c0_i32_0 : i32, i32
  }
  func.func @transform_3(%arg0: i32) -> (i32, i32) {
    %c0_i32 = arith.constant 0 : i32
    %c0_i32_0 = arith.constant 0 : i32
    %c0_i32_1 = arith.constant 0 : i32
    return %c0_i32, %c0_i32_0 : i32, i32
  }
  func.func @transform_4(%arg0: i32) -> (i32, i32, i32) {
    %c0_i32 = arith.constant 0 : i32
    %c0_i32_0 = arith.constant 0 : i32
    %c0_i32_1 = arith.constant 0 : i32
    %c0_i32_2 = arith.constant 0 : i32
    return %c0_i32, %c0_i32_0, %c0_i32_1 : i32, i32, i32
  }
  func.func @transform_5(%arg0: i32) -> (i32, i32) {
    %c0_i32 = arith.constant 0 : i32
    %c0_i32_0 = arith.constant 0 : i32
    %c0_i32_1 = arith.constant 0 : i32
    return %c0_i32, %c0_i32_0 : i32, i32
  }
  func.func @transform_6(%arg0: i32) -> (i32, i32, i32) {
    %c0_i32 = arith.constant 0 : i32
    %c0_i32_0 = arith.constant 0 : i32
    %c0_i32_1 = arith.constant 0 : i32
    %c0_i32_2 = arith.constant 0 : i32
    return %c0_i32, %c0_i32_0, %c0_i32_1 : i32, i32, i32
  }
}

</mosaic_0001>

<llo_original>
// kernel: encoder_forward.1
$region0: #{encoder_forward.1}
  #allocation0 [shape = 'u32[]', space=smem, size = 0x4, offset = 0x4, fixed_abs, tag = 'smem constant byte address 0x4 - core index']
  #allocation1 [shape = 'u32[144,128]{1,0:T(1,128)}', space=vmem, size = 0x12000, scoped, tag = 'internal scratch']
  %s0 = inlined_call_operand.vmem [shape: bf16[512,27], index: 0, kind: input, shape index: {}]
  %s1 = inlined_call_operand.vmem [shape: f32[4,512,1], index: 1, kind: input, shape index: {}]
  %s2 = inlined_call_operand.vmem [shape: bf16[27,64], index: 2, kind: input, shape index: {}]
  %s3 = inlined_call_operand.vmem [shape: f32[1,64], index: 3, kind: input, shape index: {}]
  %s4 = inlined_call_operand.vmem [shape: bf16[3,192,128], index: 4, kind: input, shape index: {}]
  %s5 = inlined_call_operand.vmem [shape: f32[1,128], index: 5, kind: input, shape index: {}]
  %s6 = inlined_call_operand.vmem [shape: f32[2,128,256], index: 6, kind: output, shape index: {}]
  %s7 = sld [smem:[#allocation0]]
  $region34: #{encoder_forward.1} parent=0
    _
  %s9 = ssub.s32 1, %s7
  %s10 = scalar_select 0, %s9, %s7
  // Predicated region
  $region2: #{encoder_forward.1} parent=0 // pred_check
    _
  $region3: #{encoder_forward.1} parent=0 // pred_check_branch
    %12 = sbr.rel (0) target = $region5
  $region4: #{encoder_forward.1} parent=0 // pred_region
    _
  $region5: #{encoder_forward.1} parent=0 // pred_fallthru
    _
  // Predicated region
  $region6: #{encoder_forward.1} parent=0 // pred_check
    _
  $region7: #{encoder_forward.1} parent=0 // pred_check_branch
    %14 = sbr.rel (0) target = $region9
  $region8: #{encoder_forward.1} parent=0 // pred_region
    _
  $region9: #{encoder_forward.1} parent=0 // pred_fallthru
    _
  // Predicated region
  $region10: #{encoder_forward.1} parent=0 // pred_check
    _
  $region11: #{encoder_forward.1} parent=0 // pred_check_branch
    %16 = sbr.rel (0) target = $region13
  $region12: #{encoder_forward.1} parent=0 // pred_region
    _
  $region13: #{encoder_forward.1} parent=0 // pred_fallthru
    _
  // Predicated region
  $region14: #{encoder_forward.1} parent=0 // pred_check
    _
  $region15: #{encoder_forward.1} parent=0 // pred_check_branch
    %18 = sbr.rel (0) target = $region17
  $region16: #{encoder_forward.1} parent=0 // pred_region
    _
  $region17: #{encoder_forward.1} parent=0 // pred_fallthru
    _
  // Predicated region
  $region18: #{encoder_forward.1} parent=0 // pred_check
    _
  $region19: #{encoder_forward.1} parent=0 // pred_check_branch
    %20 = sbr.rel (0) target = $region21
  $region20: #{encoder_forward.1} parent=0 // pred_region
    _
  $region21: #{encoder_forward.1} parent=0 // pred_fallthru
    _
  // Predicated region
  $region22: #{encoder_forward.1} parent=0 // pred_check
    _
  $region23: #{encoder_forward.1} parent=0 // pred_check_branch
    %22 = sbr.rel (0) target = $region25
  $region24: #{encoder_forward.1} parent=0 // pred_region
    _
  $region25: #{encoder_forward.1} parent=0 // pred_fallthru
    _
  %v24 = vld [vmem:[%s0] sm:$0xf]
  %v25 = vld [vmem:[%s0 + $0x4] sm:$0xf]
  %v26 = vld [vmem:[%s0 + $0x8] sm:$0xf]
  %v27 = vld [vmem:[%s0 + $0xc] sm:$0xf]
  %v28 = vld [vmem:[%s0 + $0x10] sm:$0xf]
  %v29 = vld [vmem:[%s0 + $0x14] sm:$0xf]
  %v30 = vld [vmem:[%s0 + $0x18] sm:$0xf]
  %v31 = vld [vmem:[%s0 + $0x1c] sm:$0xf]
  %v32 = vld [vmem:[%s0 + $0x20] sm:$0xf]
  %v33 = vld [vmem:[%s0 + $0x24] sm:$0xf]
  %v34 = vld [vmem:[%s0 + $0x28] sm:$0xf]
  %v35 = vld [vmem:[%s0 + $0x2c] sm:$0xf]
  %v36 = vld [vmem:[%s0 + $0x30] sm:$0xf]
  %v37 = vld [vmem:[%s0 + $0x34] sm:$0xf]
  %v38 = vld [vmem:[%s0 + $0x38] sm:$0xf]
  %v39 = vld [vmem:[%s0 + $0x3c] sm:$0xf]
  %v40 = vld [vmem:[%s0 + $0x40] sm:$0xf]
  %v41 = vld [vmem:[%s0 + $0x44] sm:$0xf]
  %v42 = vld [vmem:[%s0 + $0x48] sm:$0xf]
  %v43 = vld [vmem:[%s0 + $0x4c] sm:$0xf]
  %v44 = vld [vmem:[%s0 + $0x50] sm:$0xf]
  %v45 = vld [vmem:[%s0 + $0x54] sm:$0xf]
  %v46 = vld [vmem:[%s0 + $0x58] sm:$0xf]
  %v47 = vld [vmem:[%s0 + $0x5c] sm:$0xf]
  %v48 = vld [vmem:[%s0 + $0x60] sm:$0xf]
  %v49 = vld [vmem:[%s0 + $0x64] sm:$0xf]
  %v50 = vld [vmem:[%s0 + $0x68] sm:$0xf]
  %v51 = vld [vmem:[%s0 + $0x6c] sm:$0xf]
  %v52 = vld [vmem:[%s0 + $0x70] sm:$0xf]
  %v53 = vld [vmem:[%s0 + $0x74] sm:$0xf]
  %v54 = vld [vmem:[%s0 + $0x78] sm:$0xf]
  %v55 = vld [vmem:[%s0 + $0x7c] sm:$0xf]
  %v56 = vld [vmem:[%s0 + $0x80] sm:$0xf]
  %v57 = vld [vmem:[%s0 + $0x84] sm:$0xf]
  %v58 = vld [vmem:[%s0 + $0x88] sm:$0xf]
  %v59 = vld [vmem:[%s0 + $0x8c] sm:$0xf]
  %v60 = vld [vmem:[%s0 + $0x90] sm:$0xf]
  %v61 = vld [vmem:[%s0 + $0x94] sm:$0xf]
  %v62 = vld [vmem:[%s0 + $0x98] sm:$0xf]
  %v63 = vld [vmem:[%s0 + $0x9c] sm:$0xf]
  %v64 = vld [vmem:[%s0 + $0xa0] sm:$0xf]
  %v65 = vld [vmem:[%s0 + $0xa4] sm:$0xf]
  %v66 = vld [vmem:[%s0 + $0xa8] sm:$0xf]
  %v67 = vld [vmem:[%s0 + $0xac] sm:$0xf]
  %v68 = vld [vmem:[%s0 + $0xb0] sm:$0xf]
  %v69 = vld [vmem:[%s0 + $0xb4] sm:$0xf]
  %v70 = vld [vmem:[%s0 + $0xb8] sm:$0xf]
  %v71 = vld [vmem:[%s0 + $0xbc] sm:$0xf]
  %v72 = vld [vmem:[%s0 + $0xc0] sm:$0xf]
  %v73 = vld [vmem:[%s0 + $0xc4] sm:$0xf]
  %v74 = vld [vmem:[%s0 + $0xc8] sm:$0xf]
  %v75 = vld [vmem:[%s0 + $0xcc] sm:$0xf]
  %v76 = vld [vmem:[%s0 + $0xd0] sm:$0xf]
  %v77 = vld [vmem:[%s0 + $0xd4] sm:$0xf]
  %v78 = vld [vmem:[%s0 + $0xd8] sm:$0xf]
  %v79 = vld [vmem:[%s0 + $0xdc] sm:$0xf]
  %v80 = vld [vmem:[%s0 + $0xe0] sm:$0xf]
  %v81 = vld [vmem:[%s0 + $0xe4] sm:$0xf]
  %v82 = vld [vmem:[%s0 + $0xe8] sm:$0xf]
  %v83 = vld [vmem:[%s0 + $0xec] sm:$0xf]
  %v84 = vld [vmem:[%s0 + $0xf0] sm:$0xf]
  %v85 = vld [vmem:[%s0 + $0xf4] sm:$0xf]
  %v86 = vld [vmem:[%s0 + $0xf8] sm:$0xf]
  %v87 = vld [vmem:[%s0 + $0xfc] sm:$0xf]
  %v88 = vld [vmem:[%s2] sm:$0xf]
  %v89 = vld [vmem:[%s2 + $0x4] sm:$0xf]
  %v90 = vld [vmem:[%s2 + $0x8] sm:$0xf]
  %v91 = vld [vmem:[%s2 + $0xc] sm:$0x3]
  %v92 = vld [vmem:[%s3] sm:$0x1]
  %v94 = vlaneseq
  %v95 = vshrl.u32 %v94, 7
  %v96 = vsub.s32 0, %v95
  %v97 = vrot.slane %v92, %v96
  %v163 = vunpack.c.l.b16 %v24
  %v164 = vunpack.c.l.b16 %v25
  %v165 = vunpack.c.l.b16 %v26
  %v166 = vunpack.c.l.b16 %v27
  %v167 = vunpack.c.l.b16 %v28
  %v168 = vunpack.c.l.b16 %v29
  %v169 = vunpack.c.l.b16 %v30
  %v170 = vunpack.c.l.b16 %v31
  %v171 = vunpack.c.l.b16 %v32
  %v172 = vunpack.c.l.b16 %v33
  %v173 = vunpack.c.l.b16 %v34
  %v174 = vunpack.c.l.b16 %v35
  %v175 = vunpack.c.l.b16 %v36
  %v176 = vunpack.c.l.b16 %v37
  %v177 = vunpack.c.l.b16 %v38
  %v178 = vunpack.c.l.b16 %v39
  %v179 = vunpack.c.l.b16 %v40
  %v180 = vunpack.c.l.b16 %v41
  %v181 = vunpack.c.l.b16 %v42
  %v182 = vunpack.c.l.b16 %v43
  %v183 = vunpack.c.l.b16 %v44
  %v184 = vunpack.c.l.b16 %v45
  %v185 = vunpack.c.l.b16 %v46
  %v186 = vunpack.c.l.b16 %v47
  %v187 = vunpack.c.l.b16 %v48
  %v188 = vunpack.c.l.b16 %v49
  %v189 = vunpack.c.l.b16 %v50
  %v190 = vunpack.c.l.b16 %v51
  %v191 = vunpack.c.l.b16 %v52
  %v192 = vunpack.c.l.b16 %v53
  %v193 = vunpack.c.l.b16 %v54
  %v194 = vunpack.c.l.b16 %v55
  %v195 = vunpack.c.l.b16 %v56
  %v196 = vunpack.c.l.b16 %v57
  %v197 = vunpack.c.l.b16 %v58
  %v198 = vunpack.c.l.b16 %v59
  %v199 = vunpack.c.l.b16 %v60
  %v200 = vunpack.c.l.b16 %v61
  %v201 = vunpack.c.l.b16 %v62
  %v202 = vunpack.c.l.b16 %v63
  %v203 = vunpack.c.l.b16 %v64
  %v204 = vunpack.c.l.b16 %v65
  %v205 = vunpack.c.l.b16 %v66
  %v206 = vunpack.c.l.b16 %v67
  %v207 = vunpack.c.l.b16 %v68
  %v208 = vunpack.c.l.b16 %v69
  %v209 = vunpack.c.l.b16 %v70
  %v210 = vunpack.c.l.b16 %v71
  %v211 = vunpack.c.l.b16 %v72
  %v212 = vunpack.c.l.b16 %v73
  %v213 = vunpack.c.l.b16 %v74
  %v214 = vunpack.c.l.b16 %v75
  %v215 = vunpack.c.l.b16 %v76
  %v216 = vunpack.c.l.b16 %v77
  %v217 = vunpack.c.l.b16 %v78
  %v218 = vunpack.c.l.b16 %v79
  %v219 = vunpack.c.l.b16 %v80
  %v220 = vunpack.c.l.b16 %v81
  %v221 = vunpack.c.l.b16 %v82
  %v222 = vunpack.c.l.b16 %v83
  %v223 = vunpack.c.l.b16 %v84
  %v224 = vunpack.c.l.b16 %v85
  %v225 = vunpack.c.l.b16 %v86
  %v226 = vunpack.c.l.b16 %v87
  %v227 = vpack.c.b16 %v164, %v163
  %v228 = vpack.c.b16 %v166, %v165
  %v229 = vpack.c.b16 %v168, %v167
  %v230 = vpack.c.b16 %v170, %v169
  %v231 = vpack.c.b16 %v172, %v171
  %v232 = vpack.c.b16 %v174, %v173
  %v233 = vpack.c.b16 %v176, %v175
  %v234 = vpack.c.b16 %v178, %v177
  %v235 = vpack.c.b16 %v180, %v179
  %v236 = vpack.c.b16 %v182, %v181
  %v237 = vpack.c.b16 %v184, %v183
  %v238 = vpack.c.b16 %v186, %v185
  %v239 = vpack.c.b16 %v188, %v187
  %v240 = vpack.c.b16 %v190, %v189
  %v241 = vpack.c.b16 %v192, %v191
  %v242 = vpack.c.b16 %v194, %v193
  %v243 = vpack.c.b16 %v196, %v195
  %v244 = vpack.c.b16 %v198, %v197
  %v245 = vpack.c.b16 %v200, %v199
  %v246 = vpack.c.b16 %v202, %v201
  %v247 = vpack.c.b16 %v204, %v203
  %v248 = vpack.c.b16 %v206, %v205
  %v249 = vpack.c.b16 %v208, %v207
  %v250 = vpack.c.b16 %v210, %v209
  %v251 = vpack.c.b16 %v212, %v211
  %v252 = vpack.c.b16 %v214, %v213
  %v253 = vpack.c.b16 %v216, %v215
  %v254 = vpack.c.b16 %v218, %v217
  %v255 = vpack.c.b16 %v220, %v219
  %v256 = vpack.c.b16 %v222, %v221
  %v257 = vpack.c.b16 %v224, %v223
  %v258 = vpack.c.b16 %v226, %v225
  %v263 = vunpack.c.l.b16 %v88
  %v264 = vunpack.c.l.b16 %v89
  %v265 = vunpack.c.l.b16 %v90
  %v266 = vunpack.c.l.b16 %v91
  %v267 = vpack.c.b16 %v264, %v263
  %v268 = vpack.c.b16 %v266, %v265
  %vm270 = vcmask 220160
  %v272 = vsel %vm270, %v227, 0
  %v275 = vsel %vm270, %v228, 0
  %v278 = vsel %vm270, %v229, 0
  %v281 = vsel %vm270, %v230, 0
  %v284 = vsel %vm270, %v231, 0
  %v287 = vsel %vm270, %v232, 0
  %v290 = vsel %vm270, %v233, 0
  %v293 = vsel %vm270, %v234, 0
  %v296 = vsel %vm270, %v235, 0
  %v299 = vsel %vm270, %v236, 0
  %v302 = vsel %vm270, %v237, 0
  %v305 = vsel %vm270, %v238, 0
  %v308 = vsel %vm270, %v239, 0
  %v311 = vsel %vm270, %v240, 0
  %v314 = vsel %vm270, %v241, 0
  %v317 = vsel %vm270, %v242, 0
  %v320 = vsel %vm270, %v243, 0
  %v323 = vsel %vm270, %v244, 0
  %v326 = vsel %vm270, %v245, 0
  %v329 = vsel %vm270, %v246, 0
  %v332 = vsel %vm270, %v247, 0
  %v335 = vsel %vm270, %v248, 0
  %v338 = vsel %vm270, %v249, 0
  %v341 = vsel %vm270, %v250, 0
  %v344 = vsel %vm270, %v251, 0
  %v347 = vsel %vm270, %v252, 0
  %v350 = vsel %vm270, %v253, 0
  %v353 = vsel %vm270, %v254, 0
  %v356 = vsel %vm270, %v255, 0
  %v359 = vsel %vm270, %v256, 0
  %v362 = vsel %vm270, %v257, 0
  %v365 = vsel %vm270, %v258, 0
  %vm367 = vcmask 1044480
  %vm368 = vcmask 1045504
  %v369 = vsel %vm367, 4294967295, 65535
  %v370 = vsel %vm368, %v369, 0
  %v372 = vand.u32 %v268, %v370
  %374 = vmatprep.subr.bf16.mxu0 0
  %375 = vmatpush1.bf16.msra.mxu0 %v267
  %376 = vmatprep.subr.bf16.mxu0 0
  %377 = vmatpush1.bf16.msra.mxu0 %v372
  %378 = vmatprep.subr.bf16.mxu0 0
  %379 = vmatpush1.bf16.msra.mxu0 0
  %380 = vmatprep.subr.bf16.mxu0 0
  %381 = vmatpush1.bf16.msra.mxu0 0
  %382 = vmatprep.subr.bf16.mxu0 0
  %383 = vmatpush1.bf16.msra.mxu0 0
  %384 = vmatprep.subr.bf16.mxu0 0
  %385 = vmatpush1.bf16.msra.mxu0 0
  %386 = vmatprep.subr.bf16.mxu0 0
  %387 = vmatpush1.bf16.msra.mxu0 0
  %388 = vmatprep.subr.bf16.mxu0 0
  %389 = vmatpush1.bf16.msra.mxu0 0
  %390 = vmatprep.subr.bf16.mxu0 0
  %391 = vmatpush1.bf16.msra.mxu0 0
  %392 = vmatprep.subr.bf16.mxu0 0
  %393 = vmatpush1.bf16.msra.mxu0 0
  %394 = vmatprep.subr.bf16.mxu0 0
  %395 = vmatpush1.bf16.msra.mxu0 0
  %396 = vmatprep.subr.bf16.mxu0 0
  %397 = vmatpush1.bf16.msra.mxu0 0
  %398 = vmatprep.subr.bf16.mxu0 0
  %399 = vmatpush1.bf16.msra.mxu0 0
  %400 = vmatprep.subr.bf16.mxu0 0
  %401 = vmatpush1.bf16.msra.mxu0 0
  %402 = vmatprep.subr.bf16.mxu0 0
  %403 = vmatpush1.bf16.msra.mxu0 0
  %404 = vmatprep.subr.bf16.mxu0 0
  %405 = vmatpush1.bf16.msra.mxu0 0
  %406 = vmatprep.mubr.bf16.mxu0 0
  %407 = vmatmul.mubr.bf16.gmra.mrb[0].mxu0 %v272
  %v408 = vpop.f32.mrb[0].mxu0
  %v409 = vadd.f32 %v97, %v408
  %v410 = vpop.f32.mrb[0].mxu0
  %v411 = vpop.f32.mrb[0].mxu0
  %v412 = vadd.f32 %v97, %v411
  %v413 = vpop.f32.mrb[0].mxu0
  %414 = vmatprep.mubr.bf16.mxu0 0
  %415 = vmatmul.mubr.bf16.gmra.mrb[0].mxu0 %v275
  %v416 = vpop.f32.mrb[0].mxu0
  %v417 = vadd.f32 %v97, %v416
  %v418 = vpop.f32.mrb[0].mxu0
  %v419 = vpop.f32.mrb[0].mxu0
  %v420 = vadd.f32 %v97, %v419
  %v421 = vpop.f32.mrb[0].mxu0
  %422 = vmatprep.mubr.bf16.mxu0 0
  %423 = vmatmul.mubr.bf16.gmra.mrb[0].mxu0 %v278
  %v424 = vpop.f32.mrb[0].mxu0
  %v425 = vadd.f32 %v97, %v424
  %v426 = vpop.f32.mrb[0].mxu0
  %v427 = vpop.f32.mrb[0].mxu0
  %v428 = vadd.f32 %v97, %v427
  %v429 = vpop.f32.mrb[0].mxu0
  %430 = vmatprep.mubr.bf16.mxu0 0
  %431 = vmatmul.mubr.bf16.gmra.mrb[0].mxu0 %v281
  %v432 = vpop.f32.mrb[0].mxu0
  %v433 = vadd.f32 %v97, %v432
  %v434 = vpop.f32.mrb[0].mxu0
  %v435 = vpop.f32.mrb[0].mxu0
  %v436 = vadd.f32 %v97, %v435
  %v437 = vpop.f32.mrb[0].mxu0
  %438 = vmatprep.mubr.bf16.mxu0 0
  %439 = vmatmul.mubr.bf16.gmra.mrb[0].mxu0 %v284
  %v440 = vpop.f32.mrb[0].mxu0
  %v441 = vadd.f32 %v97, %v440
  %v442 = vpop.f32.mrb[0].mxu0
  %v443 = vpop.f32.mrb[0].mxu0
  %v444 = vadd.f32 %v97, %v443
  %v445 = vpop.f32.mrb[0].mxu0
  %446 = vmatprep.mubr.bf16.mxu0 0
  %447 = vmatmul.mubr.bf16.gmra.mrb[0].mxu0 %v287
  %v448 = vpop.f32.mrb[0].mxu0
  %v449 = vadd.f32 %v97, %v448
  %v450 = vpop.f32.mrb[0].mxu0
  %v451 = vpop.f32.mrb[0].mxu0
  %v452 = vadd.f32 %v97, %v451
  %v453 = vpop.f32.mrb[0].mxu0
  %454 = vmatprep.mubr.bf16.mxu0 0
  %455 = vmatmul.mubr.bf16.gmra.mrb[0].mxu0 %v290
  %v456 = vpop.f32.mrb[0].mxu0
  %v457 = vadd.f32 %v97, %v456
  %v458 = vpop.f32.mrb[0].mxu0
  %v459 = vpop.f32.mrb[0].mxu0
  %v460 = vadd.f32 %v97, %v459
  %v461 = vpop.f32.mrb[0].mxu0
  %462 = vmatprep.mubr.bf16.mxu0 0
  %463 = vmatmul.mubr.bf16.gmra.mrb[0].mxu0 %v293
  %v464 = vpop.f32.mrb[0].mxu0
  %v465 = vadd.f32 %v97, %v464
  %v466 = vpop.f32.mrb[0].mxu0
  %v467 = vpop.f32.mrb[0].mxu0
  %v468 = vadd.f32 %v97, %v467
  %v469 = vpop.f32.mrb[0].mxu0
  %470 = vmatprep.mubr.bf16.mxu0 0
  %471 = vmatmul.mubr.bf16.gmra.mrb[0].mxu0 %v296
  %v472 = vpop.f32.mrb[0].mxu0
  %v473 = vadd.f32 %v97, %v472
  %v474 = vpop.f32.mrb[0].mxu0
  %v475 = vpop.f32.mrb[0].mxu0
  %v476 = vadd.f32 %v97, %v475
  %v477 = vpop.f32.mrb[0].mxu0
  %478 = vmatprep.mubr.bf16.mxu0 0
  %479 = vmatmul.mubr.bf16.gmra.mrb[0].mxu0 %v299
  %v480 = vpop.f32.mrb[0].mxu0
  %v481 = vadd.f32 %v97, %v480
  %v482 = vpop.f32.mrb[0].mxu0
  %v483 = vpop.f32.mrb[0].mxu0
  %v484 = vadd.f32 %v97, %v483
  %v485 = vpop.f32.mrb[0].mxu0
  %486 = vmatprep.mubr.bf16.mxu0 0
  %487 = vmatmul.mubr.bf16.gmra.mrb[0].mxu0 %v302
  %v488 = vpop.f32.mrb[0].mxu0
  %v489 = vadd.f32 %v97, %v488
  %v490 = vpop.f32.mrb[0].mxu0
  %v491 = vpop.f32.mrb[0].mxu0
  %v492 = vadd.f32 %v97, %v491
  %v493 = vpop.f32.mrb[0].mxu0
  %494 = vmatprep.mubr.bf16.mxu0 0
  %495 = vmatmul.mubr.bf16.gmra.mrb[0].mxu0 %v305
  %v496 = vpop.f32.mrb[0].mxu0
  %v497 = vadd.f32 %v97, %v496
  %v498 = vpop.f32.mrb[0].mxu0
  %v499 = vpop.f32.mrb[0].mxu0
  %v500 = vadd.f32 %v97, %v499
  %v501 = vpop.f32.mrb[0].mxu0
  %502 = vmatprep.mubr.bf16.mxu0 0
  %503 = vmatmul.mubr.bf16.gmra.mrb[0].mxu0 %v308
  %v504 = vpop.f32.mrb[0].mxu0
  %v505 = vadd.f32 %v97, %v504
  %v506 = vpop.f32.mrb[0].mxu0
  %v507 = vpop.f32.mrb[0].mxu0
  %v508 = vadd.f32 %v97, %v507
  %v509 = vpop.f32.mrb[0].mxu0
  %510 = vmatprep.mubr.bf16.mxu0 0
  %511 = vmatmul.mubr.bf16.gmra.mrb[0].mxu0 %v311
  %v512 = vpop.f32.mrb[0].mxu0
  %v513 = vadd.f32 %v97, %v512
  %v514 = vpop.f32.mrb[0].mxu0
  %v515 = vpop.f32.mrb[0].mxu0
  %v516 = vadd.f32 %v97, %v515
  %v517 = vpop.f32.mrb[0].mxu0
  %518 = vmatprep.mubr.bf16.mxu0 0
  %519 = vmatmul.mubr.bf16.gmra.mrb[0].mxu0 %v314
  %v520 = vpop.f32.mrb[0].mxu0
  %v521 = vadd.f32 %v97, %v520
  %v522 = vpop.f32.mrb[0].mxu0
  %v523 = vpop.f32.mrb[0].mxu0
  %v524 = vadd.f32 %v97, %v523
  %v525 = vpop.f32.mrb[0].mxu0
  %526 = vmatprep.mubr.bf16.mxu0 0
  %527 = vmatmul.mubr.bf16.gmra.mrb[0].mxu0 %v317
  %v528 = vpop.f32.mrb[0].mxu0
  %v529 = vadd.f32 %v97, %v528
  %v530 = vpop.f32.mrb[0].mxu0
  %v531 = vpop.f32.mrb[0].mxu0
  %v532 = vadd.f32 %v97, %v531
  %v533 = vpop.f32.mrb[0].mxu0
  %534 = vmatprep.mubr.bf16.mxu0 0
  %535 = vmatmul.mubr.bf16.gmra.mrb[0].mxu0 %v320
  %v536 = vpop.f32.mrb[0].mxu0
  %v537 = vadd.f32 %v97, %v536
  %v538 = vpop.f32.mrb[0].mxu0
  %v539 = vpop.f32.mrb[0].mxu0
  %v540 = vadd.f32 %v97, %v539
  %v541 = vpop.f32.mrb[0].mxu0
  %542 = vmatprep.mubr.bf16.mxu0 0
  %543 = vmatmul.mubr.bf16.gmra.mrb[0].mxu0 %v323
  %v544 = vpop.f32.mrb[0].mxu0
  %v545 = vadd.f32 %v97, %v544
  %v546 = vpop.f32.mrb[0].mxu0
  %v547 = vpop.f32.mrb[0].mxu0
  %v548 = vadd.f32 %v97, %v547
  %v549 = vpop.f32.mrb[0].mxu0
  %550 = vmatprep.mubr.bf16.mxu0 0
  %551 = vmatmul.mubr.bf16.gmra.mrb[0].mxu0 %v326
  %v552 = vpop.f32.mrb[0].mxu0
  %v553 = vadd.f32 %v97, %v552
  %v554 = vpop.f32.mrb[0].mxu0
  %v555 = vpop.f32.mrb[0].mxu0
  %v556 = vadd.f32 %v97, %v555
  %v557 = vpop.f32.mrb[0].mxu0
  %558 = vmatprep.mubr.bf16.mxu0 0
  %559 = vmatmul.mubr.bf16.gmra.mrb[0].mxu0 %v329
  %v560 = vpop.f32.mrb[0].mxu0
  %v561 = vadd.f32 %v97, %v560
  %v562 = vpop.f32.mrb[0].mxu0
  %v563 = vpop.f32.mrb[0].mxu0
  %v564 = vadd.f32 %v97, %v563
  %v565 = vpop.f32.mrb[0].mxu0
  %566 = vmatprep.mubr.bf16.mxu0 0
  %567 = vmatmul.mubr.bf16.gmra.mrb[0].mxu0 %v332
  %v568 = vpop.f32.mrb[0].mxu0
  %v569 = vadd.f32 %v97, %v568
  %v570 = vpop.f32.mrb[0].mxu0
  %v571 = vpop.f32.mrb[0].mxu0
  %v572 = vadd.f32 %v97, %v571
  %v573 = vpop.f32.mrb[0].mxu0
  %574 = vmatprep.mubr.bf16.mxu0 0
  %575 = vmatmul.mubr.bf16.gmra.mrb[0].mxu0 %v335
  %v576 = vpop.f32.mrb[0].mxu0
  %v577 = vadd.f32 %v97, %v576
  %v578 = vpop.f32.mrb[0].mxu0
  %v579 = vpop.f32.mrb[0].mxu0
  %v580 = vadd.f32 %v97, %v579
  %v581 = vpop.f32.mrb[0].mxu0
  %582 = vmatprep.mubr.bf16.mxu0 0
  %583 = vmatmul.mubr.bf16.gmra.mrb[0].mxu0 %v338
  %v584 = vpop.f32.mrb[0].mxu0
  %v585 = vadd.f32 %v97, %v584
  %v586 = vpop.f32.mrb[0].mxu0
  %v587 = vpop.f32.mrb[0].mxu0
  %v588 = vadd.f32 %v97, %v587
  %v589 = vpop.f32.mrb[0].mxu0
  %590 = vmatprep.mubr.bf16.mxu0 0
  %591 = vmatmul.mubr.bf16.gmra.mrb[0].mxu0 %v341
  %v592 = vpop.f32.mrb[0].mxu0
  %v593 = vadd.f32 %v97, %v592
  %v594 = vpop.f32.mrb[0].mxu0
  %v595 = vpop.f32.mrb[0].mxu0
  %v596 = vadd.f32 %v97, %v595
  %v597 = vpop.f32.mrb[0].mxu0
  %598 = vmatprep.mubr.bf16.mxu0 0
  %599 = vmatmul.mubr.bf16.gmra.mrb[0].mxu0 %v344
  %v600 = vpop.f32.mrb[0].mxu0
  %v601 = vadd.f32 %v97, %v600
  %v602 = vpop.f32.mrb[0].mxu0
  %v603 = vpop.f32.mrb[0].mxu0
  %v604 = vadd.f32 %v97, %v603
  %v605 = vpop.f32.mrb[0].mxu0
  %606 = vmatprep.mubr.bf16.mxu0 0
  %607 = vmatmul.mubr.bf16.gmra.mrb[0].mxu0 %v347
  %v608 = vpop.f32.mrb[0].mxu0
  %v609 = vadd.f32 %v97, %v608
  %v610 = vpop.f32.mrb[0].mxu0
  %v611 = vpop.f32.mrb[0].mxu0
  %v612 = vadd.f32 %v97, %v611
  %v613 = vpop.f32.mrb[0].mxu0
  %614 = vmatprep.mubr.bf16.mxu0 0
  %615 = vmatmul.mubr.bf16.gmra.mrb[0].mxu0 %v350
  %v616 = vpop.f32.mrb[0].mxu0
  %v617 = vadd.f32 %v97, %v616
  %v618 = vpop.f32.mrb[0].mxu0
  %v619 = vpop.f32.mrb[0].mxu0
  %v620 = vadd.f32 %v97, %v619
  %v621 = vpop.f32.mrb[0].mxu0
  %622 = vmatprep.mubr.bf16.mxu0 0
  %623 = vmatmul.mubr.bf16.gmra.mrb[0].mxu0 %v353
  %v624 = vpop.f32.mrb[0].mxu0
  %v625 = vadd.f32 %v97, %v624
  %v626 = vpop.f32.mrb[0].mxu0
  %v627 = vpop.f32.mrb[0].mxu0
  %v628 = vadd.f32 %v97, %v627
  %v629 = vpop.f32.mrb[0].mxu0
  %630 = vmatprep.mubr.bf16.mxu0 0
  %631 = vmatmul.mubr.bf16.gmra.mrb[0].mxu0 %v356
  %v632 = vpop.f32.mrb[0].mxu0
  %v633 = vadd.f32 %v97, %v632
  %v634 = vpop.f32.mrb[0].mxu0
  %v635 = vpop.f32.mrb[0].mxu0
  %v636 = vadd.f32 %v97, %v635
  %v637 = vpop.f32.mrb[0].mxu0
  %638 = vmatprep.mubr.bf16.mxu0 0
  %639 = vmatmul.mubr.bf16.gmra.mrb[0].mxu0 %v359
  %v640 = vpop.f32.mrb[0].mxu0
  %v641 = vadd.f32 %v97, %v640
  %v642 = vpop.f32.mrb[0].mxu0
  %v643 = vpop.f32.mrb[0].mxu0
  %v644 = vadd.f32 %v97, %v643
  %v645 = vpop.f32.mrb[0].mxu0
  %646 = vmatprep.mubr.bf16.mxu0 0
  %647 = vmatmul.mubr.bf16.gmra.mrb[0].mxu0 %v362
  %v648 = vpop.f32.mrb[0].mxu0
  %v649 = vadd.f32 %v97, %v648
  %v650 = vpop.f32.mrb[0].mxu0
  %v651 = vpop.f32.mrb[0].mxu0
  %v652 = vadd.f32 %v97, %v651
  %v653 = vpop.f32.mrb[0].mxu0
  %654 = vmatprep.mubr.bf16.mxu0 0
  %655 = vmatmul.mubr.bf16.gmra.mrb[0].mxu0 %v365
  %v656 = vpop.f32.mrb[0].mxu0
  %v657 = vadd.f32 %v97, %v656
  %v658 = vpop.f32.mrb[0].mxu0
  %v659 = vpop.f32.mrb[0].mxu0
  %v660 = vadd.f32 %v97, %v659
  %v661 = vpop.f32.mrb[0].mxu0
  %662 = vdwg.mxu0
  %v663 = vmax.f32 %v409, 0.0
  %v664 = vmax.f32 %v412, 0.0
  %v665 = vmax.f32 %v417, 0.0
  %v666 = vmax.f32 %v420, 0.0
  %v667 = vmax.f32 %v425, 0.0
  %v668 = vmax.f32 %v428, 0.0
  %v669 = vmax.f32 %v433, 0.0
  %v670 = vmax.f32 %v436, 0.0
  %v671 = vmax.f32 %v441, 0.0
  %v672 = vmax.f32 %v444, 0.0
  %v673 = vmax.f32 %v449, 0.0
  %v674 = vmax.f32 %v452, 0.0
  %v675 = vmax.f32 %v457, 0.0
  %v676 = vmax.f32 %v460, 0.0
  %v677 = vmax.f32 %v465, 0.0
  %v678 = vmax.f32 %v468, 0.0
  %v679 = vmax.f32 %v473, 0.0
  %v680 = vmax.f32 %v476, 0.0
  %v681 = vmax.f32 %v481, 0.0
  %v682 = vmax.f32 %v484, 0.0
  %v683 = vmax.f32 %v489, 0.0
  %v684 = vmax.f32 %v492, 0.0
  %v685 = vmax.f32 %v497, 0.0
  %v686 = vmax.f32 %v500, 0.0
  %v687 = vmax.f32 %v505, 0.0
  %v688 = vmax.f32 %v508, 0.0
  %v689 = vmax.f32 %v513, 0.0
  %v690 = vmax.f32 %v516, 0.0
  %v691 = vmax.f32 %v521, 0.0
  %v692 = vmax.f32 %v524, 0.0
  %v693 = vmax.f32 %v529, 0.0
  %v694 = vmax.f32 %v532, 0.0
  %v695 = vmax.f32 %v537, 0.0
  %v696 = vmax.f32 %v540, 0.0
  %v697 = vmax.f32 %v545, 0.0
  %v698 = vmax.f32 %v548, 0.0
  %v699 = vmax.f32 %v553, 0.0
  %v700 = vmax.f32 %v556, 0.0
  %v701 = vmax.f32 %v561, 0.0
  %v702 = vmax.f32 %v564, 0.0
  %v703 = vmax.f32 %v569, 0.0
  %v704 = vmax.f32 %v572, 0.0
  %v705 = vmax.f32 %v577, 0.0
  %v706 = vmax.f32 %v580, 0.0
  %v707 = vmax.f32 %v585, 0.0
  %v708 = vmax.f32 %v588, 0.0
  %v709 = vmax.f32 %v593, 0.0
  %v710 = vmax.f32 %v596, 0.0
  %v711 = vmax.f32 %v601, 0.0
  %v712 = vmax.f32 %v604, 0.0
  %v713 = vmax.f32 %v609, 0.0
  %v714 = vmax.f32 %v612, 0.0
  %v715 = vmax.f32 %v617, 0.0
  %v716 = vmax.f32 %v620, 0.0
  %v717 = vmax.f32 %v625, 0.0
  %v718 = vmax.f32 %v628, 0.0
  %v719 = vmax.f32 %v633, 0.0
  %v720 = vmax.f32 %v636, 0.0
  %v721 = vmax.f32 %v641, 0.0
  %v722 = vmax.f32 %v644, 0.0
  %v723 = vmax.f32 %v649, 0.0
  %v724 = vmax.f32 %v652, 0.0
  %v725 = vmax.f32 %v657, 0.0
  %v726 = vmax.f32 %v660, 0.0
  %vm791 = vcmask 1040384
  %v792 = vrot.slane %v663, 7
  %v793 = vrot.slane %v664, 7
  %v794 = vsel %vm791, %v792, %v793
  %v795 = vrot.slane %v665, 7
  %v796 = vsel %vm791, %v793, %v795
  %v797 = vrot.slane %v666, 7
  %v798 = vsel %vm791, %v795, %v797
  %v799 = vrot.slane %v667, 7
  %v800 = vsel %vm791, %v797, %v799
  %v801 = vrot.slane %v668, 7
  %v802 = vsel %vm791, %v799, %v801
  %v803 = vrot.slane %v669, 7
  %v804 = vsel %vm791, %v801, %v803
  %v805 = vrot.slane %v670, 7
  %v806 = vsel %vm791, %v803, %v805
  %v807 = vrot.slane %v671, 7
  %v808 = vsel %vm791, %v805, %v807
  %v809 = vrot.slane %v672, 7
  %v810 = vsel %vm791, %v807, %v809
  %v811 = vrot.slane %v673, 7
  %v812 = vsel %vm791, %v809, %v811
  %v813 = vrot.slane %v674, 7
  %v814 = vsel %vm791, %v811, %v813
  %v815 = vrot.slane %v675, 7
  %v816 = vsel %vm791, %v813, %v815
  %v817 = vrot.slane %v676, 7
  %v818 = vsel %vm791, %v815, %v817
  %v819 = vrot.slane %v677, 7
  %v820 = vsel %vm791, %v817, %v819
  %v821 = vrot.slane %v678, 7
  %v822 = vsel %vm791, %v819, %v821
  %v823 = vrot.slane %v679, 7
  %v824 = vsel %vm791, %v821, %v823
  %v825 = vrot.slane %v680, 7
  %v826 = vsel %vm791, %v823, %v825
  %v827 = vrot.slane %v681, 7
  %v828 = vsel %vm791, %v825, %v827
  %v829 = vrot.slane %v682, 7
  %v830 = vsel %vm791, %v827, %v829
  %v831 = vrot.slane %v683, 7
  %v832 = vsel %vm791, %v829, %v831
  %v833 = vrot.slane %v684, 7
  %v834 = vsel %vm791, %v831, %v833
  %v835 = vrot.slane %v685, 7
  %v836 = vsel %vm791, %v833, %v835
  %v837 = vrot.slane %v686, 7
  %v838 = vsel %vm791, %v835, %v837
  %v839 = vrot.slane %v687, 7
  %v840 = vsel %vm791, %v837, %v839
  %v841 = vrot.slane %v688, 7
  %v842 = vsel %vm791, %v839, %v841
  %v843 = vrot.slane %v689, 7
  %v844 = vsel %vm791, %v841, %v843
  %v845 = vrot.slane %v690, 7
  %v846 = vsel %vm791, %v843, %v845
  %v847 = vrot.slane %v691, 7
  %v848 = vsel %vm791, %v845, %v847
  %v849 = vrot.slane %v692, 7
  %v850 = vsel %vm791, %v847, %v849
  %v851 = vrot.slane %v693, 7
  %v852 = vsel %vm791, %v849, %v851
  %v853 = vrot.slane %v694, 7
  %v854 = vsel %vm791, %v851, %v853
  %v855 = vrot.slane %v695, 7
  %v856 = vsel %vm791, %v853, %v855
  %v857 = vrot.slane %v696, 7
  %v858 = vsel %vm791, %v855, %v857
  %v859 = vrot.slane %v697, 7
  %v860 = vsel %vm791, %v857, %v859
  %v861 = vrot.slane %v698, 7
  %v862 = vsel %vm791, %v859, %v861
  %v863 = vrot.slane %v699, 7
  %v864 = vsel %vm791, %v861, %v863
  %v865 = vrot.slane %v700, 7
  %v866 = vsel %vm791, %v863, %v865
  %v867 = vrot.slane %v701, 7
  %v868 = vsel %vm791, %v865, %v867
  %v869 = vrot.slane %v702, 7
  %v870 = vsel %vm791, %v867, %v869
  %v871 = vrot.slane %v703, 7
  %v872 = vsel %vm791, %v869, %v871
  %v873 = vrot.slane %v704, 7
  %v874 = vsel %vm791, %v871, %v873
  %v875 = vrot.slane %v705, 7
  %v876 = vsel %vm791, %v873, %v875
  %v877 = vrot.slane %v706, 7
  %v878 = vsel %vm791, %v875, %v877
  %v879 = vrot.slane %v707, 7
  %v880 = vsel %vm791, %v877, %v879
  %v881 = vrot.slane %v708, 7
  %v882 = vsel %vm791, %v879, %v881
  %v883 = vrot.slane %v709, 7
  %v884 = vsel %vm791, %v881, %v883
  %v885 = vrot.slane %v710, 7
  %v886 = vsel %vm791, %v883, %v885
  %v887 = vrot.slane %v711, 7
  %v888 = vsel %vm791, %v885, %v887
  %v889 = vrot.slane %v712, 7
  %v890 = vsel %vm791, %v887, %v889
  %v891 = vrot.slane %v713, 7
  %v892 = vsel %vm791, %v889, %v891
  %v893 = vrot.slane %v714, 7
  %v894 = vsel %vm791, %v891, %v893
  %v895 = vrot.slane %v715, 7
  %v896 = vsel %vm791, %v893, %v895
  %v897 = vrot.slane %v716, 7
  %v898 = vsel %vm791, %v895, %v897
  %v899 = vrot.slane %v717, 7
  %v900 = vsel %vm791, %v897, %v899
  %v901 = vrot.slane %v718, 7
  %v902 = vsel %vm791, %v899, %v901
  %v903 = vrot.slane %v719, 7
  %v904 = vsel %vm791, %v901, %v903
  %v905 = vrot.slane %v720, 7
  %v906 = vsel %vm791, %v903, %v905
  %v907 = vrot.slane %v721, 7
  %v908 = vsel %vm791, %v905, %v907
  %v909 = vrot.slane %v722, 7
  %v910 = vsel %vm791, %v907, %v909
  %v911 = vrot.slane %v723, 7
  %v912 = vsel %vm791, %v909, %v911
  %v913 = vrot.slane %v724, 7
  %v914 = vsel %vm791, %v911, %v913
  %v915 = vrot.slane %v725, 7
  %v916 = vsel %vm791, %v913, %v915
  %v917 = vrot.slane %v726, 7
  %v918 = vsel %vm791, %v915, %v917
  %v983 = vsel %vm791, 0.0, %v792
  %v984 = vld [vmem:[%s1] sm:$0xff]
  %v985 = vld [vmem:[%s1 + $0x8] sm:$0xff]
  %v986 = vld [vmem:[%s1 + $0x10] sm:$0xff]
  %v987 = vld [vmem:[%s1 + $0x18] sm:$0xff]
  %v988 = vld [vmem:[%s1 + $0x20] sm:$0xff]
  %v989 = vld [vmem:[%s1 + $0x28] sm:$0xff]
  %v990 = vld [vmem:[%s1 + $0x30] sm:$0xff]
  %v991 = vld [vmem:[%s1 + $0x38] sm:$0xff]
  %v992 = vld [vmem:[%s1 + $0x40] sm:$0xff]
  %v993 = vld [vmem:[%s1 + $0x48] sm:$0xff]
  %v994 = vld [vmem:[%s1 + $0x50] sm:$0xff]
  %v995 = vld [vmem:[%s1 + $0x58] sm:$0xff]
  %v996 = vld [vmem:[%s1 + $0x60] sm:$0xff]
  %v997 = vld [vmem:[%s1 + $0x68] sm:$0xff]
  %v998 = vld [vmem:[%s1 + $0x70] sm:$0xff]
  %v999 = vld [vmem:[%s1 + $0x78] sm:$0xff]
  %v1000 = vld [vmem:[%s1 + $0x80] sm:$0xff]
  %v1001 = vld [vmem:[%s1 + $0x88] sm:$0xff]
  %v1002 = vld [vmem:[%s1 + $0x90] sm:$0xff]
  %v1003 = vld [vmem:[%s1 + $0x98] sm:$0xff]
  %v1004 = vld [vmem:[%s1 + $0xa0] sm:$0xff]
  %v1005 = vld [vmem:[%s1 + $0xa8] sm:$0xff]
  %v1006 = vld [vmem:[%s1 + $0xb0] sm:$0xff]
  %v1007 = vld [vmem:[%s1 + $0xb8] sm:$0xff]
  %v1008 = vld [vmem:[%s1 + $0xc0] sm:$0xff]
  %v1009 = vld [vmem:[%s1 + $0xc8] sm:$0xff]
  %v1010 = vld [vmem:[%s1 + $0xd0] sm:$0xff]
  %v1011 = vld [vmem:[%s1 + $0xd8] sm:$0xff]
  %v1012 = vld [vmem:[%s1 + $0xe0] sm:$0xff]
  %v1013 = vld [vmem:[%s1 + $0xe8] sm:$0xff]
  %v1014 = vld [vmem:[%s1 + $0xf0] sm:$0xff]
  %v1015 = vld [vmem:[%s1 + $0xf8] sm:$0xff]
  %v1016 = vld [vmem:[%s1 + $0x100] sm:$0xff]
  %v1017 = vld [vmem:[%s1 + $0x108] sm:$0xff]
  %v1018 = vld [vmem:[%s1 + $0x110] sm:$0xff]
  %v1019 = vld [vmem:[%s1 + $0x118] sm:$0xff]
  %v1020 = vld [vmem:[%s1 + $0x120] sm:$0xff]
  %v1021 = vld [vmem:[%s1 + $0x128] sm:$0xff]
  %v1022 = vld [vmem:[%s1 + $0x130] sm:$0xff]
  %v1023 = vld [vmem:[%s1 + $0x138] sm:$0xff]
  %v1024 = vld [vmem:[%s1 + $0x140] sm:$0xff]
  %v1025 = vld [vmem:[%s1 + $0x148] sm:$0xff]
  %v1026 = vld [vmem:[%s1 + $0x150] sm:$0xff]
  %v1027 = vld [vmem:[%s1 + $0x158] sm:$0xff]
  %v1028 = vld [vmem:[%s1 + $0x160] sm:$0xff]
  %v1029 = vld [vmem:[%s1 + $0x168] sm:$0xff]
  %v1030 = vld [vmem:[%s1 + $0x170] sm:$0xff]
  %v1031 = vld [vmem:[%s1 + $0x178] sm:$0xff]
  %v1032 = vld [vmem:[%s1 + $0x180] sm:$0xff]
  %v1033 = vld [vmem:[%s1 + $0x188] sm:$0xff]
  %v1034 = vld [vmem:[%s1 + $0x190] sm:$0xff]
  %v1035 = vld [vmem:[%s1 + $0x198] sm:$0xff]
  %v1036 = vld [vmem:[%s1 + $0x1a0] sm:$0xff]
  %v1037 = vld [vmem:[%s1 + $0x1a8] sm:$0xff]
  %v1038 = vld [vmem:[%s1 + $0x1b0] sm:$0xff]
  %v1039 = vld [vmem:[%s1 + $0x1b8] sm:$0xff]
  %v1040 = vld [vmem:[%s1 + $0x1c0] sm:$0xff]
  %v1041 = vld [vmem:[%s1 + $0x1c8] sm:$0xff]
  %v1042 = vld [vmem:[%s1 + $0x1d0] sm:$0xff]
  %v1043 = vld [vmem:[%s1 + $0x1d8] sm:$0xff]
  %v1044 = vld [vmem:[%s1 + $0x1e0] sm:$0xff]
  %v1045 = vld [vmem:[%s1 + $0x1e8] sm:$0xff]
  %v1046 = vld [vmem:[%s1 + $0x1f0] sm:$0xff]
  %v1047 = vld [vmem:[%s1 + $0x1f8] sm:$0xff]
  %1049 = vset.pattern.permute.xlu0 0
  %1050 = vperm.xlu0 %1049, %v984
  %v1051 = vpop.permute.xlu0 %1050
  %1054 = vset.pattern.permute.xlu0 0
  %1055 = vperm.xlu0 %1054, %v985
  %v1056 = vpop.permute.xlu0 %1055
  %1059 = vset.pattern.permute.xlu0 0
  %1060 = vperm.xlu0 %1059, %v986
  %v1061 = vpop.permute.xlu0 %1060
  %1064 = vset.pattern.permute.xlu0 0
  %1065 = vperm.xlu0 %1064, %v987
  %v1066 = vpop.permute.xlu0 %1065
  %1069 = vset.pattern.permute.xlu0 0
  %1070 = vperm.xlu0 %1069, %v988
  %v1071 = vpop.permute.xlu0 %1070
  %1074 = vset.pattern.permute.xlu0 0
  %1075 = vperm.xlu0 %1074, %v989
  %v1076 = vpop.permute.xlu0 %1075
  %1079 = vset.pattern.permute.xlu0 0
  %1080 = vperm.xlu0 %1079, %v990
  %v1081 = vpop.permute.xlu0 %1080
  %1084 = vset.pattern.permute.xlu0 0
  %1085 = vperm.xlu0 %1084, %v991
  %v1086 = vpop.permute.xlu0 %1085
  %1089 = vset.pattern.permute.xlu0 0
  %1090 = vperm.xlu0 %1089, %v992
  %v1091 = vpop.permute.xlu0 %1090
  %1094 = vset.pattern.permute.xlu0 0
  %1095 = vperm.xlu0 %1094, %v993
  %v1096 = vpop.permute.xlu0 %1095
  %1099 = vset.pattern.permute.xlu0 0
  %1100 = vperm.xlu0 %1099, %v994
  %v1101 = vpop.permute.xlu0 %1100
  %1104 = vset.pattern.permute.xlu0 0
  %1105 = vperm.xlu0 %1104, %v995
  %v1106 = vpop.permute.xlu0 %1105
  %1109 = vset.pattern.permute.xlu0 0
  %1110 = vperm.xlu0 %1109, %v996
  %v1111 = vpop.permute.xlu0 %1110
  %1114 = vset.pattern.permute.xlu0 0
  %1115 = vperm.xlu0 %1114, %v997
  %v1116 = vpop.permute.xlu0 %1115
  %1119 = vset.pattern.permute.xlu0 0
  %1120 = vperm.xlu0 %1119, %v998
  %v1121 = vpop.permute.xlu0 %1120
  %1124 = vset.pattern.permute.xlu0 0
  %1125 = vperm.xlu0 %1124, %v999
  %v1126 = vpop.permute.xlu0 %1125
  %1129 = vset.pattern.permute.xlu0 0
  %1130 = vperm.xlu0 %1129, %v1000
  %v1131 = vpop.permute.xlu0 %1130
  %1134 = vset.pattern.permute.xlu0 0
  %1135 = vperm.xlu0 %1134, %v1001
  %v1136 = vpop.permute.xlu0 %1135
  %1139 = vset.pattern.permute.xlu0 0
  %1140 = vperm.xlu0 %1139, %v1002
  %v1141 = vpop.permute.xlu0 %1140
  %1144 = vset.pattern.permute.xlu0 0
  %1145 = vperm.xlu0 %1144, %v1003
  %v1146 = vpop.permute.xlu0 %1145
  %1149 = vset.pattern.permute.xlu0 0
  %1150 = vperm.xlu0 %1149, %v1004
  %v1151 = vpop.permute.xlu0 %1150
  %1154 = vset.pattern.permute.xlu0 0
  %1155 = vperm.xlu0 %1154, %v1005
  %v1156 = vpop.permute.xlu0 %1155
  %1159 = vset.pattern.permute.xlu0 0
  %1160 = vperm.xlu0 %1159, %v1006
  %v1161 = vpop.permute.xlu0 %1160
  %1164 = vset.pattern.permute.xlu0 0
  %1165 = vperm.xlu0 %1164, %v1007
  %v1166 = vpop.permute.xlu0 %1165
  %1169 = vset.pattern.permute.xlu0 0
  %1170 = vperm.xlu0 %1169, %v1008
  %v1171 = vpop.permute.xlu0 %1170
  %1174 = vset.pattern.permute.xlu0 0
  %1175 = vperm.xlu0 %1174, %v1009
  %v1176 = vpop.permute.xlu0 %1175
  %1179 = vset.pattern.permute.xlu0 0
  %1180 = vperm.xlu0 %1179, %v1010
  %v1181 = vpop.permute.xlu0 %1180
  %1184 = vset.pattern.permute.xlu0 0
  %1185 = vperm.xlu0 %1184, %v1011
  %v1186 = vpop.permute.xlu0 %1185
  %1189 = vset.pattern.permute.xlu0 0
  %1190 = vperm.xlu0 %1189, %v1012
  %v1191 = vpop.permute.xlu0 %1190
  %1194 = vset.pattern.permute.xlu0 0
  %1195 = vperm.xlu0 %1194, %v1013
  %v1196 = vpop.permute.xlu0 %1195
  %1199 = vset.pattern.permute.xlu0 0
  %1200 = vperm.xlu0 %1199, %v1014
  %v1201 = vpop.permute.xlu0 %1200
  %1204 = vset.pattern.permute.xlu0 0
  %1205 = vperm.xlu0 %1204, %v1015
  %v1206 = vpop.permute.xlu0 %1205
  %1209 = vset.pattern.permute.xlu0 0
  %1210 = vperm.xlu0 %1209, %v1016
  %v1211 = vpop.permute.xlu0 %1210
  %1214 = vset.pattern.permute.xlu0 0
  %1215 = vperm.xlu0 %1214, %v1017
  %v1216 = vpop.permute.xlu0 %1215
  %1219 = vset.pattern.permute.xlu0 0
  %1220 = vperm.xlu0 %1219, %v1018
  %v1221 = vpop.permute.xlu0 %1220
  %1224 = vset.pattern.permute.xlu0 0
  %1225 = vperm.xlu0 %1224, %v1019
  %v1226 = vpop.permute.xlu0 %1225
  %1229 = vset.pattern.permute.xlu0 0
  %1230 = vperm.xlu0 %1229, %v1020
  %v1231 = vpop.permute.xlu0 %1230
  %1234 = vset.pattern.permute.xlu0 0
  %1235 = vperm.xlu0 %1234, %v1021
  %v1236 = vpop.permute.xlu0 %1235
  %1239 = vset.pattern.permute.xlu0 0
  %1240 = vperm.xlu0 %1239, %v1022
  %v1241 = vpop.permute.xlu0 %1240
  %1244 = vset.pattern.permute.xlu0 0
  %1245 = vperm.xlu0 %1244, %v1023
  %v1246 = vpop.permute.xlu0 %1245
  %1249 = vset.pattern.permute.xlu0 0
  %1250 = vperm.xlu0 %1249, %v1024
  %v1251 = vpop.permute.xlu0 %1250
  %1254 = vset.pattern.permute.xlu0 0
  %1255 = vperm.xlu0 %1254, %v1025
  %v1256 = vpop.permute.xlu0 %1255
  %1259 = vset.pattern.permute.xlu0 0
  %1260 = vperm.xlu0 %1259, %v1026
  %v1261 = vpop.permute.xlu0 %1260
  %1264 = vset.pattern.permute.xlu0 0
  %1265 = vperm.xlu0 %1264, %v1027
  %v1266 = vpop.permute.xlu0 %1265
  %1269 = vset.pattern.permute.xlu0 0
  %1270 = vperm.xlu0 %1269, %v1028
  %v1271 = vpop.permute.xlu0 %1270
  %1274 = vset.pattern.permute.xlu0 0
  %1275 = vperm.xlu0 %1274, %v1029
  %v1276 = vpop.permute.xlu0 %1275
  %1279 = vset.pattern.permute.xlu0 0
  %1280 = vperm.xlu0 %1279, %v1030
  %v1281 = vpop.permute.xlu0 %1280
  %1284 = vset.pattern.permute.xlu0 0
  %1285 = vperm.xlu0 %1284, %v1031
  %v1286 = vpop.permute.xlu0 %1285
  %1289 = vset.pattern.permute.xlu0 0
  %1290 = vperm.xlu0 %1289, %v1032
  %v1291 = vpop.permute.xlu0 %1290
  %1294 = vset.pattern.permute.xlu0 0
  %1295 = vperm.xlu0 %1294, %v1033
  %v1296 = vpop.permute.xlu0 %1295
  %1299 = vset.pattern.permute.xlu0 0
  %1300 = vperm.xlu0 %1299, %v1034
  %v1301 = vpop.permute.xlu0 %1300
  %1304 = vset.pattern.permute.xlu0 0
  %1305 = vperm.xlu0 %1304, %v1035
  %v1306 = vpop.permute.xlu0 %1305
  %1309 = vset.pattern.permute.xlu0 0
  %1310 = vperm.xlu0 %1309, %v1036
  %v1311 = vpop.permute.xlu0 %1310
  %1314 = vset.pattern.permute.xlu0 0
  %1315 = vperm.xlu0 %1314, %v1037
  %v1316 = vpop.permute.xlu0 %1315
  %1319 = vset.pattern.permute.xlu0 0
  %1320 = vperm.xlu0 %1319, %v1038
  %v1321 = vpop.permute.xlu0 %1320
  %1324 = vset.pattern.permute.xlu0 0
  %1325 = vperm.xlu0 %1324, %v1039
  %v1326 = vpop.permute.xlu0 %1325
  %1329 = vset.pattern.permute.xlu0 0
  %1330 = vperm.xlu0 %1329, %v1040
  %v1331 = vpop.permute.xlu0 %1330
  %1334 = vset.pattern.permute.xlu0 0
  %1335 = vperm.xlu0 %1334, %v1041
  %v1336 = vpop.permute.xlu0 %1335
  %1339 = vset.pattern.permute.xlu0 0
  %1340 = vperm.xlu0 %1339, %v1042
  %v1341 = vpop.permute.xlu0 %1340
  %1344 = vset.pattern.permute.xlu0 0
  %1345 = vperm.xlu0 %1344, %v1043
  %v1346 = vpop.permute.xlu0 %1345
  %1349 = vset.pattern.permute.xlu0 0
  %1350 = vperm.xlu0 %1349, %v1044
  %v1351 = vpop.permute.xlu0 %1350
  %1354 = vset.pattern.permute.xlu0 0
  %1355 = vperm.xlu0 %1354, %v1045
  %v1356 = vpop.permute.xlu0 %1355
  %1359 = vset.pattern.permute.xlu0 0
  %1360 = vperm.xlu0 %1359, %v1046
  %v1361 = vpop.permute.xlu0 %1360
  %1364 = vset.pattern.permute.xlu0 0
  %1365 = vperm.xlu0 %1364, %v1047
  %v1366 = vpop.permute.xlu0 %1365
  %v1368 = vmul.f32 %v983, %v1051
  %v1369 = vmul.f32 %v794, %v1056
  %v1370 = vmul.f32 %v796, %v1061
  %v1371 = vmul.f32 %v798, %v1066
  %v1372 = vmul.f32 %v800, %v1071
  %v1373 = vmul.f32 %v802, %v1076
  %v1374 = vmul.f32 %v804, %v1081
  %v1375 = vmul.f32 %v806, %v1086
  %v1376 = vmul.f32 %v808, %v1091
  %v1377 = vmul.f32 %v810, %v1096
  %v1378 = vmul.f32 %v812, %v1101
  %v1379 = vmul.f32 %v814, %v1106
  %v1380 = vmul.f32 %v816, %v1111
  %v1381 = vmul.f32 %v818, %v1116
  %v1382 = vmul.f32 %v820, %v1121
  %v1383 = vmul.f32 %v822, %v1126
  %v1384 = vmul.f32 %v824, %v1131
  %v1385 = vmul.f32 %v826, %v1136
  %v1386 = vmul.f32 %v828, %v1141
  %v1387 = vmul.f32 %v830, %v1146
  %v1388 = vmul.f32 %v832, %v1151
  %v1389 = vmul.f32 %v834, %v1156
  %v1390 = vmul.f32 %v836, %v1161
  %v1391 = vmul.f32 %v838, %v1166
  %v1392 = vmul.f32 %v840, %v1171
  %v1393 = vmul.f32 %v842, %v1176
  %v1394 = vmul.f32 %v844, %v1181
  %v1395 = vmul.f32 %v846, %v1186
  %v1396 = vmul.f32 %v848, %v1191
  %v1397 = vmul.f32 %v850, %v1196
  %v1398 = vmul.f32 %v852, %v1201
  %v1399 = vmul.f32 %v854, %v1206
  %v1400 = vmul.f32 %v856, %v1211
  %v1401 = vmul.f32 %v858, %v1216
  %v1402 = vmul.f32 %v860, %v1221
  %v1403 = vmul.f32 %v862, %v1226
  %v1404 = vmul.f32 %v864, %v1231
  %v1405 = vmul.f32 %v866, %v1236
  %v1406 = vmul.f32 %v868, %v1241
  %v1407 = vmul.f32 %v870, %v1246
  %v1408 = vmul.f32 %v872, %v1251
  %v1409 = vmul.f32 %v874, %v1256
  %v1410 = vmul.f32 %v876, %v1261
  %v1411 = vmul.f32 %v878, %v1266
  %v1412 = vmul.f32 %v880, %v1271
  %v1413 = vmul.f32 %v882, %v1276
  %v1414 = vmul.f32 %v884, %v1281
  %v1415 = vmul.f32 %v886, %v1286
  %v1416 = vmul.f32 %v888, %v1291
  %v1417 = vmul.f32 %v890, %v1296
  %v1418 = vmul.f32 %v892, %v1301
  %v1419 = vmul.f32 %v894, %v1306
  %v1420 = vmul.f32 %v896, %v1311
  %v1421 = vmul.f32 %v898, %v1316
  %v1422 = vmul.f32 %v900, %v1321
  %v1423 = vmul.f32 %v902, %v1326
  %v1424 = vmul.f32 %v904, %v1331
  %v1425 = vmul.f32 %v906, %v1336
  %v1426 = vmul.f32 %v908, %v1341
  %v1427 = vmul.f32 %v910, %v1346
  %v1428 = vmul.f32 %v912, %v1351
  %v1429 = vmul.f32 %v914, %v1356
  %v1430 = vmul.f32 %v916, %v1361
  %v1431 = vmul.f32 %v918, %v1366
  %vm1432 = vcmask 1046528
  %v1433 = vrot.slane %v663, 1
  %v1434 = vrot.slane %v664, 1
  %v1435 = vsel %vm1432, %v1433, %v1434
  %v1436 = vrot.slane %v665, 1
  %v1437 = vsel %vm1432, %v1434, %v1436
  %v1438 = vrot.slane %v666, 1
  %v1439 = vsel %vm1432, %v1436, %v1438
  %v1440 = vrot.slane %v667, 1
  %v1441 = vsel %vm1432, %v1438, %v1440
  %v1442 = vrot.slane %v668, 1
  %v1443 = vsel %vm1432, %v1440, %v1442
  %v1444 = vrot.slane %v669, 1
  %v1445 = vsel %vm1432, %v1442, %v1444
  %v1446 = vrot.slane %v670, 1
  %v1447 = vsel %vm1432, %v1444, %v1446
  %v1448 = vrot.slane %v671, 1
  %v1449 = vsel %vm1432, %v1446, %v1448
  %v1450 = vrot.slane %v672, 1
  %v1451 = vsel %vm1432, %v1448, %v1450
  %v1452 = vrot.slane %v673, 1
  %v1453 = vsel %vm1432, %v1450, %v1452
  %v1454 = vrot.slane %v674, 1
  %v1455 = vsel %vm1432, %v1452, %v1454
  %v1456 = vrot.slane %v675, 1
  %v1457 = vsel %vm1432, %v1454, %v1456
  %v1458 = vrot.slane %v676, 1
  %v1459 = vsel %vm1432, %v1456, %v1458
  %v1460 = vrot.slane %v677, 1
  %v1461 = vsel %vm1432, %v1458, %v1460
  %v1462 = vrot.slane %v678, 1
  %v1463 = vsel %vm1432, %v1460, %v1462
  %v1464 = vrot.slane %v679, 1
  %v1465 = vsel %vm1432, %v1462, %v1464
  %v1466 = vrot.slane %v680, 1
  %v1467 = vsel %vm1432, %v1464, %v1466
  %v1468 = vrot.slane %v681, 1
  %v1469 = vsel %vm1432, %v1466, %v1468
  %v1470 = vrot.slane %v682, 1
  %v1471 = vsel %vm1432, %v1468, %v1470
  %v1472 = vrot.slane %v683, 1
  %v1473 = vsel %vm1432, %v1470, %v1472
  %v1474 = vrot.slane %v684, 1
  %v1475 = vsel %vm1432, %v1472, %v1474
  %v1476 = vrot.slane %v685, 1
  %v1477 = vsel %vm1432, %v1474, %v1476
  %v1478 = vrot.slane %v686, 1
  %v1479 = vsel %vm1432, %v1476, %v1478
  %v1480 = vrot.slane %v687, 1
  %v1481 = vsel %vm1432, %v1478, %v1480
  %v1482 = vrot.slane %v688, 1
  %v1483 = vsel %vm1432, %v1480, %v1482
  %v1484 = vrot.slane %v689, 1
  %v1485 = vsel %vm1432, %v1482, %v1484
  %v1486 = vrot.slane %v690, 1
  %v1487 = vsel %vm1432, %v1484, %v1486
  %v1488 = vrot.slane %v691, 1
  %v1489 = vsel %vm1432, %v1486, %v1488
  %v1490 = vrot.slane %v692, 1
  %v1491 = vsel %vm1432, %v1488, %v1490
  %v1492 = vrot.slane %v693, 1
  %v1493 = vsel %vm1432, %v1490, %v1492
  %v1494 = vrot.slane %v694, 1
  %v1495 = vsel %vm1432, %v1492, %v1494
  %v1496 = vrot.slane %v695, 1
  %v1497 = vsel %vm1432, %v1494, %v1496
  %v1498 = vrot.slane %v696, 1
  %v1499 = vsel %vm1432, %v1496, %v1498
  %v1500 = vrot.slane %v697, 1
  %v1501 = vsel %vm1432, %v1498, %v1500
  %v1502 = vrot.slane %v698, 1
  %v1503 = vsel %vm1432, %v1500, %v1502
  %v1504 = vrot.slane %v699, 1
  %v1505 = vsel %vm1432, %v1502, %v1504
  %v1506 = vrot.slane %v700, 1
  %v1507 = vsel %vm1432, %v1504, %v1506
  %v1508 = vrot.slane %v701, 1
  %v1509 = vsel %vm1432, %v1506, %v1508
  %v1510 = vrot.slane %v702, 1
  %v1511 = vsel %vm1432, %v1508, %v1510
  %v1512 = vrot.slane %v703, 1
  %v1513 = vsel %vm1432, %v1510, %v1512
  %v1514 = vrot.slane %v704, 1
  %v1515 = vsel %vm1432, %v1512, %v1514
  %v1516 = vrot.slane %v705, 1
  %v1517 = vsel %vm1432, %v1514, %v1516
  %v1518 = vrot.slane %v706, 1
  %v1519 = vsel %vm1432, %v1516, %v1518
  %v1520 = vrot.slane %v707, 1
  %v1521 = vsel %vm1432, %v1518, %v1520
  %v1522 = vrot.slane %v708, 1
  %v1523 = vsel %vm1432, %v1520, %v1522
  %v1524 = vrot.slane %v709, 1
  %v1525 = vsel %vm1432, %v1522, %v1524
  %v1526 = vrot.slane %v710, 1
  %v1527 = vsel %vm1432, %v1524, %v1526
  %v1528 = vrot.slane %v711, 1
  %v1529 = vsel %vm1432, %v1526, %v1528
  %v1530 = vrot.slane %v712, 1
  %v1531 = vsel %vm1432, %v1528, %v1530
  %v1532 = vrot.slane %v713, 1
  %v1533 = vsel %vm1432, %v1530, %v1532
  %v1534 = vrot.slane %v714, 1
  %v1535 = vsel %vm1432, %v1532, %v1534
  %v1536 = vrot.slane %v715, 1
  %v1537 = vsel %vm1432, %v1534, %v1536
  %v1538 = vrot.slane %v716, 1
  %v1539 = vsel %vm1432, %v1536, %v1538
  %v1540 = vrot.slane %v717, 1
  %v1541 = vsel %vm1432, %v1538, %v1540
  %v1542 = vrot.slane %v718, 1
  %v1543 = vsel %vm1432, %v1540, %v1542
  %v1544 = vrot.slane %v719, 1
  %v1545 = vsel %vm1432, %v1542, %v1544
  %v1546 = vrot.slane %v720, 1
  %v1547 = vsel %vm1432, %v1544, %v1546
  %v1548 = vrot.slane %v721, 1
  %v1549 = vsel %vm1432, %v1546, %v1548
  %v1550 = vrot.slane %v722, 1
  %v1551 = vsel %vm1432, %v1548, %v1550
  %v1552 = vrot.slane %v723, 1
  %v1553 = vsel %vm1432, %v1550, %v1552
  %v1554 = vrot.slane %v724, 1
  %v1555 = vsel %vm1432, %v1552, %v1554
  %v1556 = vrot.slane %v725, 1
  %v1557 = vsel %vm1432, %v1554, %v1556
  %v1558 = vrot.slane %v726, 1
  %v1559 = vsel %vm1432, %v1556, %v1558
  %v1624 = vsel %vm1432, %v1558, 0.0
  %s1625 = scalar_lea.vmem %s1, 512
  %v1626 = vld [vmem:[%s1625] sm:$0xff]
  %v1627 = vld [vmem:[%s1625 + $0x8] sm:$0xff]
  %v1628 = vld [vmem:[%s1625 + $0x10] sm:$0xff]
  %v1629 = vld [vmem:[%s1625 + $0x18] sm:$0xff]
  %v1630 = vld [vmem:[%s1625 + $0x20] sm:$0xff]
  %v1631 = vld [vmem:[%s1625 + $0x28] sm:$0xff]
  %v1632 = vld [vmem:[%s1625 + $0x30] sm:$0xff]
  %v1633 = vld [vmem:[%s1625 + $0x38] sm:$0xff]
  %v1634 = vld [vmem:[%s1625 + $0x40] sm:$0xff]
  %v1635 = vld [vmem:[%s1625 + $0x48] sm:$0xff]
  %v1636 = vld [vmem:[%s1625 + $0x50] sm:$0xff]
  %v1637 = vld [vmem:[%s1625 + $0x58] sm:$0xff]
  %v1638 = vld [vmem:[%s1625 + $0x60] sm:$0xff]
  %v1639 = vld [vmem:[%s1625 + $0x68] sm:$0xff]
  %v1640 = vld [vmem:[%s1625 + $0x70] sm:$0xff]
  %v1641 = vld [vmem:[%s1625 + $0x78] sm:$0xff]
  %v1642 = vld [vmem:[%s1625 + $0x80] sm:$0xff]
  %v1643 = vld [vmem:[%s1625 + $0x88] sm:$0xff]
  %v1644 = vld [vmem:[%s1625 + $0x90] sm:$0xff]
  %v1645 = vld [vmem:[%s1625 + $0x98] sm:$0xff]
  %v1646 = vld [vmem:[%s1625 + $0xa0] sm:$0xff]
  %v1647 = vld [vmem:[%s1625 + $0xa8] sm:$0xff]
  %v1648 = vld [vmem:[%s1625 + $0xb0] sm:$0xff]
  %v1649 = vld [vmem:[%s1625 + $0xb8] sm:$0xff]
  %v1650 = vld [vmem:[%s1625 + $0xc0] sm:$0xff]
  %v1651 = vld [vmem:[%s1625 + $0xc8] sm:$0xff]
  %v1652 = vld [vmem:[%s1625 + $0xd0] sm:$0xff]
  %v1653 = vld [vmem:[%s1625 + $0xd8] sm:$0xff]
  %v1654 = vld [vmem:[%s1625 + $0xe0] sm:$0xff]
  %v1655 = vld [vmem:[%s1625 + $0xe8] sm:$0xff]
  %v1656 = vld [vmem:[%s1625 + $0xf0] sm:$0xff]
  %v1657 = vld [vmem:[%s1625 + $0xf8] sm:$0xff]
  %v1658 = vld [vmem:[%s1625 + $0x100] sm:$0xff]
  %v1659 = vld [vmem:[%s1625 + $0x108] sm:$0xff]
  %v1660 = vld [vmem:[%s1625 + $0x110] sm:$0xff]
  %v1661 = vld [vmem:[%s1625 + $0x118] sm:$0xff]
  %v1662 = vld [vmem:[%s1625 + $0x120] sm:$0xff]
  %v1663 = vld [vmem:[%s1625 + $0x128] sm:$0xff]
  %v1664 = vld [vmem:[%s1625 + $0x130] sm:$0xff]
  %v1665 = vld [vmem:[%s1625 + $0x138] sm:$0xff]
  %v1666 = vld [vmem:[%s1625 + $0x140] sm:$0xff]
  %v1667 = vld [vmem:[%s1625 + $0x148] sm:$0xff]
  %v1668 = vld [vmem:[%s1625 + $0x150] sm:$0xff]
  %v1669 = vld [vmem:[%s1625 + $0x158] sm:$0xff]
  %v1670 = vld [vmem:[%s1625 + $0x160] sm:$0xff]
  %v1671 = vld [vmem:[%s1625 + $0x168] sm:$0xff]
  %v1672 = vld [vmem:[%s1625 + $0x170] sm:$0xff]
  %v1673 = vld [vmem:[%s1625 + $0x178] sm:$0xff]
  %v1674 = vld [vmem:[%s1625 + $0x180] sm:$0xff]
  %v1675 = vld [vmem:[%s1625 + $0x188] sm:$0xff]
  %v1676 = vld [vmem:[%s1625 + $0x190] sm:$0xff]
  %v1677 = vld [vmem:[%s1625 + $0x198] sm:$0xff]
  %v1678 = vld [vmem:[%s1625 + $0x1a0] sm:$0xff]
  %v1679 = vld [vmem:[%s1625 + $0x1a8] sm:$0xff]
  %v1680 = vld [vmem:[%s1625 + $0x1b0] sm:$0xff]
  %v1681 = vld [vmem:[%s1625 + $0x1b8] sm:$0xff]
  %v1682 = vld [vmem:[%s1625 + $0x1c0] sm:$0xff]
  %v1683 = vld [vmem:[%s1625 + $0x1c8] sm:$0xff]
  %v1684 = vld [vmem:[%s1625 + $0x1d0] sm:$0xff]
  %v1685 = vld [vmem:[%s1625 + $0x1d8] sm:$0xff]
  %v1686 = vld [vmem:[%s1625 + $0x1e0] sm:$0xff]
  %v1687 = vld [vmem:[%s1625 + $0x1e8] sm:$0xff]
  %v1688 = vld [vmem:[%s1625 + $0x1f0] sm:$0xff]
  %v1689 = vld [vmem:[%s1625 + $0x1f8] sm:$0xff]
  %1691 = vset.pattern.permute.xlu0 0
  %1692 = vperm.xlu0 %1691, %v1626
  %v1693 = vpop.permute.xlu0 %1692
  %1696 = vset.pattern.permute.xlu0 0
  %1697 = vperm.xlu0 %1696, %v1627
  %v1698 = vpop.permute.xlu0 %1697
  %1701 = vset.pattern.permute.xlu0 0
  %1702 = vperm.xlu0 %1701, %v1628
  %v1703 = vpop.permute.xlu0 %1702
  %1706 = vset.pattern.permute.xlu0 0
  %1707 = vperm.xlu0 %1706, %v1629
  %v1708 = vpop.permute.xlu0 %1707
  %1711 = vset.pattern.permute.xlu0 0
  %1712 = vperm.xlu0 %1711, %v1630
  %v1713 = vpop.permute.xlu0 %1712
  %1716 = vset.pattern.permute.xlu0 0
  %1717 = vperm.xlu0 %1716, %v1631
  %v1718 = vpop.permute.xlu0 %1717
  %1721 = vset.pattern.permute.xlu0 0
  %1722 = vperm.xlu0 %1721, %v1632
  %v1723 = vpop.permute.xlu0 %1722
  %1726 = vset.pattern.permute.xlu0 0
  %1727 = vperm.xlu0 %1726, %v1633
  %v1728 = vpop.permute.xlu0 %1727
  %1731 = vset.pattern.permute.xlu0 0
  %1732 = vperm.xlu0 %1731, %v1634
  %v1733 = vpop.permute.xlu0 %1732
  %1736 = vset.pattern.permute.xlu0 0
  %1737 = vperm.xlu0 %1736, %v1635
  %v1738 = vpop.permute.xlu0 %1737
  %1741 = vset.pattern.permute.xlu0 0
  %1742 = vperm.xlu0 %1741, %v1636
  %v1743 = vpop.permute.xlu0 %1742
  %1746 = vset.pattern.permute.xlu0 0
  %1747 = vperm.xlu0 %1746, %v1637
  %v1748 = vpop.permute.xlu0 %1747
  %1751 = vset.pattern.permute.xlu0 0
  %1752 = vperm.xlu0 %1751, %v1638
  %v1753 = vpop.permute.xlu0 %1752
  %1756 = vset.pattern.permute.xlu0 0
  %1757 = vperm.xlu0 %1756, %v1639
  %v1758 = vpop.permute.xlu0 %1757
  %1761 = vset.pattern.permute.xlu0 0
  %1762 = vperm.xlu0 %1761, %v1640
  %v1763 = vpop.permute.xlu0 %1762
  %1766 = vset.pattern.permute.xlu0 0
  %1767 = vperm.xlu0 %1766, %v1641
  %v1768 = vpop.permute.xlu0 %1767
  %1771 = vset.pattern.permute.xlu0 0
  %1772 = vperm.xlu0 %1771, %v1642
  %v1773 = vpop.permute.xlu0 %1772
  %1776 = vset.pattern.permute.xlu0 0
  %1777 = vperm.xlu0 %1776, %v1643
  %v1778 = vpop.permute.xlu0 %1777
  %1781 = vset.pattern.permute.xlu0 0
  %1782 = vperm.xlu0 %1781, %v1644
  %v1783 = vpop.permute.xlu0 %1782
  %1786 = vset.pattern.permute.xlu0 0
  %1787 = vperm.xlu0 %1786, %v1645
  %v1788 = vpop.permute.xlu0 %1787
  %1791 = vset.pattern.permute.xlu0 0
  %1792 = vperm.xlu0 %1791, %v1646
  %v1793 = vpop.permute.xlu0 %1792
  %1796 = vset.pattern.permute.xlu0 0
  %1797 = vperm.xlu0 %1796, %v1647
  %v1798 = vpop.permute.xlu0 %1797
  %1801 = vset.pattern.permute.xlu0 0
  %1802 = vperm.xlu0 %1801, %v1648
  %v1803 = vpop.permute.xlu0 %1802
  %1806 = vset.pattern.permute.xlu0 0
  %1807 = vperm.xlu0 %1806, %v1649
  %v1808 = vpop.permute.xlu0 %1807
  %1811 = vset.pattern.permute.xlu0 0
  %1812 = vperm.xlu0 %1811, %v1650
  %v1813 = vpop.permute.xlu0 %1812
  %1816 = vset.pattern.permute.xlu0 0
  %1817 = vperm.xlu0 %1816, %v1651
  %v1818 = vpop.permute.xlu0 %1817
  %1821 = vset.pattern.permute.xlu0 0
  %1822 = vperm.xlu0 %1821, %v1652
  %v1823 = vpop.permute.xlu0 %1822
  %1826 = vset.pattern.permute.xlu0 0
  %1827 = vperm.xlu0 %1826, %v1653
  %v1828 = vpop.permute.xlu0 %1827
  %1831 = vset.pattern.permute.xlu0 0
  %1832 = vperm.xlu0 %1831, %v1654
  %v1833 = vpop.permute.xlu0 %1832
  %1836 = vset.pattern.permute.xlu0 0
  %1837 = vperm.xlu0 %1836, %v1655
  %v1838 = vpop.permute.xlu0 %1837
  %1841 = vset.pattern.permute.xlu0 0
  %1842 = vperm.xlu0 %1841, %v1656
  %v1843 = vpop.permute.xlu0 %1842
  %1846 = vset.pattern.permute.xlu0 0
  %1847 = vperm.xlu0 %1846, %v1657
  %v1848 = vpop.permute.xlu0 %1847
  %1851 = vset.pattern.permute.xlu0 0
  %1852 = vperm.xlu0 %1851, %v1658
  %v1853 = vpop.permute.xlu0 %1852
  %1856 = vset.pattern.permute.xlu0 0
  %1857 = vperm.xlu0 %1856, %v1659
  %v1858 = vpop.permute.xlu0 %1857
  %1861 = vset.pattern.permute.xlu0 0
  %1862 = vperm.xlu0 %1861, %v1660
  %v1863 = vpop.permute.xlu0 %1862
  %1866 = vset.pattern.permute.xlu0 0
  %1867 = vperm.xlu0 %1866, %v1661
  %v1868 = vpop.permute.xlu0 %1867
  %1871 = vset.pattern.permute.xlu0 0
  %1872 = vperm.xlu0 %1871, %v1662
  %v1873 = vpop.permute.xlu0 %1872
  %1876 = vset.pattern.permute.xlu0 0
  %1877 = vperm.xlu0 %1876, %v1663
  %v1878 = vpop.permute.xlu0 %1877
  %1881 = vset.pattern.permute.xlu0 0
  %1882 = vperm.xlu0 %1881, %v1664
  %v1883 = vpop.permute.xlu0 %1882
  %1886 = vset.pattern.permute.xlu0 0
  %1887 = vperm.xlu0 %1886, %v1665
  %v1888 = vpop.permute.xlu0 %1887
  %1891 = vset.pattern.permute.xlu0 0
  %1892 = vperm.xlu0 %1891, %v1666
  %v1893 = vpop.permute.xlu0 %1892
  %1896 = vset.pattern.permute.xlu0 0
  %1897 = vperm.xlu0 %1896, %v1667
  %v1898 = vpop.permute.xlu0 %1897
  %1901 = vset.pattern.permute.xlu0 0
  %1902 = vperm.xlu0 %1901, %v1668
  %v1903 = vpop.permute.xlu0 %1902
  %1906 = vset.pattern.permute.xlu0 0
  %1907 = vperm.xlu0 %1906, %v1669
  %v1908 = vpop.permute.xlu0 %1907
  %1911 = vset.pattern.permute.xlu0 0
  %1912 = vperm.xlu0 %1911, %v1670
  %v1913 = vpop.permute.xlu0 %1912
  %1916 = vset.pattern.permute.xlu0 0
  %1917 = vperm.xlu0 %1916, %v1671
  %v1918 = vpop.permute.xlu0 %1917
  %1921 = vset.pattern.permute.xlu0 0
  %1922 = vperm.xlu0 %1921, %v1672
  %v1923 = vpop.permute.xlu0 %1922
  %1926 = vset.pattern.permute.xlu0 0
  %1927 = vperm.xlu0 %1926, %v1673
  %v1928 = vpop.permute.xlu0 %1927
  %1931 = vset.pattern.permute.xlu0 0
  %1932 = vperm.xlu0 %1931, %v1674
  %v1933 = vpop.permute.xlu0 %1932
  %1936 = vset.pattern.permute.xlu0 0
  %1937 = vperm.xlu0 %1936, %v1675
  %v1938 = vpop.permute.xlu0 %1937
  %1941 = vset.pattern.permute.xlu0 0
  %1942 = vperm.xlu0 %1941, %v1676
  %v1943 = vpop.permute.xlu0 %1942
  %1946 = vset.pattern.permute.xlu0 0
  %1947 = vperm.xlu0 %1946, %v1677
  %v1948 = vpop.permute.xlu0 %1947
  %1951 = vset.pattern.permute.xlu0 0
  %1952 = vperm.xlu0 %1951, %v1678
  %v1953 = vpop.permute.xlu0 %1952
  %1956 = vset.pattern.permute.xlu0 0
  %1957 = vperm.xlu0 %1956, %v1679
  %v1958 = vpop.permute.xlu0 %1957
  %1961 = vset.pattern.permute.xlu0 0
  %1962 = vperm.xlu0 %1961, %v1680
  %v1963 = vpop.permute.xlu0 %1962
  %1966 = vset.pattern.permute.xlu0 0
  %1967 = vperm.xlu0 %1966, %v1681
  %v1968 = vpop.permute.xlu0 %1967
  %1971 = vset.pattern.permute.xlu0 0
  %1972 = vperm.xlu0 %1971, %v1682
  %v1973 = vpop.permute.xlu0 %1972
  %1976 = vset.pattern.permute.xlu0 0
  %1977 = vperm.xlu0 %1976, %v1683
  %v1978 = vpop.permute.xlu0 %1977
  %1981 = vset.pattern.permute.xlu0 0
  %1982 = vperm.xlu0 %1981, %v1684
  %v1983 = vpop.permute.xlu0 %1982
  %1986 = vset.pattern.permute.xlu0 0
  %1987 = vperm.xlu0 %1986, %v1685
  %v1988 = vpop.permute.xlu0 %1987
  %1991 = vset.pattern.permute.xlu0 0
  %1992 = vperm.xlu0 %1991, %v1686
  %v1993 = vpop.permute.xlu0 %1992
  %1996 = vset.pattern.permute.xlu0 0
  %1997 = vperm.xlu0 %1996, %v1687
  %v1998 = vpop.permute.xlu0 %1997
  %2001 = vset.pattern.permute.xlu0 0
  %2002 = vperm.xlu0 %2001, %v1688
  %v2003 = vpop.permute.xlu0 %2002
  %2006 = vset.pattern.permute.xlu0 0
  %2007 = vperm.xlu0 %2006, %v1689
  %v2008 = vpop.permute.xlu0 %2007
  %v2010 = vmul.f32 %v1435, %v1693
  %v2011 = vmul.f32 %v1437, %v1698
  %v2012 = vmul.f32 %v1439, %v1703
  %v2013 = vmul.f32 %v1441, %v1708
  %v2014 = vmul.f32 %v1443, %v1713
  %v2015 = vmul.f32 %v1445, %v1718
  %v2016 = vmul.f32 %v1447, %v1723
  %v2017 = vmul.f32 %v1449, %v1728
  %v2018 = vmul.f32 %v1451, %v1733
  %v2019 = vmul.f32 %v1453, %v1738
  %v2020 = vmul.f32 %v1455, %v1743
  %v2021 = vmul.f32 %v1457, %v1748
  %v2022 = vmul.f32 %v1459, %v1753
  %v2023 = vmul.f32 %v1461, %v1758
  %v2024 = vmul.f32 %v1463, %v1763
  %v2025 = vmul.f32 %v1465, %v1768
  %v2026 = vmul.f32 %v1467, %v1773
  %v2027 = vmul.f32 %v1469, %v1778
  %v2028 = vmul.f32 %v1471, %v1783
  %v2029 = vmul.f32 %v1473, %v1788
  %v2030 = vmul.f32 %v1475, %v1793
  %v2031 = vmul.f32 %v1477, %v1798
  %v2032 = vmul.f32 %v1479, %v1803
  %v2033 = vmul.f32 %v1481, %v1808
  %v2034 = vmul.f32 %v1483, %v1813
  %v2035 = vmul.f32 %v1485, %v1818
  %v2036 = vmul.f32 %v1487, %v1823
  %v2037 = vmul.f32 %v1489, %v1828
  %v2038 = vmul.f32 %v1491, %v1833
  %v2039 = vmul.f32 %v1493, %v1838
  %v2040 = vmul.f32 %v1495, %v1843
  %v2041 = vmul.f32 %v1497, %v1848
  %v2042 = vmul.f32 %v1499, %v1853
  %v2043 = vmul.f32 %v1501, %v1858
  %v2044 = vmul.f32 %v1503, %v1863
  %v2045 = vmul.f32 %v1505, %v1868
  %v2046 = vmul.f32 %v1507, %v1873
  %v2047 = vmul.f32 %v1509, %v1878
  %v2048 = vmul.f32 %v1511, %v1883
  %v2049 = vmul.f32 %v1513, %v1888
  %v2050 = vmul.f32 %v1515, %v1893
  %v2051 = vmul.f32 %v1517, %v1898
  %v2052 = vmul.f32 %v1519, %v1903
  %v2053 = vmul.f32 %v1521, %v1908
  %v2054 = vmul.f32 %v1523, %v1913
  %v2055 = vmul.f32 %v1525, %v1918
  %v2056 = vmul.f32 %v1527, %v1923
  %v2057 = vmul.f32 %v1529, %v1928
  %v2058 = vmul.f32 %v1531, %v1933
  %v2059 = vmul.f32 %v1533, %v1938
  %v2060 = vmul.f32 %v1535, %v1943
  %v2061 = vmul.f32 %v1537, %v1948
  %v2062 = vmul.f32 %v1539, %v1953
  %v2063 = vmul.f32 %v1541, %v1958
  %v2064 = vmul.f32 %v1543, %v1963
  %v2065 = vmul.f32 %v1545, %v1968
  %v2066 = vmul.f32 %v1547, %v1973
  %v2067 = vmul.f32 %v1549, %v1978
  %v2068 = vmul.f32 %v1551, %v1983
  %v2069 = vmul.f32 %v1553, %v1988
  %v2070 = vmul.f32 %v1555, %v1993
  %v2071 = vmul.f32 %v1557, %v1998
  %v2072 = vmul.f32 %v1559, %v2003
  %v2073 = vmul.f32 %v1624, %v2008
  %2074 = vrot.lane.b32.xlu0 %v663, 64
  %v2075 = vpop.permute.xlu0 %2074
  %2076 = vrot.lane.b32.xlu0 %v664, 64
  %v2077 = vpop.permute.xlu0 %2076
  %2078 = vrot.lane.b32.xlu0 %v665, 64
  %v2079 = vpop.permute.xlu0 %2078
  %2080 = vrot.lane.b32.xlu0 %v666, 64
  %v2081 = vpop.permute.xlu0 %2080
  %2082 = vrot.lane.b32.xlu0 %v667, 64
  %v2083 = vpop.permute.xlu0 %2082
  %2084 = vrot.lane.b32.xlu0 %v668, 64
  %v2085 = vpop.permute.xlu0 %2084
  %2086 = vrot.lane.b32.xlu0 %v669, 64
  %v2087 = vpop.permute.xlu0 %2086
  %2088 = vrot.lane.b32.xlu0 %v670, 64
  %v2089 = vpop.permute.xlu0 %2088
  %2090 = vrot.lane.b32.xlu0 %v671, 64
  %v2091 = vpop.permute.xlu0 %2090
  %2092 = vrot.lane.b32.xlu0 %v672, 64
  %v2093 = vpop.permute.xlu0 %2092
  %2094 = vrot.lane.b32.xlu0 %v673, 64
  %v2095 = vpop.permute.xlu0 %2094
  %2096 = vrot.lane.b32.xlu0 %v674, 64
  %v2097 = vpop.permute.xlu0 %2096
  %2098 = vrot.lane.b32.xlu0 %v675, 64
  %v2099 = vpop.permute.xlu0 %2098
  %2100 = vrot.lane.b32.xlu0 %v676, 64
  %v2101 = vpop.permute.xlu0 %2100
  %2102 = vrot.lane.b32.xlu0 %v677, 64
  %v2103 = vpop.permute.xlu0 %2102
  %2104 = vrot.lane.b32.xlu0 %v678, 64
  %v2105 = vpop.permute.xlu0 %2104
  %2106 = vrot.lane.b32.xlu0 %v679, 64
  %v2107 = vpop.permute.xlu0 %2106
  %2108 = vrot.lane.b32.xlu0 %v680, 64
  %v2109 = vpop.permute.xlu0 %2108
  %2110 = vrot.lane.b32.xlu0 %v681, 64
  %v2111 = vpop.permute.xlu0 %2110
  %2112 = vrot.lane.b32.xlu0 %v682, 64
  %v2113 = vpop.permute.xlu0 %2112
  %2114 = vrot.lane.b32.xlu0 %v683, 64
  %v2115 = vpop.permute.xlu0 %2114
  %2116 = vrot.lane.b32.xlu0 %v684, 64
  %v2117 = vpop.permute.xlu0 %2116
  %2118 = vrot.lane.b32.xlu0 %v685, 64
  %v2119 = vpop.permute.xlu0 %2118
  %2120 = vrot.lane.b32.xlu0 %v686, 64
  %v2121 = vpop.permute.xlu0 %2120
  %2122 = vrot.lane.b32.xlu0 %v687, 64
  %v2123 = vpop.permute.xlu0 %2122
  %2124 = vrot.lane.b32.xlu0 %v688, 64
  %v2125 = vpop.permute.xlu0 %2124
  %2126 = vrot.lane.b32.xlu0 %v689, 64
  %v2127 = vpop.permute.xlu0 %2126
  %2128 = vrot.lane.b32.xlu0 %v690, 64
  %v2129 = vpop.permute.xlu0 %2128
  %2130 = vrot.lane.b32.xlu0 %v691, 64
  %v2131 = vpop.permute.xlu0 %2130
  %2132 = vrot.lane.b32.xlu0 %v692, 64
  %v2133 = vpop.permute.xlu0 %2132
  %2134 = vrot.lane.b32.xlu0 %v693, 64
  %v2135 = vpop.permute.xlu0 %2134
  %2136 = vrot.lane.b32.xlu0 %v694, 64
  %v2137 = vpop.permute.xlu0 %2136
  %2138 = vrot.lane.b32.xlu0 %v695, 64
  %v2139 = vpop.permute.xlu0 %2138
  %2140 = vrot.lane.b32.xlu0 %v696, 64
  %v2141 = vpop.permute.xlu0 %2140
  %2142 = vrot.lane.b32.xlu0 %v697, 64
  %v2143 = vpop.permute.xlu0 %2142
  %2144 = vrot.lane.b32.xlu0 %v698, 64
  %v2145 = vpop.permute.xlu0 %2144
  %2146 = vrot.lane.b32.xlu0 %v699, 64
  %v2147 = vpop.permute.xlu0 %2146
  %2148 = vrot.lane.b32.xlu0 %v700, 64
  %v2149 = vpop.permute.xlu0 %2148
  %2150 = vrot.lane.b32.xlu0 %v701, 64
  %v2151 = vpop.permute.xlu0 %2150
  %2152 = vrot.lane.b32.xlu0 %v702, 64
  %v2153 = vpop.permute.xlu0 %2152
  %2154 = vrot.lane.b32.xlu0 %v703, 64
  %v2155 = vpop.permute.xlu0 %2154
  %2156 = vrot.lane.b32.xlu0 %v704, 64
  %v2157 = vpop.permute.xlu0 %2156
  %2158 = vrot.lane.b32.xlu0 %v705, 64
  %v2159 = vpop.permute.xlu0 %2158
  %2160 = vrot.lane.b32.xlu0 %v706, 64
  %v2161 = vpop.permute.xlu0 %2160
  %2162 = vrot.lane.b32.xlu0 %v707, 64
  %v2163 = vpop.permute.xlu0 %2162
  %2164 = vrot.lane.b32.xlu0 %v708, 64
  %v2165 = vpop.permute.xlu0 %2164
  %2166 = vrot.lane.b32.xlu0 %v709, 64
  %v2167 = vpop.permute.xlu0 %2166
  %2168 = vrot.lane.b32.xlu0 %v710, 64
  %v2169 = vpop.permute.xlu0 %2168
  %2170 = vrot.lane.b32.xlu0 %v711, 64
  %v2171 = vpop.permute.xlu0 %2170
  %2172 = vrot.lane.b32.xlu0 %v712, 64
  %v2173 = vpop.permute.xlu0 %2172
  %2174 = vrot.lane.b32.xlu0 %v713, 64
  %v2175 = vpop.permute.xlu0 %2174
  %2176 = vrot.lane.b32.xlu0 %v714, 64
  %v2177 = vpop.permute.xlu0 %2176
  %2178 = vrot.lane.b32.xlu0 %v715, 64
  %v2179 = vpop.permute.xlu0 %2178
  %2180 = vrot.lane.b32.xlu0 %v716, 64
  %v2181 = vpop.permute.xlu0 %2180
  %2182 = vrot.lane.b32.xlu0 %v717, 64
  %v2183 = vpop.permute.xlu0 %2182
  %2184 = vrot.lane.b32.xlu0 %v718, 64
  %v2185 = vpop.permute.xlu0 %2184
  %2186 = vrot.lane.b32.xlu0 %v719, 64
  %v2187 = vpop.permute.xlu0 %2186
  %2188 = vrot.lane.b32.xlu0 %v720, 64
  %v2189 = vpop.permute.xlu0 %2188
  %2190 = vrot.lane.b32.xlu0 %v721, 64
  %v2191 = vpop.permute.xlu0 %2190
  %2192 = vrot.lane.b32.xlu0 %v722, 64
  %v2193 = vpop.permute.xlu0 %2192
  %2194 = vrot.lane.b32.xlu0 %v723, 64
  %v2195 = vpop.permute.xlu0 %2194
  %2196 = vrot.lane.b32.xlu0 %v724, 64
  %v2197 = vpop.permute.xlu0 %2196
  %2198 = vrot.lane.b32.xlu0 %v725, 64
  %v2199 = vpop.permute.xlu0 %2198
  %2200 = vrot.lane.b32.xlu0 %v726, 64
  %v2201 = vpop.permute.xlu0 %2200
  %vm2266 = vcmask 523264
  %v2267 = vsel %vm2266, %v1368, %v2075
  %v2268 = vsel %vm2266, %v1369, %v2077
  %v2269 = vsel %vm2266, %v1370, %v2079
  %v2270 = vsel %vm2266, %v1371, %v2081
  %v2271 = vsel %vm2266, %v1372, %v2083
  %v2272 = vsel %vm2266, %v1373, %v2085
  %v2273 = vsel %vm2266, %v1374, %v2087
  %v2274 = vsel %vm2266, %v1375, %v2089
  %v2275 = vsel %vm2266, %v1376, %v2091
  %v2276 = vsel %vm2266, %v1377, %v2093
  %v2277 = vsel %vm2266, %v1378, %v2095
  %v2278 = vsel %vm2266, %v1379, %v2097
  %v2279 = vsel %vm2266, %v1380, %v2099
  %v2280 = vsel %vm2266, %v1381, %v2101
  %v2281 = vsel %vm2266, %v1382, %v2103
  %v2282 = vsel %vm2266, %v1383, %v2105
  %v2283 = vsel %vm2266, %v1384, %v2107
  %v2284 = vsel %vm2266, %v1385, %v2109
  %v2285 = vsel %vm2266, %v1386, %v2111
  %v2286 = vsel %vm2266, %v1387, %v2113
  %v2287 = vsel %vm2266, %v1388, %v2115
  %v2288 = vsel %vm2266, %v1389, %v2117
  %v2289 = vsel %vm2266, %v1390, %v2119
  %v2290 = vsel %vm2266, %v1391, %v2121
  %v2291 = vsel %vm2266, %v1392, %v2123
  %v2292 = vsel %vm2266, %v1393, %v2125
  %v2293 = vsel %vm2266, %v1394, %v2127
  %v2294 = vsel %vm2266, %v1395, %v2129
  %v2295 = vsel %vm2266, %v1396, %v2131
  %v2296 = vsel %vm2266, %v1397, %v2133
  %v2297 = vsel %vm2266, %v1398, %v2135
  %v2298 = vsel %vm2266, %v1399, %v2137
  %v2299 = vsel %vm2266, %v1400, %v2139
  %v2300 = vsel %vm2266, %v1401, %v2141
  %v2301 = vsel %vm2266, %v1402, %v2143
  %v2302 = vsel %vm2266, %v1403, %v2145
  %v2303 = vsel %vm2266, %v1404, %v2147
  %v2304 = vsel %vm2266, %v1405, %v2149
  %v2305 = vsel %vm2266, %v1406, %v2151
  %v2306 = vsel %vm2266, %v1407, %v2153
  %v2307 = vsel %vm2266, %v1408, %v2155
  %v2308 = vsel %vm2266, %v1409, %v2157
  %v2309 = vsel %vm2266, %v1410, %v2159
  %v2310 = vsel %vm2266, %v1411, %v2161
  %v2311 = vsel %vm2266, %v1412, %v2163
  %v2312 = vsel %vm2266, %v1413, %v2165
  %v2313 = vsel %vm2266, %v1414, %v2167
  %v2314 = vsel %vm2266, %v1415, %v2169
  %v2315 = vsel %vm2266, %v1416, %v2171
  %v2316 = vsel %vm2266, %v1417, %v2173
  %v2317 = vsel %vm2266, %v1418, %v2175
  %v2318 = vsel %vm2266, %v1419, %v2177
  %v2319 = vsel %vm2266, %v1420, %v2179
  %v2320 = vsel %vm2266, %v1421, %v2181
  %v2321 = vsel %vm2266, %v1422, %v2183
  %v2322 = vsel %vm2266, %v1423, %v2185
  %v2323 = vsel %vm2266, %v1424, %v2187
  %v2324 = vsel %vm2266, %v1425, %v2189
  %v2325 = vsel %vm2266, %v1426, %v2191
  %v2326 = vsel %vm2266, %v1427, %v2193
  %v2327 = vsel %vm2266, %v1428, %v2195
  %v2328 = vsel %vm2266, %v1429, %v2197
  %v2329 = vsel %vm2266, %v1430, %v2199
  %v2330 = vsel %vm2266, %v1431, %v2201
  %v2331 = vpack.c.bf16 %v2268, %v2267
  %v2332 = vpack.c.bf16 %v2011, %v2010
  %v2333 = vpack.c.bf16 %v2270, %v2269
  %v2334 = vpack.c.bf16 %v2013, %v2012
  %v2335 = vpack.c.bf16 %v2272, %v2271
  %v2336 = vpack.c.bf16 %v2015, %v2014
  %v2337 = vpack.c.bf16 %v2274, %v2273
  %v2338 = vpack.c.bf16 %v2017, %v2016
  %v2339 = vpack.c.bf16 %v2276, %v2275
  %v2340 = vpack.c.bf16 %v2019, %v2018
  %v2341 = vpack.c.bf16 %v2278, %v2277
  %v2342 = vpack.c.bf16 %v2021, %v2020
  %v2343 = vpack.c.bf16 %v2280, %v2279
  %v2344 = vpack.c.bf16 %v2023, %v2022
  %v2345 = vpack.c.bf16 %v2282, %v2281
  %v2346 = vpack.c.bf16 %v2025, %v2024
  %v2347 = vpack.c.bf16 %v2284, %v2283
  %v2348 = vpack.c.bf16 %v2027, %v2026
  %v2349 = vpack.c.bf16 %v2286, %v2285
  %v2350 = vpack.c.bf16 %v2029, %v2028
  %v2351 = vpack.c.bf16 %v2288, %v2287
  %v2352 = vpack.c.bf16 %v2031, %v2030
  %v2353 = vpack.c.bf16 %v2290, %v2289
  %v2354 = vpack.c.bf16 %v2033, %v2032
  %v2355 = vpack.c.bf16 %v2292, %v2291
  %v2356 = vpack.c.bf16 %v2035, %v2034
  %v2357 = vpack.c.bf16 %v2294, %v2293
  %v2358 = vpack.c.bf16 %v2037, %v2036
  %v2359 = vpack.c.bf16 %v2296, %v2295
  %v2360 = vpack.c.bf16 %v2039, %v2038
  %v2361 = vpack.c.bf16 %v2298, %v2297
  %v2362 = vpack.c.bf16 %v2041, %v2040
  %v2363 = vpack.c.bf16 %v2300, %v2299
  %v2364 = vpack.c.bf16 %v2043, %v2042
  %v2365 = vpack.c.bf16 %v2302, %v2301
  %v2366 = vpack.c.bf16 %v2045, %v2044
  %v2367 = vpack.c.bf16 %v2304, %v2303
  %v2368 = vpack.c.bf16 %v2047, %v2046
  %v2369 = vpack.c.bf16 %v2306, %v2305
  %v2370 = vpack.c.bf16 %v2049, %v2048
  %v2371 = vpack.c.bf16 %v2308, %v2307
  %v2372 = vpack.c.bf16 %v2051, %v2050
  %v2373 = vpack.c.bf16 %v2310, %v2309
  %v2374 = vpack.c.bf16 %v2053, %v2052
  %v2375 = vpack.c.bf16 %v2312, %v2311
  %v2376 = vpack.c.bf16 %v2055, %v2054
  %v2377 = vpack.c.bf16 %v2314, %v2313
  %v2378 = vpack.c.bf16 %v2057, %v2056
  %v2379 = vpack.c.bf16 %v2316, %v2315
  %v2380 = vpack.c.bf16 %v2059, %v2058
  %v2381 = vpack.c.bf16 %v2318, %v2317
  %v2382 = vpack.c.bf16 %v2061, %v2060
  %v2383 = vpack.c.bf16 %v2320, %v2319
  %v2384 = vpack.c.bf16 %v2063, %v2062
  %v2385 = vpack.c.bf16 %v2322, %v2321
  %v2386 = vpack.c.bf16 %v2065, %v2064
  %v2387 = vpack.c.bf16 %v2324, %v2323
  %v2388 = vpack.c.bf16 %v2067, %v2066
  %v2389 = vpack.c.bf16 %v2326, %v2325
  %v2390 = vpack.c.bf16 %v2069, %v2068
  %v2391 = vpack.c.bf16 %v2328, %v2327
  %v2392 = vpack.c.bf16 %v2071, %v2070
  %v2393 = vpack.c.bf16 %v2330, %v2329
  %v2394 = vpack.c.bf16 %v2073, %v2072
  %s2395 = scalar_lea.vmem %s1, 1024
  %v2396 = vld [vmem:[%s2395] sm:$0xff]
  %v2397 = vld [vmem:[%s2395 + $0x8] sm:$0xff]
  %v2398 = vld [vmem:[%s2395 + $0x10] sm:$0xff]
  %v2399 = vld [vmem:[%s2395 + $0x18] sm:$0xff]
  %v2400 = vld [vmem:[%s2395 + $0x20] sm:$0xff]
  %v2401 = vld [vmem:[%s2395 + $0x28] sm:$0xff]
  %v2402 = vld [vmem:[%s2395 + $0x30] sm:$0xff]
  %v2403 = vld [vmem:[%s2395 + $0x38] sm:$0xff]
  %v2404 = vld [vmem:[%s2395 + $0x40] sm:$0xff]
  %v2405 = vld [vmem:[%s2395 + $0x48] sm:$0xff]
  %v2406 = vld [vmem:[%s2395 + $0x50] sm:$0xff]
  %v2407 = vld [vmem:[%s2395 + $0x58] sm:$0xff]
  %v2408 = vld [vmem:[%s2395 + $0x60] sm:$0xff]
  %v2409 = vld [vmem:[%s2395 + $0x68] sm:$0xff]
  %v2410 = vld [vmem:[%s2395 + $0x70] sm:$0xff]
  %v2411 = vld [vmem:[%s2395 + $0x78] sm:$0xff]
  %v2412 = vld [vmem:[%s2395 + $0x80] sm:$0xff]
  %v2413 = vld [vmem:[%s2395 + $0x88] sm:$0xff]
  %v2414 = vld [vmem:[%s2395 + $0x90] sm:$0xff]
  %v2415 = vld [vmem:[%s2395 + $0x98] sm:$0xff]
  %v2416 = vld [vmem:[%s2395 + $0xa0] sm:$0xff]
  %v2417 = vld [vmem:[%s2395 + $0xa8] sm:$0xff]
  %v2418 = vld [vmem:[%s2395 + $0xb0] sm:$0xff]
  %v2419 = vld [vmem:[%s2395 + $0xb8] sm:$0xff]
  %v2420 = vld [vmem:[%s2395 + $0xc0] sm:$0xff]
  %v2421 = vld [vmem:[%s2395 + $0xc8] sm:$0xff]
  %v2422 = vld [vmem:[%s2395 + $0xd0] sm:$0xff]
  %v2423 = vld [vmem:[%s2395 + $0xd8] sm:$0xff]
  %v2424 = vld [vmem:[%s2395 + $0xe0] sm:$0xff]
  %v2425 = vld [vmem:[%s2395 + $0xe8] sm:$0xff]
  %v2426 = vld [vmem:[%s2395 + $0xf0] sm:$0xff]
  %v2427 = vld [vmem:[%s2395 + $0xf8] sm:$0xff]
  %v2428 = vld [vmem:[%s2395 + $0x100] sm:$0xff]
  %v2429 = vld [vmem:[%s2395 + $0x108] sm:$0xff]
  %v2430 = vld [vmem:[%s2395 + $0x110] sm:$0xff]
  %v2431 = vld [vmem:[%s2395 + $0x118] sm:$0xff]
  %v2432 = vld [vmem:[%s2395 + $0x120] sm:$0xff]
  %v2433 = vld [vmem:[%s2395 + $0x128] sm:$0xff]
  %v2434 = vld [vmem:[%s2395 + $0x130] sm:$0xff]
  %v2435 = vld [vmem:[%s2395 + $0x138] sm:$0xff]
  %v2436 = vld [vmem:[%s2395 + $0x140] sm:$0xff]
  %v2437 = vld [vmem:[%s2395 + $0x148] sm:$0xff]
  %v2438 = vld [vmem:[%s2395 + $0x150] sm:$0xff]
  %v2439 = vld [vmem:[%s2395 + $0x158] sm:$0xff]
  %v2440 = vld [vmem:[%s2395 + $0x160] sm:$0xff]
  %v2441 = vld [vmem:[%s2395 + $0x168] sm:$0xff]
  %v2442 = vld [vmem:[%s2395 + $0x170] sm:$0xff]
  %v2443 = vld [vmem:[%s2395 + $0x178] sm:$0xff]
  %v2444 = vld [vmem:[%s2395 + $0x180] sm:$0xff]
  %v2445 = vld [vmem:[%s2395 + $0x188] sm:$0xff]
  %v2446 = vld [vmem:[%s2395 + $0x190] sm:$0xff]
  %v2447 = vld [vmem:[%s2395 + $0x198] sm:$0xff]
  %v2448 = vld [vmem:[%s2395 + $0x1a0] sm:$0xff]
  %v2449 = vld [vmem:[%s2395 + $0x1a8] sm:$0xff]
  %v2450 = vld [vmem:[%s2395 + $0x1b0] sm:$0xff]
  %v2451 = vld [vmem:[%s2395 + $0x1b8] sm:$0xff]
  %v2452 = vld [vmem:[%s2395 + $0x1c0] sm:$0xff]
  %v2453 = vld [vmem:[%s2395 + $0x1c8] sm:$0xff]
  %v2454 = vld [vmem:[%s2395 + $0x1d0] sm:$0xff]
  %v2455 = vld [vmem:[%s2395 + $0x1d8] sm:$0xff]
  %v2456 = vld [vmem:[%s2395 + $0x1e0] sm:$0xff]
  %v2457 = vld [vmem:[%s2395 + $0x1e8] sm:$0xff]
  %v2458 = vld [vmem:[%s2395 + $0x1f0] sm:$0xff]
  %v2459 = vld [vmem:[%s2395 + $0x1f8] sm:$0xff]
  %v2460 = vld [vmem:[%s4] sm:$0xf]
  %v2461 = vld [vmem:[%s4 + $0x4] sm:$0xf]
  %v2462 = vld [vmem:[%s4 + $0x8] sm:$0xf]
  %v2463 = vld [vmem:[%s4 + $0xc] sm:$0xf]
  %v2464 = vld [vmem:[%s4 + $0x10] sm:$0xf]
  %v2465 = vld [vmem:[%s4 + $0x14] sm:$0xf]
  %v2466 = vld [vmem:[%s4 + $0x18] sm:$0xf]
  %v2467 = vld [vmem:[%s4 + $0x1c] sm:$0xf]
  %v2468 = vld [vmem:[%s4 + $0x20] sm:$0xf]
  %v2469 = vld [vmem:[%s4 + $0x24] sm:$0xf]
  %v2470 = vld [vmem:[%s4 + $0x28] sm:$0xf]
  %v2471 = vld [vmem:[%s4 + $0x2c] sm:$0xf]
  %v2472 = vld [vmem:[%s4 + $0x30] sm:$0xf]
  %v2473 = vld [vmem:[%s4 + $0x34] sm:$0xf]
  %v2474 = vld [vmem:[%s4 + $0x38] sm:$0xf]
  %v2475 = vld [vmem:[%s4 + $0x3c] sm:$0xf]
  %v2476 = vld [vmem:[%s4 + $0x40] sm:$0xf]
  %v2477 = vld [vmem:[%s4 + $0x44] sm:$0xf]
  %v2478 = vld [vmem:[%s4 + $0x48] sm:$0xf]
  %v2479 = vld [vmem:[%s4 + $0x4c] sm:$0xf]
  %v2480 = vld [vmem:[%s4 + $0x50] sm:$0xf]
  %v2481 = vld [vmem:[%s4 + $0x54] sm:$0xf]
  %v2482 = vld [vmem:[%s4 + $0x58] sm:$0xf]
  %v2483 = vld [vmem:[%s4 + $0x5c] sm:$0xf]
  %v2508 = vunpack.c.l.b16 %v2460
  %v2509 = vunpack.c.l.b16 %v2461
  %v2510 = vunpack.c.l.b16 %v2462
  %v2511 = vunpack.c.l.b16 %v2463
  %v2512 = vunpack.c.l.b16 %v2464
  %v2513 = vunpack.c.l.b16 %v2465
  %v2514 = vunpack.c.l.b16 %v2466
  %v2515 = vunpack.c.l.b16 %v2467
  %v2516 = vunpack.c.l.b16 %v2468
  %v2517 = vunpack.c.l.b16 %v2469
  %v2518 = vunpack.c.l.b16 %v2470
  %v2519 = vunpack.c.l.b16 %v2471
  %v2520 = vunpack.c.l.b16 %v2472
  %v2521 = vunpack.c.l.b16 %v2473
  %v2522 = vunpack.c.l.b16 %v2474
  %v2523 = vunpack.c.l.b16 %v2475
  %v2524 = vunpack.c.l.b16 %v2476
  %v2525 = vunpack.c.l.b16 %v2477
  %v2526 = vunpack.c.l.b16 %v2478
  %v2527 = vunpack.c.l.b16 %v2479
  %v2528 = vunpack.c.l.b16 %v2480
  %v2529 = vunpack.c.l.b16 %v2481
  %v2530 = vunpack.c.l.b16 %v2482
  %v2531 = vunpack.c.l.b16 %v2483
  %v2532 = vpack.c.b16 %v2509, %v2508
  %v2533 = vpack.c.b16 %v2511, %v2510
  %v2534 = vpack.c.b16 %v2513, %v2512
  %v2535 = vpack.c.b16 %v2515, %v2514
  %v2536 = vpack.c.b16 %v2517, %v2516
  %v2537 = vpack.c.b16 %v2519, %v2518
  %v2538 = vpack.c.b16 %v2521, %v2520
  %v2539 = vpack.c.b16 %v2523, %v2522
  %v2540 = vpack.c.b16 %v2525, %v2524
  %v2541 = vpack.c.b16 %v2527, %v2526
  %v2542 = vpack.c.b16 %v2529, %v2528
  %v2543 = vpack.c.b16 %v2531, %v2530
  %v2557 = vsel %vm2266, 0, 0
  %v2560 = vsel %vm2266, %v2332, 0
  %v2563 = vsel %vm2266, %v2334, 0
  %v2566 = vsel %vm2266, %v2336, 0
  %v2569 = vsel %vm2266, %v2338, 0
  %v2572 = vsel %vm2266, %v2340, 0
  %v2575 = vsel %vm2266, %v2342, 0
  %v2578 = vsel %vm2266, %v2344, 0
  %v2581 = vsel %vm2266, %v2346, 0
  %v2584 = vsel %vm2266, %v2348, 0
  %v2587 = vsel %vm2266, %v2350, 0
  %v2590 = vsel %vm2266, %v2352, 0
  %v2593 = vsel %vm2266, %v2354, 0
  %v2596 = vsel %vm2266, %v2356, 0
  %v2599 = vsel %vm2266, %v2358, 0
  %v2602 = vsel %vm2266, %v2360, 0
  %v2605 = vsel %vm2266, %v2362, 0
  %v2608 = vsel %vm2266, %v2364, 0
  %v2611 = vsel %vm2266, %v2366, 0
  %v2614 = vsel %vm2266, %v2368, 0
  %v2617 = vsel %vm2266, %v2370, 0
  %v2620 = vsel %vm2266, %v2372, 0
  %v2623 = vsel %vm2266, %v2374, 0
  %v2626 = vsel %vm2266, %v2376, 0
  %v2629 = vsel %vm2266, %v2378, 0
  %v2632 = vsel %vm2266, %v2380, 0
  %v2635 = vsel %vm2266, %v2382, 0
  %v2638 = vsel %vm2266, %v2384, 0
  %v2641 = vsel %vm2266, %v2386, 0
  %v2644 = vsel %vm2266, %v2388, 0
  %v2647 = vsel %vm2266, %v2390, 0
  %v2650 = vsel %vm2266, %v2392, 0
  %2652 = vmatprep.subr.bf16.mxu0 0
  %2653 = vmatpush1.bf16.msra.mxu0 %v2532
  %2654 = vmatprep.subr.bf16.mxu0 0
  %2655 = vmatpush1.bf16.msra.mxu0 %v2533
  %2656 = vmatprep.subr.bf16.mxu0 0
  %2657 = vmatpush1.bf16.msra.mxu0 %v2534
  %2658 = vmatprep.subr.bf16.mxu0 0
  %2659 = vmatpush1.bf16.msra.mxu0 %v2535
  %2660 = vmatprep.subr.bf16.mxu0 0
  %2661 = vmatpush1.bf16.msra.mxu0 %v2536
  %2662 = vmatprep.subr.bf16.mxu0 0
  %2663 = vmatpush1.bf16.msra.mxu0 %v2537
  %2664 = vmatprep.subr.bf16.mxu0 0
  %2665 = vmatpush1.bf16.msra.mxu0 %v2538
  %2666 = vmatprep.subr.bf16.mxu0 0
  %2667 = vmatpush1.bf16.msra.mxu0 %v2539
  %2668 = vmatprep.subr.bf16.mxu0 0
  %2669 = vmatpush1.bf16.msra.mxu0 %v2540
  %2670 = vmatprep.subr.bf16.mxu0 0
  %2671 = vmatpush1.bf16.msra.mxu0 %v2541
  %2672 = vmatprep.subr.bf16.mxu0 0
  %2673 = vmatpush1.bf16.msra.mxu0 %v2542
  %2674 = vmatprep.subr.bf16.mxu0 0
  %2675 = vmatpush1.bf16.msra.mxu0 %v2543
  %2676 = vmatprep.subr.bf16.mxu0 0
  %2677 = vmatpush1.bf16.msra.mxu0 0
  %2678 = vmatprep.subr.bf16.mxu0 0
  %2679 = vmatpush1.bf16.msra.mxu0 0
  %2680 = vmatprep.subr.bf16.mxu0 0
  %2681 = vmatpush1.bf16.msra.mxu0 0
  %2682 = vmatprep.subr.bf16.mxu0 0
  %2683 = vmatpush1.bf16.msra.mxu0 0
  %2684 = vmatprep.mubr.bf16.mxu0 %v2557
  %2685 = vmatmul.mubr.bf16.gmra.mrb[0].mxu0 0
  %v2686 = vpop.f32.mrb[0].mxu0
  %v2687 = vadd.f32 0.0, %v2686
  %v2688 = vpop.f32.mrb[0].mxu0
  %v2689 = vpop.f32.mrb[0].mxu0
  %v2690 = vadd.f32 0.0, %v2689
  %v2691 = vpop.f32.mrb[0].mxu0
  %2692 = vmatprep.mubr.bf16.mxu0 %v2560
  %2693 = vmatmul.mubr.bf16.gmra.mrb[0].mxu0 %v2331
  %v2694 = vpop.f32.mrb[0].mxu0
  %v2695 = vadd.f32 0.0, %v2694
  %v2696 = vpop.f32.mrb[0].mxu0
  %v2697 = vpop.f32.mrb[0].mxu0
  %v2698 = vadd.f32 0.0, %v2697
  %v2699 = vpop.f32.mrb[0].mxu0
  %2700 = vmatprep.mubr.bf16.mxu0 %v2563
  %2701 = vmatmul.mubr.bf16.gmra.mrb[0].mxu0 %v2333
  %v2702 = vpop.f32.mrb[0].mxu0
  %v2703 = vadd.f32 0.0, %v2702
  %v2704 = vpop.f32.mrb[0].mxu0
  %v2705 = vpop.f32.mrb[0].mxu0
  %v2706 = vadd.f32 0.0, %v2705
  %v2707 = vpop.f32.mrb[0].mxu0
  %2708 = vmatprep.mubr.bf16.mxu0 %v2566
  %2709 = vmatmul.mubr.bf16.gmra.mrb[0].mxu0 %v2335
  %v2710 = vpop.f32.mrb[0].mxu0
  %v2711 = vadd.f32 0.0, %v2710
  %v2712 = vpop.f32.mrb[0].mxu0
  %v2713 = vpop.f32.mrb[0].mxu0
  %v2714 = vadd.f32 0.0, %v2713
  %v2715 = vpop.f32.mrb[0].mxu0
  %2716 = vmatprep.mubr.bf16.mxu0 %v2569
  %2717 = vmatmul.mubr.bf16.gmra.mrb[0].mxu0 %v2337
  %v2718 = vpop.f32.mrb[0].mxu0
  %v2719 = vadd.f32 0.0, %v2718
  %v2720 = vpop.f32.mrb[0].mxu0
  %v2721 = vpop.f32.mrb[0].mxu0
  %v2722 = vadd.f32 0.0, %v2721
  %v2723 = vpop.f32.mrb[0].mxu0
  %2724 = vmatprep.mubr.bf16.mxu0 %v2572
  %2725 = vmatmul.mubr.bf16.gmra.mrb[0].mxu0 %v2339
  %v2726 = vpop.f32.mrb[0].mxu0
  %v2727 = vadd.f32 0.0, %v2726
  %v2728 = vpop.f32.mrb[0].mxu0
  %v2729 = vpop.f32.mrb[0].mxu0
  %v2730 = vadd.f32 0.0, %v2729
  %v2731 = vpop.f32.mrb[0].mxu0
  %2732 = vmatprep.mubr.bf16.mxu0 %v2575
  %2733 = vmatmul.mubr.bf16.gmra.mrb[0].mxu0 %v2341
  %v2734 = vpop.f32.mrb[0].mxu0
  %v2735 = vadd.f32 0.0, %v2734
  %v2736 = vpop.f32.mrb[0].mxu0
  %v2737 = vpop.f32.mrb[0].mxu0
  %v2738 = vadd.f32 0.0, %v2737
  %v2739 = vpop.f32.mrb[0].mxu0
  %2740 = vmatprep.mubr.bf16.mxu0 %v2578
  %2741 = vmatmul.mubr.bf16.gmra.mrb[0].mxu0 %v2343
  %v2742 = vpop.f32.mrb[0].mxu0
  %v2743 = vadd.f32 0.0, %v2742
  %v2744 = vpop.f32.mrb[0].mxu0
  %v2745 = vpop.f32.mrb[0].mxu0
  %v2746 = vadd.f32 0.0, %v2745
  %v2747 = vpop.f32.mrb[0].mxu0
  %2748 = vmatprep.mubr.bf16.mxu0 %v2581
  %2749 = vmatmul.mubr.bf16.gmra.mrb[0].mxu0 %v2345
  %v2750 = vpop.f32.mrb[0].mxu0
  %v2751 = vadd.f32 0.0, %v2750
  %v2752 = vpop.f32.mrb[0].mxu0
  %v2753 = vpop.f32.mrb[0].mxu0
  %v2754 = vadd.f32 0.0, %v2753
  %v2755 = vpop.f32.mrb[0].mxu0
  %2756 = vmatprep.mubr.bf16.mxu0 %v2584
  %2757 = vmatmul.mubr.bf16.gmra.mrb[0].mxu0 %v2347
  %v2758 = vpop.f32.mrb[0].mxu0
  %v2759 = vadd.f32 0.0, %v2758
  %v2760 = vpop.f32.mrb[0].mxu0
  %v2761 = vpop.f32.mrb[0].mxu0
  %v2762 = vadd.f32 0.0, %v2761
  %v2763 = vpop.f32.mrb[0].mxu0
  %2764 = vmatprep.mubr.bf16.mxu0 %v2587
  %2765 = vmatmul.mubr.bf16.gmra.mrb[0].mxu0 %v2349
  %v2766 = vpop.f32.mrb[0].mxu0
  %v2767 = vadd.f32 0.0, %v2766
  %v2768 = vpop.f32.mrb[0].mxu0
  %v2769 = vpop.f32.mrb[0].mxu0
  %v2770 = vadd.f32 0.0, %v2769
  %v2771 = vpop.f32.mrb[0].mxu0
  %2772 = vmatprep.mubr.bf16.mxu0 %v2590
  %2773 = vmatmul.mubr.bf16.gmra.mrb[0].mxu0 %v2351
  %v2774 = vpop.f32.mrb[0].mxu0
  %v2775 = vadd.f32 0.0, %v2774
  %v2776 = vpop.f32.mrb[0].mxu0
  %v2777 = vpop.f32.mrb[0].mxu0
  %v2778 = vadd.f32 0.0, %v2777
  %v2779 = vpop.f32.mrb[0].mxu0
  %2780 = vmatprep.mubr.bf16.mxu0 %v2593
  %2781 = vmatmul.mubr.bf16.gmra.mrb[0].mxu0 %v2353
  %v2782 = vpop.f32.mrb[0].mxu0
  %v2783 = vadd.f32 0.0, %v2782
  %v2784 = vpop.f32.mrb[0].mxu0
  %v2785 = vpop.f32.mrb[0].mxu0
  %v2786 = vadd.f32 0.0, %v2785
  %v2787 = vpop.f32.mrb[0].mxu0
  %2788 = vmatprep.mubr.bf16.mxu0 %v2596
  %2789 = vmatmul.mubr.bf16.gmra.mrb[0].mxu0 %v2355
  %v2790 = vpop.f32.mrb[0].mxu0
  %v2791 = vadd.f32 0.0, %v2790
  %v2792 = vpop.f32.mrb[0].mxu0
  %v2793 = vpop.f32.mrb[0].mxu0
  %v2794 = vadd.f32 0.0, %v2793
  %v2795 = vpop.f32.mrb[0].mxu0
  %2796 = vmatprep.mubr.bf16.mxu0 %v2599
  %2797 = vmatmul.mubr.bf16.gmra.mrb[0].mxu0 %v2357
  %v2798 = vpop.f32.mrb[0].mxu0
  %v2799 = vadd.f32 0.0, %v2798
  %v2800 = vpop.f32.mrb[0].mxu0
  %v2801 = vpop.f32.mrb[0].mxu0
  %v2802 = vadd.f32 0.0, %v2801
  %v2803 = vpop.f32.mrb[0].mxu0
  %2804 = vmatprep.mubr.bf16.mxu0 %v2602
  %2805 = vmatmul.mubr.bf16.gmra.mrb[0].mxu0 %v2359
  %v2806 = vpop.f32.mrb[0].mxu0
  %v2807 = vadd.f32 0.0, %v2806
  %v2808 = vpop.f32.mrb[0].mxu0
  %v2809 = vpop.f32.mrb[0].mxu0
  %v2810 = vadd.f32 0.0, %v2809
  %v2811 = vpop.f32.mrb[0].mxu0
  %2812 = vmatprep.mubr.bf16.mxu0 %v2605
  %2813 = vmatmul.mubr.bf16.gmra.mrb[0].mxu0 %v2361
  %v2814 = vpop.f32.mrb[0].mxu0
  %v2815 = vadd.f32 0.0, %v2814
  %v2816 = vpop.f32.mrb[0].mxu0
  %v2817 = vpop.f32.mrb[0].mxu0
  %v2818 = vadd.f32 0.0, %v2817
  %v2819 = vpop.f32.mrb[0].mxu0
  %2820 = vmatprep.mubr.bf16.mxu0 %v2608
  %2821 = vmatmul.mubr.bf16.gmra.mrb[0].mxu0 %v2363
  %v2822 = vpop.f32.mrb[0].mxu0
  %v2823 = vadd.f32 0.0, %v2822
  %v2824 = vpop.f32.mrb[0].mxu0
  %v2825 = vpop.f32.mrb[0].mxu0
  %v2826 = vadd.f32 0.0, %v2825
  %v2827 = vpop.f32.mrb[0].mxu0
  %2828 = vmatprep.mubr.bf16.mxu0 %v2611
  %2829 = vmatmul.mubr.bf16.gmra.mrb[0].mxu0 %v2365
  %v2830 = vpop.f32.mrb[0].mxu0
  %v2831 = vadd.f32 0.0, %v2830
  %v2832 = vpop.f32.mrb[0].mxu0
  %v2833 = vpop.f32.mrb[0].mxu0
  %v2834 = vadd.f32 0.0, %v2833
  %v2835 = vpop.f32.mrb[0].mxu0
  %2836 = vmatprep.mubr.bf16.mxu0 %v2614
  %2837 = vmatmul.mubr.bf16.gmra.mrb[0].mxu0 %v2367
  %v2838 = vpop.f32.mrb[0].mxu0
  %v2839 = vadd.f32 0.0, %v2838
  %v2840 = vpop.f32.mrb[0].mxu0
  %v2841 = vpop.f32.mrb[0].mxu0
  %v2842 = vadd.f32 0.0, %v2841
  %v2843 = vpop.f32.mrb[0].mxu0
  %2844 = vmatprep.mubr.bf16.mxu0 %v2617
  %2845 = vmatmul.mubr.bf16.gmra.mrb[0].mxu0 %v2369
  %v2846 = vpop.f32.mrb[0].mxu0
  %v2847 = vadd.f32 0.0, %v2846
  %v2848 = vpop.f32.mrb[0].mxu0
  %v2849 = vpop.f32.mrb[0].mxu0
  %v2850 = vadd.f32 0.0, %v2849
  %v2851 = vpop.f32.mrb[0].mxu0
  %2852 = vmatprep.mubr.bf16.mxu0 %v2620
  %2853 = vmatmul.mubr.bf16.gmra.mrb[0].mxu0 %v2371
  %v2854 = vpop.f32.mrb[0].mxu0
  %v2855 = vadd.f32 0.0, %v2854
  %v2856 = vpop.f32.mrb[0].mxu0
  %v2857 = vpop.f32.mrb[0].mxu0
  %v2858 = vadd.f32 0.0, %v2857
  %v2859 = vpop.f32.mrb[0].mxu0
  %2860 = vmatprep.mubr.bf16.mxu0 %v2623
  %2861 = vmatmul.mubr.bf16.gmra.mrb[0].mxu0 %v2373
  %v2862 = vpop.f32.mrb[0].mxu0
  %v2863 = vadd.f32 0.0, %v2862
  %v2864 = vpop.f32.mrb[0].mxu0
  %v2865 = vpop.f32.mrb[0].mxu0
  %v2866 = vadd.f32 0.0, %v2865
  %v2867 = vpop.f32.mrb[0].mxu0
  %2868 = vmatprep.mubr.bf16.mxu0 %v2626
  %2869 = vmatmul.mubr.bf16.gmra.mrb[0].mxu0 %v2375
  %v2870 = vpop.f32.mrb[0].mxu0
  %v2871 = vadd.f32 0.0, %v2870
  %v2872 = vpop.f32.mrb[0].mxu0
  %v2873 = vpop.f32.mrb[0].mxu0
  %v2874 = vadd.f32 0.0, %v2873
  %v2875 = vpop.f32.mrb[0].mxu0
  %2876 = vmatprep.mubr.bf16.mxu0 %v2629
  %2877 = vmatmul.mubr.bf16.gmra.mrb[0].mxu0 %v2377
  %v2878 = vpop.f32.mrb[0].mxu0
  %v2879 = vadd.f32 0.0, %v2878
  %v2880 = vpop.f32.mrb[0].mxu0
  %v2881 = vpop.f32.mrb[0].mxu0
  %v2882 = vadd.f32 0.0, %v2881
  %v2883 = vpop.f32.mrb[0].mxu0
  %2884 = vmatprep.mubr.bf16.mxu0 %v2632
  %2885 = vmatmul.mubr.bf16.gmra.mrb[0].mxu0 %v2379
  %v2886 = vpop.f32.mrb[0].mxu0
  %v2887 = vadd.f32 0.0, %v2886
  %v2888 = vpop.f32.mrb[0].mxu0
  %v2889 = vpop.f32.mrb[0].mxu0
  %v2890 = vadd.f32 0.0, %v2889
  %v2891 = vpop.f32.mrb[0].mxu0
  %2892 = vmatprep.mubr.bf16.mxu0 %v2635
  %2893 = vmatmul.mubr.bf16.gmra.mrb[0].mxu0 %v2381
  %v2894 = vpop.f32.mrb[0].mxu0
  %v2895 = vadd.f32 0.0, %v2894
  %v2896 = vpop.f32.mrb[0].mxu0
  %v2897 = vpop.f32.mrb[0].mxu0
  %v2898 = vadd.f32 0.0, %v2897
  %v2899 = vpop.f32.mrb[0].mxu0
  %2900 = vmatprep.mubr.bf16.mxu0 %v2638
  %2901 = vmatmul.mubr.bf16.gmra.mrb[0].mxu0 %v2383
  %v2902 = vpop.f32.mrb[0].mxu0
  %v2903 = vadd.f32 0.0, %v2902
  %v2904 = vpop.f32.mrb[0].mxu0
  %v2905 = vpop.f32.mrb[0].mxu0
  %v2906 = vadd.f32 0.0, %v2905
  %v2907 = vpop.f32.mrb[0].mxu0
  %2908 = vmatprep.mubr.bf16.mxu0 %v2641
  %2909 = vmatmul.mubr.bf16.gmra.mrb[0].mxu0 %v2385
  %v2910 = vpop.f32.mrb[0].mxu0
  %v2911 = vadd.f32 0.0, %v2910
  %v2912 = vpop.f32.mrb[0].mxu0
  %v2913 = vpop.f32.mrb[0].mxu0
  %v2914 = vadd.f32 0.0, %v2913
  %v2915 = vpop.f32.mrb[0].mxu0
  %2916 = vmatprep.mubr.bf16.mxu0 %v2644
  %2917 = vmatmul.mubr.bf16.gmra.mrb[0].mxu0 %v2387
  %v2918 = vpop.f32.mrb[0].mxu0
  %v2919 = vadd.f32 0.0, %v2918
  %v2920 = vpop.f32.mrb[0].mxu0
  %v2921 = vpop.f32.mrb[0].mxu0
  %v2922 = vadd.f32 0.0, %v2921
  %v2923 = vpop.f32.mrb[0].mxu0
  %2924 = vmatprep.mubr.bf16.mxu0 %v2647
  %2925 = vmatmul.mubr.bf16.gmra.mrb[0].mxu0 %v2389
  %v2926 = vpop.f32.mrb[0].mxu0
  %v2927 = vadd.f32 0.0, %v2926
  %v2928 = vpop.f32.mrb[0].mxu0
  %v2929 = vpop.f32.mrb[0].mxu0
  %v2930 = vadd.f32 0.0, %v2929
  %v2931 = vpop.f32.mrb[0].mxu0
  %2932 = vmatprep.mubr.bf16.mxu0 %v2650
  %2933 = vmatmul.mubr.bf16.gmra.mrb[0].mxu0 %v2391
  %v2934 = vpop.f32.mrb[0].mxu0
  %v2935 = vadd.f32 0.0, %v2934
  %v2936 = vpop.f32.mrb[0].mxu0
  %v2937 = vpop.f32.mrb[0].mxu0
  %v2938 = vadd.f32 0.0, %v2937
  %v2939 = vpop.f32.mrb[0].mxu0
  %2940 = vdwg.mxu0
  %2942 = vset.pattern.permute.xlu0 0
  %2943 = vperm.xlu0 %2942, %v2396
  %v2944 = vpop.permute.xlu0 %2943
  %2947 = vset.pattern.permute.xlu0 0
  %2948 = vperm.xlu0 %2947, %v2397
  %v2949 = vpop.permute.xlu0 %2948
  %2952 = vset.pattern.permute.xlu0 0
  %2953 = vperm.xlu0 %2952, %v2398
  %v2954 = vpop.permute.xlu0 %2953
  %2957 = vset.pattern.permute.xlu0 0
  %2958 = vperm.xlu0 %2957, %v2399
  %v2959 = vpop.permute.xlu0 %2958
  %2962 = vset.pattern.permute.xlu0 0
  %2963 = vperm.xlu0 %2962, %v2400
  %v2964 = vpop.permute.xlu0 %2963
  %2967 = vset.pattern.permute.xlu0 0
  %2968 = vperm.xlu0 %2967, %v2401
  %v2969 = vpop.permute.xlu0 %2968
  %2972 = vset.pattern.permute.xlu0 0
  %2973 = vperm.xlu0 %2972, %v2402
  %v2974 = vpop.permute.xlu0 %2973
  %2977 = vset.pattern.permute.xlu0 0
  %2978 = vperm.xlu0 %2977, %v2403
  %v2979 = vpop.permute.xlu0 %2978
  %2982 = vset.pattern.permute.xlu0 0
  %2983 = vperm.xlu0 %2982, %v2404
  %v2984 = vpop.permute.xlu0 %2983
  %2987 = vset.pattern.permute.xlu0 0
  %2988 = vperm.xlu0 %2987, %v2405
  %v2989 = vpop.permute.xlu0 %2988
  %2992 = vset.pattern.permute.xlu0 0
  %2993 = vperm.xlu0 %2992, %v2406
  %v2994 = vpop.permute.xlu0 %2993
  %2997 = vset.pattern.permute.xlu0 0
  %2998 = vperm.xlu0 %2997, %v2407
  %v2999 = vpop.permute.xlu0 %2998
  %3002 = vset.pattern.permute.xlu0 0
  %3003 = vperm.xlu0 %3002, %v2408
  %v3004 = vpop.permute.xlu0 %3003
  %3007 = vset.pattern.permute.xlu0 0
  %3008 = vperm.xlu0 %3007, %v2409
  %v3009 = vpop.permute.xlu0 %3008
  %3012 = vset.pattern.permute.xlu0 0
  %3013 = vperm.xlu0 %3012, %v2410
  %v3014 = vpop.permute.xlu0 %3013
  %3017 = vset.pattern.permute.xlu0 0
  %3018 = vperm.xlu0 %3017, %v2411
  %v3019 = vpop.permute.xlu0 %3018
  %3022 = vset.pattern.permute.xlu0 0
  %3023 = vperm.xlu0 %3022, %v2412
  %v3024 = vpop.permute.xlu0 %3023
  %3027 = vset.pattern.permute.xlu0 0
  %3028 = vperm.xlu0 %3027, %v2413
  %v3029 = vpop.permute.xlu0 %3028
  %3032 = vset.pattern.permute.xlu0 0
  %3033 = vperm.xlu0 %3032, %v2414
  %v3034 = vpop.permute.xlu0 %3033
  %3037 = vset.pattern.permute.xlu0 0
  %3038 = vperm.xlu0 %3037, %v2415
  %v3039 = vpop.permute.xlu0 %3038
  %3042 = vset.pattern.permute.xlu0 0
  %3043 = vperm.xlu0 %3042, %v2416
  %v3044 = vpop.permute.xlu0 %3043
  %3047 = vset.pattern.permute.xlu0 0
  %3048 = vperm.xlu0 %3047, %v2417
  %v3049 = vpop.permute.xlu0 %3048
  %3052 = vset.pattern.permute.xlu0 0
  %3053 = vperm.xlu0 %3052, %v2418
  %v3054 = vpop.permute.xlu0 %3053
  %3057 = vset.pattern.permute.xlu0 0
  %3058 = vperm.xlu0 %3057, %v2419
  %v3059 = vpop.permute.xlu0 %3058
  %3062 = vset.pattern.permute.xlu0 0
  %3063 = vperm.xlu0 %3062, %v2420
  %v3064 = vpop.permute.xlu0 %3063
  %3067 = vset.pattern.permute.xlu0 0
  %3068 = vperm.xlu0 %3067, %v2421
  %v3069 = vpop.permute.xlu0 %3068
  %3072 = vset.pattern.permute.xlu0 0
  %3073 = vperm.xlu0 %3072, %v2422
  %v3074 = vpop.permute.xlu0 %3073
  %3077 = vset.pattern.permute.xlu0 0
  %3078 = vperm.xlu0 %3077, %v2423
  %v3079 = vpop.permute.xlu0 %3078
  %3082 = vset.pattern.permute.xlu0 0
  %3083 = vperm.xlu0 %3082, %v2424
  %v3084 = vpop.permute.xlu0 %3083
  %3087 = vset.pattern.permute.xlu0 0
  %3088 = vperm.xlu0 %3087, %v2425
  %v3089 = vpop.permute.xlu0 %3088
  %3092 = vset.pattern.permute.xlu0 0
  %3093 = vperm.xlu0 %3092, %v2426
  %v3094 = vpop.permute.xlu0 %3093
  %3097 = vset.pattern.permute.xlu0 0
  %3098 = vperm.xlu0 %3097, %v2427
  %v3099 = vpop.permute.xlu0 %3098
  %3102 = vset.pattern.permute.xlu0 0
  %3103 = vperm.xlu0 %3102, %v2428
  %v3104 = vpop.permute.xlu0 %3103
  %3107 = vset.pattern.permute.xlu0 0
  %3108 = vperm.xlu0 %3107, %v2429
  %v3109 = vpop.permute.xlu0 %3108
  %3112 = vset.pattern.permute.xlu0 0
  %3113 = vperm.xlu0 %3112, %v2430
  %v3114 = vpop.permute.xlu0 %3113
  %3117 = vset.pattern.permute.xlu0 0
  %3118 = vperm.xlu0 %3117, %v2431
  %v3119 = vpop.permute.xlu0 %3118
  %3122 = vset.pattern.permute.xlu0 0
  %3123 = vperm.xlu0 %3122, %v2432
  %v3124 = vpop.permute.xlu0 %3123
  %3127 = vset.pattern.permute.xlu0 0
  %3128 = vperm.xlu0 %3127, %v2433
  %v3129 = vpop.permute.xlu0 %3128
  %3132 = vset.pattern.permute.xlu0 0
  %3133 = vperm.xlu0 %3132, %v2434
  %v3134 = vpop.permute.xlu0 %3133
  %3137 = vset.pattern.permute.xlu0 0
  %3138 = vperm.xlu0 %3137, %v2435
  %v3139 = vpop.permute.xlu0 %3138
  %3142 = vset.pattern.permute.xlu0 0
  %3143 = vperm.xlu0 %3142, %v2436
  %v3144 = vpop.permute.xlu0 %3143
  %3147 = vset.pattern.permute.xlu0 0
  %3148 = vperm.xlu0 %3147, %v2437
  %v3149 = vpop.permute.xlu0 %3148
  %3152 = vset.pattern.permute.xlu0 0
  %3153 = vperm.xlu0 %3152, %v2438
  %v3154 = vpop.permute.xlu0 %3153
  %3157 = vset.pattern.permute.xlu0 0
  %3158 = vperm.xlu0 %3157, %v2439
  %v3159 = vpop.permute.xlu0 %3158
  %3162 = vset.pattern.permute.xlu0 0
  %3163 = vperm.xlu0 %3162, %v2440
  %v3164 = vpop.permute.xlu0 %3163
  %3167 = vset.pattern.permute.xlu0 0
  %3168 = vperm.xlu0 %3167, %v2441
  %v3169 = vpop.permute.xlu0 %3168
  %3172 = vset.pattern.permute.xlu0 0
  %3173 = vperm.xlu0 %3172, %v2442
  %v3174 = vpop.permute.xlu0 %3173
  %3177 = vset.pattern.permute.xlu0 0
  %3178 = vperm.xlu0 %3177, %v2443
  %v3179 = vpop.permute.xlu0 %3178
  %3182 = vset.pattern.permute.xlu0 0
  %3183 = vperm.xlu0 %3182, %v2444
  %v3184 = vpop.permute.xlu0 %3183
  %3187 = vset.pattern.permute.xlu0 0
  %3188 = vperm.xlu0 %3187, %v2445
  %v3189 = vpop.permute.xlu0 %3188
  %3192 = vset.pattern.permute.xlu0 0
  %3193 = vperm.xlu0 %3192, %v2446
  %v3194 = vpop.permute.xlu0 %3193
  %3197 = vset.pattern.permute.xlu0 0
  %3198 = vperm.xlu0 %3197, %v2447
  %v3199 = vpop.permute.xlu0 %3198
  %3202 = vset.pattern.permute.xlu0 0
  %3203 = vperm.xlu0 %3202, %v2448
  %v3204 = vpop.permute.xlu0 %3203
  %3207 = vset.pattern.permute.xlu0 0
  %3208 = vperm.xlu0 %3207, %v2449
  %v3209 = vpop.permute.xlu0 %3208
  %3212 = vset.pattern.permute.xlu0 0
  %3213 = vperm.xlu0 %3212, %v2450
  %v3214 = vpop.permute.xlu0 %3213
  %3217 = vset.pattern.permute.xlu0 0
  %3218 = vperm.xlu0 %3217, %v2451
  %v3219 = vpop.permute.xlu0 %3218
  %3222 = vset.pattern.permute.xlu0 0
  %3223 = vperm.xlu0 %3222, %v2452
  %v3224 = vpop.permute.xlu0 %3223
  %3227 = vset.pattern.permute.xlu0 0
  %3228 = vperm.xlu0 %3227, %v2453
  %v3229 = vpop.permute.xlu0 %3228
  %3232 = vset.pattern.permute.xlu0 0
  %3233 = vperm.xlu0 %3232, %v2454
  %v3234 = vpop.permute.xlu0 %3233
  %3237 = vset.pattern.permute.xlu0 0
  %3238 = vperm.xlu0 %3237, %v2455
  %v3239 = vpop.permute.xlu0 %3238
  %3242 = vset.pattern.permute.xlu0 0
  %3243 = vperm.xlu0 %3242, %v2456
  %v3244 = vpop.permute.xlu0 %3243
  %3247 = vset.pattern.permute.xlu0 0
  %3248 = vperm.xlu0 %3247, %v2457
  %v3249 = vpop.permute.xlu0 %3248
  %3252 = vset.pattern.permute.xlu0 0
  %3253 = vperm.xlu0 %3252, %v2458
  %v3254 = vpop.permute.xlu0 %3253
  %3257 = vset.pattern.permute.xlu0 0
  %3258 = vperm.xlu0 %3257, %v2459
  %v3259 = vpop.permute.xlu0 %3258
  %v3261 = vmul.f32 %v2944, %v2687
  %v3262 = vmul.f32 %v2949, %v2690
  %v3263 = vmul.f32 %v2954, %v2695
  %v3264 = vmul.f32 %v2959, %v2698
  %v3265 = vmul.f32 %v2964, %v2703
  %v3266 = vmul.f32 %v2969, %v2706
  %v3267 = vmul.f32 %v2974, %v2711
  %v3268 = vmul.f32 %v2979, %v2714
  %v3269 = vmul.f32 %v2984, %v2719
  %v3270 = vmul.f32 %v2989, %v2722
  %v3271 = vmul.f32 %v2994, %v2727
  %v3272 = vmul.f32 %v2999, %v2730
  %v3273 = vmul.f32 %v3004, %v2735
  %v3274 = vmul.f32 %v3009, %v2738
  %v3275 = vmul.f32 %v3014, %v2743
  %v3276 = vmul.f32 %v3019, %v2746
  %v3277 = vmul.f32 %v3024, %v2751
  %v3278 = vmul.f32 %v3029, %v2754
  %v3279 = vmul.f32 %v3034, %v2759
  %v3280 = vmul.f32 %v3039, %v2762
  %v3281 = vmul.f32 %v3044, %v2767
  %v3282 = vmul.f32 %v3049, %v2770
  %v3283 = vmul.f32 %v3054, %v2775
  %v3284 = vmul.f32 %v3059, %v2778
  %v3285 = vmul.f32 %v3064, %v2783
  %v3286 = vmul.f32 %v3069, %v2786
  %v3287 = vmul.f32 %v3074, %v2791
  %v3288 = vmul.f32 %v3079, %v2794
  %v3289 = vmul.f32 %v3084, %v2799
  %v3290 = vmul.f32 %v3089, %v2802
  %v3291 = vmul.f32 %v3094, %v2807
  %v3292 = vmul.f32 %v3099, %v2810
  %v3293 = vmul.f32 %v3104, %v2815
  %v3294 = vmul.f32 %v3109, %v2818
  %v3295 = vmul.f32 %v3114, %v2823
  %v3296 = vmul.f32 %v3119, %v2826
  %v3297 = vmul.f32 %v3124, %v2831
  %v3298 = vmul.f32 %v3129, %v2834
  %v3299 = vmul.f32 %v3134, %v2839
  %v3300 = vmul.f32 %v3139, %v2842
  %v3301 = vmul.f32 %v3144, %v2847
  %v3302 = vmul.f32 %v3149, %v2850
  %v3303 = vmul.f32 %v3154, %v2855
  %v3304 = vmul.f32 %v3159, %v2858
  %v3305 = vmul.f32 %v3164, %v2863
  %v3306 = vmul.f32 %v3169, %v2866
  %v3307 = vmul.f32 %v3174, %v2871
  %v3308 = vmul.f32 %v3179, %v2874
  %v3309 = vmul.f32 %v3184, %v2879
  %v3310 = vmul.f32 %v3189, %v2882
  %v3311 = vmul.f32 %v3194, %v2887
  %v3312 = vmul.f32 %v3199, %v2890
  %v3313 = vmul.f32 %v3204, %v2895
  %v3314 = vmul.f32 %v3209, %v2898
  %v3315 = vmul.f32 %v3214, %v2903
  %v3316 = vmul.f32 %v3219, %v2906
  %v3317 = vmul.f32 %v3224, %v2911
  %v3318 = vmul.f32 %v3229, %v2914
  %v3319 = vmul.f32 %v3234, %v2919
  %v3320 = vmul.f32 %v3239, %v2922
  %v3321 = vmul.f32 %v3244, %v2927
  %v3322 = vmul.f32 %v3249, %v2930
  %v3323 = vmul.f32 %v3254, %v2935
  %v3324 = vmul.f32 %v3259, %v2938
  %s3325 = scalar_lea.vmem %s4, 96
  %v3326 = vld [vmem:[%s3325] sm:$0xf]
  %v3327 = vld [vmem:[%s3325 + $0x4] sm:$0xf]
  %v3328 = vld [vmem:[%s3325 + $0x8] sm:$0xf]
  %v3329 = vld [vmem:[%s3325 + $0xc] sm:$0xf]
  %v3330 = vld [vmem:[%s3325 + $0x10] sm:$0xf]
  %v3331 = vld [vmem:[%s3325 + $0x14] sm:$0xf]
  %v3332 = vld [vmem:[%s3325 + $0x18] sm:$0xf]
  %v3333 = vld [vmem:[%s3325 + $0x1c] sm:$0xf]
  %v3334 = vld [vmem:[%s3325 + $0x20] sm:$0xf]
  %v3335 = vld [vmem:[%s3325 + $0x24] sm:$0xf]
  %v3336 = vld [vmem:[%s3325 + $0x28] sm:$0xf]
  %v3337 = vld [vmem:[%s3325 + $0x2c] sm:$0xf]
  %v3338 = vld [vmem:[%s3325 + $0x30] sm:$0xf]
  %v3339 = vld [vmem:[%s3325 + $0x34] sm:$0xf]
  %v3340 = vld [vmem:[%s3325 + $0x38] sm:$0xf]
  %v3341 = vld [vmem:[%s3325 + $0x3c] sm:$0xf]
  %v3342 = vld [vmem:[%s3325 + $0x40] sm:$0xf]
  %v3343 = vld [vmem:[%s3325 + $0x44] sm:$0xf]
  %v3344 = vld [vmem:[%s3325 + $0x48] sm:$0xf]
  %v3345 = vld [vmem:[%s3325 + $0x4c] sm:$0xf]
  %v3346 = vld [vmem:[%s3325 + $0x50] sm:$0xf]
  %v3347 = vld [vmem:[%s3325 + $0x54] sm:$0xf]
  %v3348 = vld [vmem:[%s3325 + $0x58] sm:$0xf]
  %v3349 = vld [vmem:[%s3325 + $0x5c] sm:$0xf]
  %v3374 = vunpack.c.l.b16 %v3326
  %v3375 = vunpack.c.l.b16 %v3327
  %v3376 = vunpack.c.l.b16 %v3328
  %v3377 = vunpack.c.l.b16 %v3329
  %v3378 = vunpack.c.l.b16 %v3330
  %v3379 = vunpack.c.l.b16 %v3331
  %v3380 = vunpack.c.l.b16 %v3332
  %v3381 = vunpack.c.l.b16 %v3333
  %v3382 = vunpack.c.l.b16 %v3334
  %v3383 = vunpack.c.l.b16 %v3335
  %v3384 = vunpack.c.l.b16 %v3336
  %v3385 = vunpack.c.l.b16 %v3337
  %v3386 = vunpack.c.l.b16 %v3338
  %v3387 = vunpack.c.l.b16 %v3339
  %v3388 = vunpack.c.l.b16 %v3340
  %v3389 = vunpack.c.l.b16 %v3341
  %v3390 = vunpack.c.l.b16 %v3342
  %v3391 = vunpack.c.l.b16 %v3343
  %v3392 = vunpack.c.l.b16 %v3344
  %v3393 = vunpack.c.l.b16 %v3345
  %v3394 = vunpack.c.l.b16 %v3346
  %v3395 = vunpack.c.l.b16 %v3347
  %v3396 = vunpack.c.l.b16 %v3348
  %v3397 = vunpack.c.l.b16 %v3349
  %v3398 = vpack.c.b16 %v3375, %v3374
  %v3399 = vpack.c.b16 %v3377, %v3376
  %v3400 = vpack.c.b16 %v3379, %v3378
  %v3401 = vpack.c.b16 %v3381, %v3380
  %v3402 = vpack.c.b16 %v3383, %v3382
  %v3403 = vpack.c.b16 %v3385, %v3384
  %v3404 = vpack.c.b16 %v3387, %v3386
  %v3405 = vpack.c.b16 %v3389, %v3388
  %v3406 = vpack.c.b16 %v3391, %v3390
  %v3407 = vpack.c.b16 %v3393, %v3392
  %v3408 = vpack.c.b16 %v3395, %v3394
  %v3409 = vpack.c.b16 %v3397, %v3396
  %v3423 = vsel %vm2266, %v2394, 0
  %3425 = vmatprep.subr.bf16.mxu0 0
  %3426 = vmatpush1.bf16.msra.mxu0 %v3398
  %3427 = vmatprep.subr.bf16.mxu0 0
  %3428 = vmatpush1.bf16.msra.mxu0 %v3399
  %3429 = vmatprep.subr.bf16.mxu0 0
  %3430 = vmatpush1.bf16.msra.mxu0 %v3400
  %3431 = vmatprep.subr.bf16.mxu0 0
  %3432 = vmatpush1.bf16.msra.mxu0 %v3401
  %3433 = vmatprep.subr.bf16.mxu0 0
  %3434 = vmatpush1.bf16.msra.mxu0 %v3402
  %3435 = vmatprep.subr.bf16.mxu0 0
  %3436 = vmatpush1.bf16.msra.mxu0 %v3403
  %3437 = vmatprep.subr.bf16.mxu0 0
  %3438 = vmatpush1.bf16.msra.mxu0 %v3404
  %3439 = vmatprep.subr.bf16.mxu0 0
  %3440 = vmatpush1.bf16.msra.mxu0 %v3405
  %3441 = vmatprep.subr.bf16.mxu0 0
  %3442 = vmatpush1.bf16.msra.mxu0 %v3406
  %3443 = vmatprep.subr.bf16.mxu0 0
  %3444 = vmatpush1.bf16.msra.mxu0 %v3407
  %3445 = vmatprep.subr.bf16.mxu0 0
  %3446 = vmatpush1.bf16.msra.mxu0 %v3408
  %3447 = vmatprep.subr.bf16.mxu0 0
  %3448 = vmatpush1.bf16.msra.mxu0 %v3409
  %3449 = vmatprep.subr.bf16.mxu0 0
  %3450 = vmatpush1.bf16.msra.mxu0 0
  %3451 = vmatprep.subr.bf16.mxu0 0
  %3452 = vmatpush1.bf16.msra.mxu0 0
  %3453 = vmatprep.subr.bf16.mxu0 0
  %3454 = vmatpush1.bf16.msra.mxu0 0
  %3455 = vmatprep.subr.bf16.mxu0 0
  %3456 = vmatpush1.bf16.msra.mxu0 0
  %3457 = vmatprep.mubr.bf16.mxu0 %v2560
  %3458 = vmatmul.mubr.bf16.gmra.mrb[0].mxu0 %v2331
  %v3459 = vpop.f32.mrb[0].mxu0
  %v3460 = vadd.f32 0.0, %v3459
  %v3461 = vpop.f32.mrb[0].mxu0
  %v3462 = vpop.f32.mrb[0].mxu0
  %v3463 = vadd.f32 0.0, %v3462
  %v3464 = vpop.f32.mrb[0].mxu0
  %3465 = vmatprep.mubr.bf16.mxu0 %v2563
  %3466 = vmatmul.mubr.bf16.gmra.mrb[0].mxu0 %v2333
  %v3467 = vpop.f32.mrb[0].mxu0
  %v3468 = vadd.f32 0.0, %v3467
  %v3469 = vpop.f32.mrb[0].mxu0
  %v3470 = vpop.f32.mrb[0].mxu0
  %v3471 = vadd.f32 0.0, %v3470
  %v3472 = vpop.f32.mrb[0].mxu0
  %3473 = vmatprep.mubr.bf16.mxu0 %v2566
  %3474 = vmatmul.mubr.bf16.gmra.mrb[0].mxu0 %v2335
  %v3475 = vpop.f32.mrb[0].mxu0
  %v3476 = vadd.f32 0.0, %v3475
  %v3477 = vpop.f32.mrb[0].mxu0
  %v3478 = vpop.f32.mrb[0].mxu0
  %v3479 = vadd.f32 0.0, %v3478
  %v3480 = vpop.f32.mrb[0].mxu0
  %3481 = vmatprep.mubr.bf16.mxu0 %v2569
  %3482 = vmatmul.mubr.bf16.gmra.mrb[0].mxu0 %v2337
  %v3483 = vpop.f32.mrb[0].mxu0
  %v3484 = vadd.f32 0.0, %v3483
  %v3485 = vpop.f32.mrb[0].mxu0
  %v3486 = vpop.f32.mrb[0].mxu0
  %v3487 = vadd.f32 0.0, %v3486
  %v3488 = vpop.f32.mrb[0].mxu0
  %3489 = vmatprep.mubr.bf16.mxu0 %v2572
  %3490 = vmatmul.mubr.bf16.gmra.mrb[0].mxu0 %v2339
  %v3491 = vpop.f32.mrb[0].mxu0
  %v3492 = vadd.f32 0.0, %v3491
  %v3493 = vpop.f32.mrb[0].mxu0
  %v3494 = vpop.f32.mrb[0].mxu0
  %v3495 = vadd.f32 0.0, %v3494
  %v3496 = vpop.f32.mrb[0].mxu0
  %3497 = vmatprep.mubr.bf16.mxu0 %v2575
  %3498 = vmatmul.mubr.bf16.gmra.mrb[0].mxu0 %v2341
  %v3499 = vpop.f32.mrb[0].mxu0
  %v3500 = vadd.f32 0.0, %v3499
  %v3501 = vpop.f32.mrb[0].mxu0
  %v3502 = vpop.f32.mrb[0].mxu0
  %v3503 = vadd.f32 0.0, %v3502
  %v3504 = vpop.f32.mrb[0].mxu0
  %3505 = vmatprep.mubr.bf16.mxu0 %v2578
  %3506 = vmatmul.mubr.bf16.gmra.mrb[0].mxu0 %v2343
  %v3507 = vpop.f32.mrb[0].mxu0
  %v3508 = vadd.f32 0.0, %v3507
  %v3509 = vpop.f32.mrb[0].mxu0
  %v3510 = vpop.f32.mrb[0].mxu0
  %v3511 = vadd.f32 0.0, %v3510
  %v3512 = vpop.f32.mrb[0].mxu0
  %3513 = vmatprep.mubr.bf16.mxu0 %v2581
  %3514 = vmatmul.mubr.bf16.gmra.mrb[0].mxu0 %v2345
  %v3515 = vpop.f32.mrb[0].mxu0
  %v3516 = vadd.f32 0.0, %v3515
  %v3517 = vpop.f32.mrb[0].mxu0
  %v3518 = vpop.f32.mrb[0].mxu0
  %v3519 = vadd.f32 0.0, %v3518
  %v3520 = vpop.f32.mrb[0].mxu0
  %3521 = vmatprep.mubr.bf16.mxu0 %v2584
  %3522 = vmatmul.mubr.bf16.gmra.mrb[0].mxu0 %v2347
  %v3523 = vpop.f32.mrb[0].mxu0
  %v3524 = vadd.f32 0.0, %v3523
  %v3525 = vpop.f32.mrb[0].mxu0
  %v3526 = vpop.f32.mrb[0].mxu0
  %v3527 = vadd.f32 0.0, %v3526
  %v3528 = vpop.f32.mrb[0].mxu0
  %3529 = vmatprep.mubr.bf16.mxu0 %v2587
  %3530 = vmatmul.mubr.bf16.gmra.mrb[0].mxu0 %v2349
  %v3531 = vpop.f32.mrb[0].mxu0
  %v3532 = vadd.f32 0.0, %v3531
  %v3533 = vpop.f32.mrb[0].mxu0
  %v3534 = vpop.f32.mrb[0].mxu0
  %v3535 = vadd.f32 0.0, %v3534
  %v3536 = vpop.f32.mrb[0].mxu0
  %3537 = vmatprep.mubr.bf16.mxu0 %v2590
  %3538 = vmatmul.mubr.bf16.gmra.mrb[0].mxu0 %v2351
  %v3539 = vpop.f32.mrb[0].mxu0
  %v3540 = vadd.f32 0.0, %v3539
  %v3541 = vpop.f32.mrb[0].mxu0
  %v3542 = vpop.f32.mrb[0].mxu0
  %v3543 = vadd.f32 0.0, %v3542
  %v3544 = vpop.f32.mrb[0].mxu0
  %3545 = vmatprep.mubr.bf16.mxu0 %v2593
  %3546 = vmatmul.mubr.bf16.gmra.mrb[0].mxu0 %v2353
  %v3547 = vpop.f32.mrb[0].mxu0
  %v3548 = vadd.f32 0.0, %v3547
  %v3549 = vpop.f32.mrb[0].mxu0
  %v3550 = vpop.f32.mrb[0].mxu0
  %v3551 = vadd.f32 0.0, %v3550
  %v3552 = vpop.f32.mrb[0].mxu0
  %3553 = vmatprep.mubr.bf16.mxu0 %v2596
  %3554 = vmatmul.mubr.bf16.gmra.mrb[0].mxu0 %v2355
  %v3555 = vpop.f32.mrb[0].mxu0
  %v3556 = vadd.f32 0.0, %v3555
  %v3557 = vpop.f32.mrb[0].mxu0
  %v3558 = vpop.f32.mrb[0].mxu0
  %v3559 = vadd.f32 0.0, %v3558
  %v3560 = vpop.f32.mrb[0].mxu0
  %3561 = vmatprep.mubr.bf16.mxu0 %v2599
  %3562 = vmatmul.mubr.bf16.gmra.mrb[0].mxu0 %v2357
  %v3563 = vpop.f32.mrb[0].mxu0
  %v3564 = vadd.f32 0.0, %v3563
  %v3565 = vpop.f32.mrb[0].mxu0
  %v3566 = vpop.f32.mrb[0].mxu0
  %v3567 = vadd.f32 0.0, %v3566
  %v3568 = vpop.f32.mrb[0].mxu0
  %3569 = vmatprep.mubr.bf16.mxu0 %v2602
  %3570 = vmatmul.mubr.bf16.gmra.mrb[0].mxu0 %v2359
  %v3571 = vpop.f32.mrb[0].mxu0
  %v3572 = vadd.f32 0.0, %v3571
  %v3573 = vpop.f32.mrb[0].mxu0
  %v3574 = vpop.f32.mrb[0].mxu0
  %v3575 = vadd.f32 0.0, %v3574
  %v3576 = vpop.f32.mrb[0].mxu0
  %3577 = vmatprep.mubr.bf16.mxu0 %v2605
  %3578 = vmatmul.mubr.bf16.gmra.mrb[0].mxu0 %v2361
  %v3579 = vpop.f32.mrb[0].mxu0
  %v3580 = vadd.f32 0.0, %v3579
  %v3581 = vpop.f32.mrb[0].mxu0
  %v3582 = vpop.f32.mrb[0].mxu0
  %v3583 = vadd.f32 0.0, %v3582
  %v3584 = vpop.f32.mrb[0].mxu0
  %3585 = vmatprep.mubr.bf16.mxu0 %v2608
  %3586 = vmatmul.mubr.bf16.gmra.mrb[0].mxu0 %v2363
  %v3587 = vpop.f32.mrb[0].mxu0
  %v3588 = vadd.f32 0.0, %v3587
  %v3589 = vpop.f32.mrb[0].mxu0
  %v3590 = vpop.f32.mrb[0].mxu0
  %v3591 = vadd.f32 0.0, %v3590
  %v3592 = vpop.f32.mrb[0].mxu0
  %3593 = vmatprep.mubr.bf16.mxu0 %v2611
  %3594 = vmatmul.mubr.bf16.gmra.mrb[0].mxu0 %v2365
  %v3595 = vpop.f32.mrb[0].mxu0
  %v3596 = vadd.f32 0.0, %v3595
  %v3597 = vpop.f32.mrb[0].mxu0
  %v3598 = vpop.f32.mrb[0].mxu0
  %v3599 = vadd.f32 0.0, %v3598
  %v3600 = vpop.f32.mrb[0].mxu0
  %3601 = vmatprep.mubr.bf16.mxu0 %v2614
  %3602 = vmatmul.mubr.bf16.gmra.mrb[0].mxu0 %v2367
  %v3603 = vpop.f32.mrb[0].mxu0
  %v3604 = vadd.f32 0.0, %v3603
  %v3605 = vpop.f32.mrb[0].mxu0
  %v3606 = vpop.f32.mrb[0].mxu0
  %v3607 = vadd.f32 0.0, %v3606
  %v3608 = vpop.f32.mrb[0].mxu0
  %3609 = vmatprep.mubr.bf16.mxu0 %v2617
  %3610 = vmatmul.mubr.bf16.gmra.mrb[0].mxu0 %v2369
  %v3611 = vpop.f32.mrb[0].mxu0
  %v3612 = vadd.f32 0.0, %v3611
  %v3613 = vpop.f32.mrb[0].mxu0
  %v3614 = vpop.f32.mrb[0].mxu0
  %v3615 = vadd.f32 0.0, %v3614
  %v3616 = vpop.f32.mrb[0].mxu0
  %3617 = vmatprep.mubr.bf16.mxu0 %v2620
  %3618 = vmatmul.mubr.bf16.gmra.mrb[0].mxu0 %v2371
  %v3619 = vpop.f32.mrb[0].mxu0
  %v3620 = vadd.f32 0.0, %v3619
  %v3621 = vpop.f32.mrb[0].mxu0
  %v3622 = vpop.f32.mrb[0].mxu0
  %v3623 = vadd.f32 0.0, %v3622
  %v3624 = vpop.f32.mrb[0].mxu0
  %3625 = vmatprep.mubr.bf16.mxu0 %v2623
  %3626 = vmatmul.mubr.bf16.gmra.mrb[0].mxu0 %v2373
  %v3627 = vpop.f32.mrb[0].mxu0
  %v3628 = vadd.f32 0.0, %v3627
  %v3629 = vpop.f32.mrb[0].mxu0
  %v3630 = vpop.f32.mrb[0].mxu0
  %v3631 = vadd.f32 0.0, %v3630
  %v3632 = vpop.f32.mrb[0].mxu0
  %3633 = vmatprep.mubr.bf16.mxu0 %v2626
  %3634 = vmatmul.mubr.bf16.gmra.mrb[0].mxu0 %v2375
  %v3635 = vpop.f32.mrb[0].mxu0
  %v3636 = vadd.f32 0.0, %v3635
  %v3637 = vpop.f32.mrb[0].mxu0
  %v3638 = vpop.f32.mrb[0].mxu0
  %v3639 = vadd.f32 0.0, %v3638
  %v3640 = vpop.f32.mrb[0].mxu0
  %3641 = vmatprep.mubr.bf16.mxu0 %v2629
  %3642 = vmatmul.mubr.bf16.gmra.mrb[0].mxu0 %v2377
  %v3643 = vpop.f32.mrb[0].mxu0
  %v3644 = vadd.f32 0.0, %v3643
  %v3645 = vpop.f32.mrb[0].mxu0
  %v3646 = vpop.f32.mrb[0].mxu0
  %v3647 = vadd.f32 0.0, %v3646
  %v3648 = vpop.f32.mrb[0].mxu0
  %3649 = vmatprep.mubr.bf16.mxu0 %v2632
  %3650 = vmatmul.mubr.bf16.gmra.mrb[0].mxu0 %v2379
  %v3651 = vpop.f32.mrb[0].mxu0
  %v3652 = vadd.f32 0.0, %v3651
  %v3653 = vpop.f32.mrb[0].mxu0
  %v3654 = vpop.f32.mrb[0].mxu0
  %v3655 = vadd.f32 0.0, %v3654
  %v3656 = vpop.f32.mrb[0].mxu0
  %3657 = vmatprep.mubr.bf16.mxu0 %v2635
  %3658 = vmatmul.mubr.bf16.gmra.mrb[0].mxu0 %v2381
  %v3659 = vpop.f32.mrb[0].mxu0
  %v3660 = vadd.f32 0.0, %v3659
  %v3661 = vpop.f32.mrb[0].mxu0
  %v3662 = vpop.f32.mrb[0].mxu0
  %v3663 = vadd.f32 0.0, %v3662
  %v3664 = vpop.f32.mrb[0].mxu0
  %3665 = vmatprep.mubr.bf16.mxu0 %v2638
  %3666 = vmatmul.mubr.bf16.gmra.mrb[0].mxu0 %v2383
  %v3667 = vpop.f32.mrb[0].mxu0
  %v3668 = vadd.f32 0.0, %v3667
  %v3669 = vpop.f32.mrb[0].mxu0
  %v3670 = vpop.f32.mrb[0].mxu0
  %v3671 = vadd.f32 0.0, %v3670
  %v3672 = vpop.f32.mrb[0].mxu0
  %3673 = vmatprep.mubr.bf16.mxu0 %v2641
  %3674 = vmatmul.mubr.bf16.gmra.mrb[0].mxu0 %v2385
  %v3675 = vpop.f32.mrb[0].mxu0
  %v3676 = vadd.f32 0.0, %v3675
  %v3677 = vpop.f32.mrb[0].mxu0
  %v3678 = vpop.f32.mrb[0].mxu0
  %v3679 = vadd.f32 0.0, %v3678
  %v3680 = vpop.f32.mrb[0].mxu0
  %3681 = vmatprep.mubr.bf16.mxu0 %v2644
  %3682 = vmatmul.mubr.bf16.gmra.mrb[0].mxu0 %v2387
  %v3683 = vpop.f32.mrb[0].mxu0
  %v3684 = vadd.f32 0.0, %v3683
  %v3685 = vpop.f32.mrb[0].mxu0
  %v3686 = vpop.f32.mrb[0].mxu0
  %v3687 = vadd.f32 0.0, %v3686
  %v3688 = vpop.f32.mrb[0].mxu0
  %3689 = vmatprep.mubr.bf16.mxu0 %v2647
  %3690 = vmatmul.mubr.bf16.gmra.mrb[0].mxu0 %v2389
  %v3691 = vpop.f32.mrb[0].mxu0
  %v3692 = vadd.f32 0.0, %v3691
  %v3693 = vpop.f32.mrb[0].mxu0
  %v3694 = vpop.f32.mrb[0].mxu0
  %v3695 = vadd.f32 0.0, %v3694
  %v3696 = vpop.f32.mrb[0].mxu0
  %3697 = vmatprep.mubr.bf16.mxu0 %v2650
  %3698 = vmatmul.mubr.bf16.gmra.mrb[0].mxu0 %v2391
  %v3699 = vpop.f32.mrb[0].mxu0
  %v3700 = vadd.f32 0.0, %v3699
  %v3701 = vpop.f32.mrb[0].mxu0
  %v3702 = vpop.f32.mrb[0].mxu0
  %v3703 = vadd.f32 0.0, %v3702
  %v3704 = vpop.f32.mrb[0].mxu0
  %3705 = vmatprep.mubr.bf16.mxu0 %v3423
  %3706 = vmatmul.mubr.bf16.gmra.mrb[0].mxu0 %v2393
  %v3707 = vpop.f32.mrb[0].mxu0
  %v3708 = vadd.f32 0.0, %v3707
  %v3709 = vpop.f32.mrb[0].mxu0
  %v3710 = vpop.f32.mrb[0].mxu0
  %v3711 = vadd.f32 0.0, %v3710
  %v3712 = vpop.f32.mrb[0].mxu0
  %3713 = vdwg.mxu0
  %v3714 = vadd.f32 %v3261, %v3460
  %v3715 = vadd.f32 %v3262, %v3463
  %v3716 = vadd.f32 %v3263, %v3468
  %v3717 = vadd.f32 %v3264, %v3471
  %v3718 = vadd.f32 %v3265, %v3476
  %v3719 = vadd.f32 %v3266, %v3479
  %v3720 = vadd.f32 %v3267, %v3484
  %v3721 = vadd.f32 %v3268, %v3487
  %v3722 = vadd.f32 %v3269, %v3492
  %v3723 = vadd.f32 %v3270, %v3495
  %v3724 = vadd.f32 %v3271, %v3500
  %v3725 = vadd.f32 %v3272, %v3503
  %v3726 = vadd.f32 %v3273, %v3508
  %v3727 = vadd.f32 %v3274, %v3511
  %v3728 = vadd.f32 %v3275, %v3516
  %v3729 = vadd.f32 %v3276, %v3519
  %v3730 = vadd.f32 %v3277, %v3524
  %v3731 = vadd.f32 %v3278, %v3527
  %v3732 = vadd.f32 %v3279, %v3532
  %v3733 = vadd.f32 %v3280, %v3535
  %v3734 = vadd.f32 %v3281, %v3540
  %v3735 = vadd.f32 %v3282, %v3543
  %v3736 = vadd.f32 %v3283, %v3548
  %v3737 = vadd.f32 %v3284, %v3551
  %v3738 = vadd.f32 %v3285, %v3556
  %v3739 = vadd.f32 %v3286, %v3559
  %v3740 = vadd.f32 %v3287, %v3564
  %v3741 = vadd.f32 %v3288, %v3567
  %v3742 = vadd.f32 %v3289, %v3572
  %v3743 = vadd.f32 %v3290, %v3575
  %v3744 = vadd.f32 %v3291, %v3580
  %v3745 = vadd.f32 %v3292, %v3583
  %v3746 = vadd.f32 %v3293, %v3588
  %v3747 = vadd.f32 %v3294, %v3591
  %v3748 = vadd.f32 %v3295, %v3596
  %v3749 = vadd.f32 %v3296, %v3599
  %v3750 = vadd.f32 %v3297, %v3604
  %v3751 = vadd.f32 %v3298, %v3607
  %v3752 = vadd.f32 %v3299, %v3612
  %v3753 = vadd.f32 %v3300, %v3615
  %v3754 = vadd.f32 %v3301, %v3620
  %v3755 = vadd.f32 %v3302, %v3623
  %v3756 = vadd.f32 %v3303, %v3628
  %v3757 = vadd.f32 %v3304, %v3631
  %v3758 = vadd.f32 %v3305, %v3636
  %v3759 = vadd.f32 %v3306, %v3639
  %v3760 = vadd.f32 %v3307, %v3644
  %v3761 = vadd.f32 %v3308, %v3647
  %v3762 = vadd.f32 %v3309, %v3652
  %v3763 = vadd.f32 %v3310, %v3655
  %v3764 = vadd.f32 %v3311, %v3660
  %v3765 = vadd.f32 %v3312, %v3663
  %v3766 = vadd.f32 %v3313, %v3668
  %v3767 = vadd.f32 %v3314, %v3671
  %v3768 = vadd.f32 %v3315, %v3676
  %v3769 = vadd.f32 %v3316, %v3679
  %v3770 = vadd.f32 %v3317, %v3684
  %v3771 = vadd.f32 %v3318, %v3687
  %v3772 = vadd.f32 %v3319, %v3692
  %v3773 = vadd.f32 %v3320, %v3695
  %v3774 = vadd.f32 %v3321, %v3700
  %v3775 = vadd.f32 %v3322, %v3703
  %v3776 = vadd.f32 %v3323, %v3708
  %v3777 = vadd.f32 %v3324, %v3711
  %s3778 = scalar_lea.vmem %s1, 1536
  %v3779 = vld [vmem:[%s3778] sm:$0xff]
  %v3780 = vld [vmem:[%s3778 + $0x8] sm:$0xff]
  %v3781 = vld [vmem:[%s3778 + $0x10] sm:$0xff]
  %v3782 = vld [vmem:[%s3778 + $0x18] sm:$0xff]
  %v3783 = vld [vmem:[%s3778 + $0x20] sm:$0xff]
  %v3784 = vld [vmem:[%s3778 + $0x28] sm:$0xff]
  %v3785 = vld [vmem:[%s3778 + $0x30] sm:$0xff]
  %v3786 = vld [vmem:[%s3778 + $0x38] sm:$0xff]
  %v3787 = vld [vmem:[%s3778 + $0x40] sm:$0xff]
  %v3788 = vld [vmem:[%s3778 + $0x48] sm:$0xff]
  %v3789 = vld [vmem:[%s3778 + $0x50] sm:$0xff]
  %v3790 = vld [vmem:[%s3778 + $0x58] sm:$0xff]
  %v3791 = vld [vmem:[%s3778 + $0x60] sm:$0xff]
  %v3792 = vld [vmem:[%s3778 + $0x68] sm:$0xff]
  %v3793 = vld [vmem:[%s3778 + $0x70] sm:$0xff]
  %v3794 = vld [vmem:[%s3778 + $0x78] sm:$0xff]
  %v3795 = vld [vmem:[%s3778 + $0x80] sm:$0xff]
  %v3796 = vld [vmem:[%s3778 + $0x88] sm:$0xff]
  %v3797 = vld [vmem:[%s3778 + $0x90] sm:$0xff]
  %v3798 = vld [vmem:[%s3778 + $0x98] sm:$0xff]
  %v3799 = vld [vmem:[%s3778 + $0xa0] sm:$0xff]
  %v3800 = vld [vmem:[%s3778 + $0xa8] sm:$0xff]
  %v3801 = vld [vmem:[%s3778 + $0xb0] sm:$0xff]
  %v3802 = vld [vmem:[%s3778 + $0xb8] sm:$0xff]
  %v3803 = vld [vmem:[%s3778 + $0xc0] sm:$0xff]
  %v3804 = vld [vmem:[%s3778 + $0xc8] sm:$0xff]
  %v3805 = vld [vmem:[%s3778 + $0xd0] sm:$0xff]
  %v3806 = vld [vmem:[%s3778 + $0xd8] sm:$0xff]
  %v3807 = vld [vmem:[%s3778 + $0xe0] sm:$0xff]
  %v3808 = vld [vmem:[%s3778 + $0xe8] sm:$0xff]
  %v3809 = vld [vmem:[%s3778 + $0xf0] sm:$0xff]
  %v3810 = vld [vmem:[%s3778 + $0xf8] sm:$0xff]
  %v3811 = vld [vmem:[%s3778 + $0x100] sm:$0xff]
  %v3812 = vld [vmem:[%s3778 + $0x108] sm:$0xff]
  %v3813 = vld [vmem:[%s3778 + $0x110] sm:$0xff]
  %v3814 = vld [vmem:[%s3778 + $0x118] sm:$0xff]
  %v3815 = vld [vmem:[%s3778 + $0x120] sm:$0xff]
  %v3816 = vld [vmem:[%s3778 + $0x128] sm:$0xff]
  %v3817 = vld [vmem:[%s3778 + $0x130] sm:$0xff]
  %v3818 = vld [vmem:[%s3778 + $0x138] sm:$0xff]
  %v3819 = vld [vmem:[%s3778 + $0x140] sm:$0xff]
  %v3820 = vld [vmem:[%s3778 + $0x148] sm:$0xff]
  %v3821 = vld [vmem:[%s3778 + $0x150] sm:$0xff]
  %v3822 = vld [vmem:[%s3778 + $0x158] sm:$0xff]
  %v3823 = vld [vmem:[%s3778 + $0x160] sm:$0xff]
  %v3824 = vld [vmem:[%s3778 + $0x168] sm:$0xff]
  %v3825 = vld [vmem:[%s3778 + $0x170] sm:$0xff]
  %v3826 = vld [vmem:[%s3778 + $0x178] sm:$0xff]
  %v3827 = vld [vmem:[%s3778 + $0x180] sm:$0xff]
  %v3828 = vld [vmem:[%s3778 + $0x188] sm:$0xff]
  %v3829 = vld [vmem:[%s3778 + $0x190] sm:$0xff]
  %v3830 = vld [vmem:[%s3778 + $0x198] sm:$0xff]
  %v3831 = vld [vmem:[%s3778 + $0x1a0] sm:$0xff]
  %v3832 = vld [vmem:[%s3778 + $0x1a8] sm:$0xff]
  %v3833 = vld [vmem:[%s3778 + $0x1b0] sm:$0xff]
  %v3834 = vld [vmem:[%s3778 + $0x1b8] sm:$0xff]
  %v3835 = vld [vmem:[%s3778 + $0x1c0] sm:$0xff]
  %v3836 = vld [vmem:[%s3778 + $0x1c8] sm:$0xff]
  %v3837 = vld [vmem:[%s3778 + $0x1d0] sm:$0xff]
  %v3838 = vld [vmem:[%s3778 + $0x1d8] sm:$0xff]
  %v3839 = vld [vmem:[%s3778 + $0x1e0] sm:$0xff]
  %v3840 = vld [vmem:[%s3778 + $0x1e8] sm:$0xff]
  %v3841 = vld [vmem:[%s3778 + $0x1f0] sm:$0xff]
  %v3842 = vld [vmem:[%s3778 + $0x1f8] sm:$0xff]
  %s3843 = scalar_lea.vmem %s4, 192
  %v3844 = vld [vmem:[%s3843] sm:$0xf]
  %v3845 = vld [vmem:[%s3843 + $0x4] sm:$0xf]
  %v3846 = vld [vmem:[%s3843 + $0x8] sm:$0xf]
  %v3847 = vld [vmem:[%s3843 + $0xc] sm:$0xf]
  %v3848 = vld [vmem:[%s3843 + $0x10] sm:$0xf]
  %v3849 = vld [vmem:[%s3843 + $0x14] sm:$0xf]
  %v3850 = vld [vmem:[%s3843 + $0x18] sm:$0xf]
  %v3851 = vld [vmem:[%s3843 + $0x1c] sm:$0xf]
  %v3852 = vld [vmem:[%s3843 + $0x20] sm:$0xf]
  %v3853 = vld [vmem:[%s3843 + $0x24] sm:$0xf]
  %v3854 = vld [vmem:[%s3843 + $0x28] sm:$0xf]
  %v3855 = vld [vmem:[%s3843 + $0x2c] sm:$0xf]
  %v3856 = vld [vmem:[%s3843 + $0x30] sm:$0xf]
  %v3857 = vld [vmem:[%s3843 + $0x34] sm:$0xf]
  %v3858 = vld [vmem:[%s3843 + $0x38] sm:$0xf]
  %v3859 = vld [vmem:[%s3843 + $0x3c] sm:$0xf]
  %v3860 = vld [vmem:[%s3843 + $0x40] sm:$0xf]
  %v3861 = vld [vmem:[%s3843 + $0x44] sm:$0xf]
  %v3862 = vld [vmem:[%s3843 + $0x48] sm:$0xf]
  %v3863 = vld [vmem:[%s3843 + $0x4c] sm:$0xf]
  %v3864 = vld [vmem:[%s3843 + $0x50] sm:$0xf]
  %v3865 = vld [vmem:[%s3843 + $0x54] sm:$0xf]
  %v3866 = vld [vmem:[%s3843 + $0x58] sm:$0xf]
  %v3867 = vld [vmem:[%s3843 + $0x5c] sm:$0xf]
  %v3892 = vunpack.c.l.b16 %v3844
  %v3893 = vunpack.c.l.b16 %v3845
  %v3894 = vunpack.c.l.b16 %v3846
  %v3895 = vunpack.c.l.b16 %v3847
  %v3896 = vunpack.c.l.b16 %v3848
  %v3897 = vunpack.c.l.b16 %v3849
  %v3898 = vunpack.c.l.b16 %v3850
  %v3899 = vunpack.c.l.b16 %v3851
  %v3900 = vunpack.c.l.b16 %v3852
  %v3901 = vunpack.c.l.b16 %v3853
  %v3902 = vunpack.c.l.b16 %v3854
  %v3903 = vunpack.c.l.b16 %v3855
  %v3904 = vunpack.c.l.b16 %v3856
  %v3905 = vunpack.c.l.b16 %v3857
  %v3906 = vunpack.c.l.b16 %v3858
  %v3907 = vunpack.c.l.b16 %v3859
  %v3908 = vunpack.c.l.b16 %v3860
  %v3909 = vunpack.c.l.b16 %v3861
  %v3910 = vunpack.c.l.b16 %v3862
  %v3911 = vunpack.c.l.b16 %v3863
  %v3912 = vunpack.c.l.b16 %v3864
  %v3913 = vunpack.c.l.b16 %v3865
  %v3914 = vunpack.c.l.b16 %v3866
  %v3915 = vunpack.c.l.b16 %v3867
  %v3916 = vpack.c.b16 %v3893, %v3892
  %v3917 = vpack.c.b16 %v3895, %v3894
  %v3918 = vpack.c.b16 %v3897, %v3896
  %v3919 = vpack.c.b16 %v3899, %v3898
  %v3920 = vpack.c.b16 %v3901, %v3900
  %v3921 = vpack.c.b16 %v3903, %v3902
  %v3922 = vpack.c.b16 %v3905, %v3904
  %v3923 = vpack.c.b16 %v3907, %v3906
  %v3924 = vpack.c.b16 %v3909, %v3908
  %v3925 = vpack.c.b16 %v3911, %v3910
  %v3926 = vpack.c.b16 %v3913, %v3912
  %v3927 = vpack.c.b16 %v3915, %v3914
  %3940 = vmatprep.subr.bf16.mxu0 0
  %3941 = vmatpush1.bf16.msra.mxu0 %v3916
  %3942 = vmatprep.subr.bf16.mxu0 0
  %3943 = vmatpush1.bf16.msra.mxu0 %v3917
  %3944 = vmatprep.subr.bf16.mxu0 0
  %3945 = vmatpush1.bf16.msra.mxu0 %v3918
  %3946 = vmatprep.subr.bf16.mxu0 0
  %3947 = vmatpush1.bf16.msra.mxu0 %v3919
  %3948 = vmatprep.subr.bf16.mxu0 0
  %3949 = vmatpush1.bf16.msra.mxu0 %v3920
  %3950 = vmatprep.subr.bf16.mxu0 0
  %3951 = vmatpush1.bf16.msra.mxu0 %v3921
  %3952 = vmatprep.subr.bf16.mxu0 0
  %3953 = vmatpush1.bf16.msra.mxu0 %v3922
  %3954 = vmatprep.subr.bf16.mxu0 0
  %3955 = vmatpush1.bf16.msra.mxu0 %v3923
  %3956 = vmatprep.subr.bf16.mxu0 0
  %3957 = vmatpush1.bf16.msra.mxu0 %v3924
  %3958 = vmatprep.subr.bf16.mxu0 0
  %3959 = vmatpush1.bf16.msra.mxu0 %v3925
  %3960 = vmatprep.subr.bf16.mxu0 0
  %3961 = vmatpush1.bf16.msra.mxu0 %v3926
  %3962 = vmatprep.subr.bf16.mxu0 0
  %3963 = vmatpush1.bf16.msra.mxu0 %v3927
  %3964 = vmatprep.subr.bf16.mxu0 0
  %3965 = vmatpush1.bf16.msra.mxu0 0
  %3966 = vmatprep.subr.bf16.mxu0 0
  %3967 = vmatpush1.bf16.msra.mxu0 0
  %3968 = vmatprep.subr.bf16.mxu0 0
  %3969 = vmatpush1.bf16.msra.mxu0 0
  %3970 = vmatprep.subr.bf16.mxu0 0
  %3971 = vmatpush1.bf16.msra.mxu0 0
  %3972 = vmatprep.mubr.bf16.mxu0 %v2563
  %3973 = vmatmul.mubr.bf16.gmra.mrb[0].mxu0 %v2333
  %v3974 = vpop.f32.mrb[0].mxu0
  %v3975 = vadd.f32 0.0, %v3974
  %v3976 = vpop.f32.mrb[0].mxu0
  %v3977 = vpop.f32.mrb[0].mxu0
  %v3978 = vadd.f32 0.0, %v3977
  %v3979 = vpop.f32.mrb[0].mxu0
  %3980 = vmatprep.mubr.bf16.mxu0 %v2566
  %3981 = vmatmul.mubr.bf16.gmra.mrb[0].mxu0 %v2335
  %v3982 = vpop.f32.mrb[0].mxu0
  %v3983 = vadd.f32 0.0, %v3982
  %v3984 = vpop.f32.mrb[0].mxu0
  %v3985 = vpop.f32.mrb[0].mxu0
  %v3986 = vadd.f32 0.0, %v3985
  %v3987 = vpop.f32.mrb[0].mxu0
  %3988 = vmatprep.mubr.bf16.mxu0 %v2569
  %3989 = vmatmul.mubr.bf16.gmra.mrb[0].mxu0 %v2337
  %v3990 = vpop.f32.mrb[0].mxu0
  %v3991 = vadd.f32 0.0, %v3990
  %v3992 = vpop.f32.mrb[0].mxu0
  %v3993 = vpop.f32.mrb[0].mxu0
  %v3994 = vadd.f32 0.0, %v3993
  %v3995 = vpop.f32.mrb[0].mxu0
  %3996 = vmatprep.mubr.bf16.mxu0 %v2572
  %3997 = vmatmul.mubr.bf16.gmra.mrb[0].mxu0 %v2339
  %v3998 = vpop.f32.mrb[0].mxu0
  %v3999 = vadd.f32 0.0, %v3998
  %v4000 = vpop.f32.mrb[0].mxu0
  %v4001 = vpop.f32.mrb[0].mxu0
  %v4002 = vadd.f32 0.0, %v4001
  %v4003 = vpop.f32.mrb[0].mxu0
  %4004 = vmatprep.mubr.bf16.mxu0 %v2575
  %4005 = vmatmul.mubr.bf16.gmra.mrb[0].mxu0 %v2341
  %v4006 = vpop.f32.mrb[0].mxu0
  %v4007 = vadd.f32 0.0, %v4006
  %v4008 = vpop.f32.mrb[0].mxu0
  %v4009 = vpop.f32.mrb[0].mxu0
  %v4010 = vadd.f32 0.0, %v4009
  %v4011 = vpop.f32.mrb[0].mxu0
  %4012 = vmatprep.mubr.bf16.mxu0 %v2578
  %4013 = vmatmul.mubr.bf16.gmra.mrb[0].mxu0 %v2343
  %v4014 = vpop.f32.mrb[0].mxu0
  %v4015 = vadd.f32 0.0, %v4014
  %v4016 = vpop.f32.mrb[0].mxu0
  %v4017 = vpop.f32.mrb[0].mxu0
  %v4018 = vadd.f32 0.0, %v4017
  %v4019 = vpop.f32.mrb[0].mxu0
  %4020 = vmatprep.mubr.bf16.mxu0 %v2581
  %4021 = vmatmul.mubr.bf16.gmra.mrb[0].mxu0 %v2345
  %v4022 = vpop.f32.mrb[0].mxu0
  %v4023 = vadd.f32 0.0, %v4022
  %v4024 = vpop.f32.mrb[0].mxu0
  %v4025 = vpop.f32.mrb[0].mxu0
  %v4026 = vadd.f32 0.0, %v4025
  %v4027 = vpop.f32.mrb[0].mxu0
  %4028 = vmatprep.mubr.bf16.mxu0 %v2584
  %4029 = vmatmul.mubr.bf16.gmra.mrb[0].mxu0 %v2347
  %v4030 = vpop.f32.mrb[0].mxu0
  %v4031 = vadd.f32 0.0, %v4030
  %v4032 = vpop.f32.mrb[0].mxu0
  %v4033 = vpop.f32.mrb[0].mxu0
  %v4034 = vadd.f32 0.0, %v4033
  %v4035 = vpop.f32.mrb[0].mxu0
  %4036 = vmatprep.mubr.bf16.mxu0 %v2587
  %4037 = vmatmul.mubr.bf16.gmra.mrb[0].mxu0 %v2349
  %v4038 = vpop.f32.mrb[0].mxu0
  %v4039 = vadd.f32 0.0, %v4038
  %v4040 = vpop.f32.mrb[0].mxu0
  %v4041 = vpop.f32.mrb[0].mxu0
  %v4042 = vadd.f32 0.0, %v4041
  %v4043 = vpop.f32.mrb[0].mxu0
  %4044 = vmatprep.mubr.bf16.mxu0 %v2590
  %4045 = vmatmul.mubr.bf16.gmra.mrb[0].mxu0 %v2351
  %v4046 = vpop.f32.mrb[0].mxu0
  %v4047 = vadd.f32 0.0, %v4046
  %v4048 = vpop.f32.mrb[0].mxu0
  %v4049 = vpop.f32.mrb[0].mxu0
  %v4050 = vadd.f32 0.0, %v4049
  %v4051 = vpop.f32.mrb[0].mxu0
  %4052 = vmatprep.mubr.bf16.mxu0 %v2593
  %4053 = vmatmul.mubr.bf16.gmra.mrb[0].mxu0 %v2353
  %v4054 = vpop.f32.mrb[0].mxu0
  %v4055 = vadd.f32 0.0, %v4054
  %v4056 = vpop.f32.mrb[0].mxu0
  %v4057 = vpop.f32.mrb[0].mxu0
  %v4058 = vadd.f32 0.0, %v4057
  %v4059 = vpop.f32.mrb[0].mxu0
  %4060 = vmatprep.mubr.bf16.mxu0 %v2596
  %4061 = vmatmul.mubr.bf16.gmra.mrb[0].mxu0 %v2355
  %v4062 = vpop.f32.mrb[0].mxu0
  %v4063 = vadd.f32 0.0, %v4062
  %v4064 = vpop.f32.mrb[0].mxu0
  %v4065 = vpop.f32.mrb[0].mxu0
  %v4066 = vadd.f32 0.0, %v4065
  %v4067 = vpop.f32.mrb[0].mxu0
  %4068 = vmatprep.mubr.bf16.mxu0 %v2599
  %4069 = vmatmul.mubr.bf16.gmra.mrb[0].mxu0 %v2357
  %v4070 = vpop.f32.mrb[0].mxu0
  %v4071 = vadd.f32 0.0, %v4070
  %v4072 = vpop.f32.mrb[0].mxu0
  %v4073 = vpop.f32.mrb[0].mxu0
  %v4074 = vadd.f32 0.0, %v4073
  %v4075 = vpop.f32.mrb[0].mxu0
  %4076 = vmatprep.mubr.bf16.mxu0 %v2602
  %4077 = vmatmul.mubr.bf16.gmra.mrb[0].mxu0 %v2359
  %v4078 = vpop.f32.mrb[0].mxu0
  %v4079 = vadd.f32 0.0, %v4078
  %v4080 = vpop.f32.mrb[0].mxu0
  %v4081 = vpop.f32.mrb[0].mxu0
  %v4082 = vadd.f32 0.0, %v4081
  %v4083 = vpop.f32.mrb[0].mxu0
  %4084 = vmatprep.mubr.bf16.mxu0 %v2605
  %4085 = vmatmul.mubr.bf16.gmra.mrb[0].mxu0 %v2361
  %v4086 = vpop.f32.mrb[0].mxu0
  %v4087 = vadd.f32 0.0, %v4086
  %v4088 = vpop.f32.mrb[0].mxu0
  %v4089 = vpop.f32.mrb[0].mxu0
  %v4090 = vadd.f32 0.0, %v4089
  %v4091 = vpop.f32.mrb[0].mxu0
  %4092 = vmatprep.mubr.bf16.mxu0 %v2608
  %4093 = vmatmul.mubr.bf16.gmra.mrb[0].mxu0 %v2363
  %v4094 = vpop.f32.mrb[0].mxu0
  %v4095 = vadd.f32 0.0, %v4094
  %v4096 = vpop.f32.mrb[0].mxu0
  %v4097 = vpop.f32.mrb[0].mxu0
  %v4098 = vadd.f32 0.0, %v4097
  %v4099 = vpop.f32.mrb[0].mxu0
  %4100 = vmatprep.mubr.bf16.mxu0 %v2611
  %4101 = vmatmul.mubr.bf16.gmra.mrb[0].mxu0 %v2365
  %v4102 = vpop.f32.mrb[0].mxu0
  %v4103 = vadd.f32 0.0, %v4102
  %v4104 = vpop.f32.mrb[0].mxu0
  %v4105 = vpop.f32.mrb[0].mxu0
  %v4106 = vadd.f32 0.0, %v4105
  %v4107 = vpop.f32.mrb[0].mxu0
  %4108 = vmatprep.mubr.bf16.mxu0 %v2614
  %4109 = vmatmul.mubr.bf16.gmra.mrb[0].mxu0 %v2367
  %v4110 = vpop.f32.mrb[0].mxu0
  %v4111 = vadd.f32 0.0, %v4110
  %v4112 = vpop.f32.mrb[0].mxu0
  %v4113 = vpop.f32.mrb[0].mxu0
  %v4114 = vadd.f32 0.0, %v4113
  %v4115 = vpop.f32.mrb[0].mxu0
  %4116 = vmatprep.mubr.bf16.mxu0 %v2617
  %4117 = vmatmul.mubr.bf16.gmra.mrb[0].mxu0 %v2369
  %v4118 = vpop.f32.mrb[0].mxu0
  %v4119 = vadd.f32 0.0, %v4118
  %v4120 = vpop.f32.mrb[0].mxu0
  %v4121 = vpop.f32.mrb[0].mxu0
  %v4122 = vadd.f32 0.0, %v4121
  %v4123 = vpop.f32.mrb[0].mxu0
  %4124 = vmatprep.mubr.bf16.mxu0 %v2620
  %4125 = vmatmul.mubr.bf16.gmra.mrb[0].mxu0 %v2371
  %v4126 = vpop.f32.mrb[0].mxu0
  %v4127 = vadd.f32 0.0, %v4126
  %v4128 = vpop.f32.mrb[0].mxu0
  %v4129 = vpop.f32.mrb[0].mxu0
  %v4130 = vadd.f32 0.0, %v4129
  %v4131 = vpop.f32.mrb[0].mxu0
  %4132 = vmatprep.mubr.bf16.mxu0 %v2623
  %4133 = vmatmul.mubr.bf16.gmra.mrb[0].mxu0 %v2373
  %v4134 = vpop.f32.mrb[0].mxu0
  %v4135 = vadd.f32 0.0, %v4134
  %v4136 = vpop.f32.mrb[0].mxu0
  %v4137 = vpop.f32.mrb[0].mxu0
  %v4138 = vadd.f32 0.0, %v4137
  %v4139 = vpop.f32.mrb[0].mxu0
  %4140 = vmatprep.mubr.bf16.mxu0 %v2626
  %4141 = vmatmul.mubr.bf16.gmra.mrb[0].mxu0 %v2375
  %v4142 = vpop.f32.mrb[0].mxu0
  %v4143 = vadd.f32 0.0, %v4142
  %v4144 = vpop.f32.mrb[0].mxu0
  %v4145 = vpop.f32.mrb[0].mxu0
  %v4146 = vadd.f32 0.0, %v4145
  %v4147 = vpop.f32.mrb[0].mxu0
  %4148 = vmatprep.mubr.bf16.mxu0 %v2629
  %4149 = vmatmul.mubr.bf16.gmra.mrb[0].mxu0 %v2377
  %v4150 = vpop.f32.mrb[0].mxu0
  %v4151 = vadd.f32 0.0, %v4150
  %v4152 = vpop.f32.mrb[0].mxu0
  %v4153 = vpop.f32.mrb[0].mxu0
  %v4154 = vadd.f32 0.0, %v4153
  %v4155 = vpop.f32.mrb[0].mxu0
  %4156 = vmatprep.mubr.bf16.mxu0 %v2632
  %4157 = vmatmul.mubr.bf16.gmra.mrb[0].mxu0 %v2379
  %v4158 = vpop.f32.mrb[0].mxu0
  %v4159 = vadd.f32 0.0, %v4158
  %v4160 = vpop.f32.mrb[0].mxu0
  %v4161 = vpop.f32.mrb[0].mxu0
  %v4162 = vadd.f32 0.0, %v4161
  %v4163 = vpop.f32.mrb[0].mxu0
  %4164 = vmatprep.mubr.bf16.mxu0 %v2635
  %4165 = vmatmul.mubr.bf16.gmra.mrb[0].mxu0 %v2381
  %v4166 = vpop.f32.mrb[0].mxu0
  %v4167 = vadd.f32 0.0, %v4166
  %v4168 = vpop.f32.mrb[0].mxu0
  %v4169 = vpop.f32.mrb[0].mxu0
  %v4170 = vadd.f32 0.0, %v4169
  %v4171 = vpop.f32.mrb[0].mxu0
  %4172 = vmatprep.mubr.bf16.mxu0 %v2638
  %4173 = vmatmul.mubr.bf16.gmra.mrb[0].mxu0 %v2383
  %v4174 = vpop.f32.mrb[0].mxu0
  %v4175 = vadd.f32 0.0, %v4174
  %v4176 = vpop.f32.mrb[0].mxu0
  %v4177 = vpop.f32.mrb[0].mxu0
  %v4178 = vadd.f32 0.0, %v4177
  %v4179 = vpop.f32.mrb[0].mxu0
  %4180 = vmatprep.mubr.bf16.mxu0 %v2641
  %4181 = vmatmul.mubr.bf16.gmra.mrb[0].mxu0 %v2385
  %v4182 = vpop.f32.mrb[0].mxu0
  %v4183 = vadd.f32 0.0, %v4182
  %v4184 = vpop.f32.mrb[0].mxu0
  %v4185 = vpop.f32.mrb[0].mxu0
  %v4186 = vadd.f32 0.0, %v4185
  %v4187 = vpop.f32.mrb[0].mxu0
  %4188 = vmatprep.mubr.bf16.mxu0 %v2644
  %4189 = vmatmul.mubr.bf16.gmra.mrb[0].mxu0 %v2387
  %v4190 = vpop.f32.mrb[0].mxu0
  %v4191 = vadd.f32 0.0, %v4190
  %v4192 = vpop.f32.mrb[0].mxu0
  %v4193 = vpop.f32.mrb[0].mxu0
  %v4194 = vadd.f32 0.0, %v4193
  %v4195 = vpop.f32.mrb[0].mxu0
  %4196 = vmatprep.mubr.bf16.mxu0 %v2647
  %4197 = vmatmul.mubr.bf16.gmra.mrb[0].mxu0 %v2389
  %v4198 = vpop.f32.mrb[0].mxu0
  %v4199 = vadd.f32 0.0, %v4198
  %v4200 = vpop.f32.mrb[0].mxu0
  %v4201 = vpop.f32.mrb[0].mxu0
  %v4202 = vadd.f32 0.0, %v4201
  %v4203 = vpop.f32.mrb[0].mxu0
  %4204 = vmatprep.mubr.bf16.mxu0 %v2650
  %4205 = vmatmul.mubr.bf16.gmra.mrb[0].mxu0 %v2391
  %v4206 = vpop.f32.mrb[0].mxu0
  %v4207 = vadd.f32 0.0, %v4206
  %v4208 = vpop.f32.mrb[0].mxu0
  %v4209 = vpop.f32.mrb[0].mxu0
  %v4210 = vadd.f32 0.0, %v4209
  %v4211 = vpop.f32.mrb[0].mxu0
  %4212 = vmatprep.mubr.bf16.mxu0 %v3423
  %4213 = vmatmul.mubr.bf16.gmra.mrb[0].mxu0 %v2393
  %v4214 = vpop.f32.mrb[0].mxu0
  %v4215 = vadd.f32 0.0, %v4214
  %v4216 = vpop.f32.mrb[0].mxu0
  %v4217 = vpop.f32.mrb[0].mxu0
  %v4218 = vadd.f32 0.0, %v4217
  %v4219 = vpop.f32.mrb[0].mxu0
  %4220 = vmatprep.mubr.bf16.mxu0 %v2557
  %4221 = vmatmul.mubr.bf16.gmra.mrb[0].mxu0 0
  %v4222 = vpop.f32.mrb[0].mxu0
  %v4223 = vadd.f32 0.0, %v4222
  %v4224 = vpop.f32.mrb[0].mxu0
  %v4225 = vpop.f32.mrb[0].mxu0
  %v4226 = vadd.f32 0.0, %v4225
  %v4227 = vpop.f32.mrb[0].mxu0
  %4228 = vdwg.mxu0
  %4230 = vset.pattern.permute.xlu0 0
  %4231 = vperm.xlu0 %4230, %v3779
  %v4232 = vpop.permute.xlu0 %4231
  %4235 = vset.pattern.permute.xlu0 0
  %4236 = vperm.xlu0 %4235, %v3780
  %v4237 = vpop.permute.xlu0 %4236
  %4240 = vset.pattern.permute.xlu0 0
  %4241 = vperm.xlu0 %4240, %v3781
  %v4242 = vpop.permute.xlu0 %4241
  %4245 = vset.pattern.permute.xlu0 0
  %4246 = vperm.xlu0 %4245, %v3782
  %v4247 = vpop.permute.xlu0 %4246
  %4250 = vset.pattern.permute.xlu0 0
  %4251 = vperm.xlu0 %4250, %v3783
  %v4252 = vpop.permute.xlu0 %4251
  %4255 = vset.pattern.permute.xlu0 0
  %4256 = vperm.xlu0 %4255, %v3784
  %v4257 = vpop.permute.xlu0 %4256
  %4260 = vset.pattern.permute.xlu0 0
  %4261 = vperm.xlu0 %4260, %v3785
  %v4262 = vpop.permute.xlu0 %4261
  %4265 = vset.pattern.permute.xlu0 0
  %4266 = vperm.xlu0 %4265, %v3786
  %v4267 = vpop.permute.xlu0 %4266
  %4270 = vset.pattern.permute.xlu0 0
  %4271 = vperm.xlu0 %4270, %v3787
  %v4272 = vpop.permute.xlu0 %4271
  %4275 = vset.pattern.permute.xlu0 0
  %4276 = vperm.xlu0 %4275, %v3788
  %v4277 = vpop.permute.xlu0 %4276
  %4280 = vset.pattern.permute.xlu0 0
  %4281 = vperm.xlu0 %4280, %v3789
  %v4282 = vpop.permute.xlu0 %4281
  %4285 = vset.pattern.permute.xlu0 0
  %4286 = vperm.xlu0 %4285, %v3790
  %v4287 = vpop.permute.xlu0 %4286
  %4290 = vset.pattern.permute.xlu0 0
  %4291 = vperm.xlu0 %4290, %v3791
  %v4292 = vpop.permute.xlu0 %4291
  %4295 = vset.pattern.permute.xlu0 0
  %4296 = vperm.xlu0 %4295, %v3792
  %v4297 = vpop.permute.xlu0 %4296
  %4300 = vset.pattern.permute.xlu0 0
  %4301 = vperm.xlu0 %4300, %v3793
  %v4302 = vpop.permute.xlu0 %4301
  %4305 = vset.pattern.permute.xlu0 0
  %4306 = vperm.xlu0 %4305, %v3794
  %v4307 = vpop.permute.xlu0 %4306
  %4310 = vset.pattern.permute.xlu0 0
  %4311 = vperm.xlu0 %4310, %v3795
  %v4312 = vpop.permute.xlu0 %4311
  %4315 = vset.pattern.permute.xlu0 0
  %4316 = vperm.xlu0 %4315, %v3796
  %v4317 = vpop.permute.xlu0 %4316
  %4320 = vset.pattern.permute.xlu0 0
  %4321 = vperm.xlu0 %4320, %v3797
  %v4322 = vpop.permute.xlu0 %4321
  %4325 = vset.pattern.permute.xlu0 0
  %4326 = vperm.xlu0 %4325, %v3798
  %v4327 = vpop.permute.xlu0 %4326
  %4330 = vset.pattern.permute.xlu0 0
  %4331 = vperm.xlu0 %4330, %v3799
  %v4332 = vpop.permute.xlu0 %4331
  %4335 = vset.pattern.permute.xlu0 0
  %4336 = vperm.xlu0 %4335, %v3800
  %v4337 = vpop.permute.xlu0 %4336
  %4340 = vset.pattern.permute.xlu0 0
  %4341 = vperm.xlu0 %4340, %v3801
  %v4342 = vpop.permute.xlu0 %4341
  %4345 = vset.pattern.permute.xlu0 0
  %4346 = vperm.xlu0 %4345, %v3802
  %v4347 = vpop.permute.xlu0 %4346
  %4350 = vset.pattern.permute.xlu0 0
  %4351 = vperm.xlu0 %4350, %v3803
  %v4352 = vpop.permute.xlu0 %4351
  %4355 = vset.pattern.permute.xlu0 0
  %4356 = vperm.xlu0 %4355, %v3804
  %v4357 = vpop.permute.xlu0 %4356
  %4360 = vset.pattern.permute.xlu0 0
  %4361 = vperm.xlu0 %4360, %v3805
  %v4362 = vpop.permute.xlu0 %4361
  %4365 = vset.pattern.permute.xlu0 0
  %4366 = vperm.xlu0 %4365, %v3806
  %v4367 = vpop.permute.xlu0 %4366
  %4370 = vset.pattern.permute.xlu0 0
  %4371 = vperm.xlu0 %4370, %v3807
  %v4372 = vpop.permute.xlu0 %4371
  %4375 = vset.pattern.permute.xlu0 0
  %4376 = vperm.xlu0 %4375, %v3808
  %v4377 = vpop.permute.xlu0 %4376
  %4380 = vset.pattern.permute.xlu0 0
  %4381 = vperm.xlu0 %4380, %v3809
  %v4382 = vpop.permute.xlu0 %4381
  %4385 = vset.pattern.permute.xlu0 0
  %4386 = vperm.xlu0 %4385, %v3810
  %v4387 = vpop.permute.xlu0 %4386
  %4390 = vset.pattern.permute.xlu0 0
  %4391 = vperm.xlu0 %4390, %v3811
  %v4392 = vpop.permute.xlu0 %4391
  %4395 = vset.pattern.permute.xlu0 0
  %4396 = vperm.xlu0 %4395, %v3812
  %v4397 = vpop.permute.xlu0 %4396
  %4400 = vset.pattern.permute.xlu0 0
  %4401 = vperm.xlu0 %4400, %v3813
  %v4402 = vpop.permute.xlu0 %4401
  %4405 = vset.pattern.permute.xlu0 0
  %4406 = vperm.xlu0 %4405, %v3814
  %v4407 = vpop.permute.xlu0 %4406
  %4410 = vset.pattern.permute.xlu0 0
  %4411 = vperm.xlu0 %4410, %v3815
  %v4412 = vpop.permute.xlu0 %4411
  %4415 = vset.pattern.permute.xlu0 0
  %4416 = vperm.xlu0 %4415, %v3816
  %v4417 = vpop.permute.xlu0 %4416
  %4420 = vset.pattern.permute.xlu0 0
  %4421 = vperm.xlu0 %4420, %v3817
  %v4422 = vpop.permute.xlu0 %4421
  %4425 = vset.pattern.permute.xlu0 0
  %4426 = vperm.xlu0 %4425, %v3818
  %v4427 = vpop.permute.xlu0 %4426
  %4430 = vset.pattern.permute.xlu0 0
  %4431 = vperm.xlu0 %4430, %v3819
  %v4432 = vpop.permute.xlu0 %4431
  %4435 = vset.pattern.permute.xlu0 0
  %4436 = vperm.xlu0 %4435, %v3820
  %v4437 = vpop.permute.xlu0 %4436
  %4440 = vset.pattern.permute.xlu0 0
  %4441 = vperm.xlu0 %4440, %v3821
  %v4442 = vpop.permute.xlu0 %4441
  %4445 = vset.pattern.permute.xlu0 0
  %4446 = vperm.xlu0 %4445, %v3822
  %v4447 = vpop.permute.xlu0 %4446
  %4450 = vset.pattern.permute.xlu0 0
  %4451 = vperm.xlu0 %4450, %v3823
  %v4452 = vpop.permute.xlu0 %4451
  %4455 = vset.pattern.permute.xlu0 0
  %4456 = vperm.xlu0 %4455, %v3824
  %v4457 = vpop.permute.xlu0 %4456
  %4460 = vset.pattern.permute.xlu0 0
  %4461 = vperm.xlu0 %4460, %v3825
  %v4462 = vpop.permute.xlu0 %4461
  %4465 = vset.pattern.permute.xlu0 0
  %4466 = vperm.xlu0 %4465, %v3826
  %v4467 = vpop.permute.xlu0 %4466
  %4470 = vset.pattern.permute.xlu0 0
  %4471 = vperm.xlu0 %4470, %v3827
  %v4472 = vpop.permute.xlu0 %4471
  %4475 = vset.pattern.permute.xlu0 0
  %4476 = vperm.xlu0 %4475, %v3828
  %v4477 = vpop.permute.xlu0 %4476
  %4480 = vset.pattern.permute.xlu0 0
  %4481 = vperm.xlu0 %4480, %v3829
  %v4482 = vpop.permute.xlu0 %4481
  %4485 = vset.pattern.permute.xlu0 0
  %4486 = vperm.xlu0 %4485, %v3830
  %v4487 = vpop.permute.xlu0 %4486
  %4490 = vset.pattern.permute.xlu0 0
  %4491 = vperm.xlu0 %4490, %v3831
  %v4492 = vpop.permute.xlu0 %4491
  %4495 = vset.pattern.permute.xlu0 0
  %4496 = vperm.xlu0 %4495, %v3832
  %v4497 = vpop.permute.xlu0 %4496
  %4500 = vset.pattern.permute.xlu0 0
  %4501 = vperm.xlu0 %4500, %v3833
  %v4502 = vpop.permute.xlu0 %4501
  %4505 = vset.pattern.permute.xlu0 0
  %4506 = vperm.xlu0 %4505, %v3834
  %v4507 = vpop.permute.xlu0 %4506
  %4510 = vset.pattern.permute.xlu0 0
  %4511 = vperm.xlu0 %4510, %v3835
  %v4512 = vpop.permute.xlu0 %4511
  %4515 = vset.pattern.permute.xlu0 0
  %4516 = vperm.xlu0 %4515, %v3836
  %v4517 = vpop.permute.xlu0 %4516
  %4520 = vset.pattern.permute.xlu0 0
  %4521 = vperm.xlu0 %4520, %v3837
  %v4522 = vpop.permute.xlu0 %4521
  %4525 = vset.pattern.permute.xlu0 0
  %4526 = vperm.xlu0 %4525, %v3838
  %v4527 = vpop.permute.xlu0 %4526
  %4530 = vset.pattern.permute.xlu0 0
  %4531 = vperm.xlu0 %4530, %v3839
  %v4532 = vpop.permute.xlu0 %4531
  %4535 = vset.pattern.permute.xlu0 0
  %4536 = vperm.xlu0 %4535, %v3840
  %v4537 = vpop.permute.xlu0 %4536
  %4540 = vset.pattern.permute.xlu0 0
  %4541 = vperm.xlu0 %4540, %v3841
  %v4542 = vpop.permute.xlu0 %4541
  %4545 = vset.pattern.permute.xlu0 0
  %4546 = vperm.xlu0 %4545, %v3842
  %v4547 = vpop.permute.xlu0 %4546
  %v4549 = vmul.f32 %v4232, %v3975
  %v4550 = vmul.f32 %v4237, %v3978
  %v4551 = vmul.f32 %v4242, %v3983
  %v4552 = vmul.f32 %v4247, %v3986
  %v4553 = vmul.f32 %v4252, %v3991
  %v4554 = vmul.f32 %v4257, %v3994
  %v4555 = vmul.f32 %v4262, %v3999
  %v4556 = vmul.f32 %v4267, %v4002
  %v4557 = vmul.f32 %v4272, %v4007
  %v4558 = vmul.f32 %v4277, %v4010
  %v4559 = vmul.f32 %v4282, %v4015
  %v4560 = vmul.f32 %v4287, %v4018
  %v4561 = vmul.f32 %v4292, %v4023
  %v4562 = vmul.f32 %v4297, %v4026
  %v4563 = vmul.f32 %v4302, %v4031
  %v4564 = vmul.f32 %v4307, %v4034
  %v4565 = vmul.f32 %v4312, %v4039
  %v4566 = vmul.f32 %v4317, %v4042
  %v4567 = vmul.f32 %v4322, %v4047
  %v4568 = vmul.f32 %v4327, %v4050
  %v4569 = vmul.f32 %v4332, %v4055
  %v4570 = vmul.f32 %v4337, %v4058
  %v4571 = vmul.f32 %v4342, %v4063
  %v4572 = vmul.f32 %v4347, %v4066
  %v4573 = vmul.f32 %v4352, %v4071
  %v4574 = vmul.f32 %v4357, %v4074
  %v4575 = vmul.f32 %v4362, %v4079
  %v4576 = vmul.f32 %v4367, %v4082
  %v4577 = vmul.f32 %v4372, %v4087
  %v4578 = vmul.f32 %v4377, %v4090
  %v4579 = vmul.f32 %v4382, %v4095
  %v4580 = vmul.f32 %v4387, %v4098
  %v4581 = vmul.f32 %v4392, %v4103
  %v4582 = vmul.f32 %v4397, %v4106
  %v4583 = vmul.f32 %v4402, %v4111
  %v4584 = vmul.f32 %v4407, %v4114
  %v4585 = vmul.f32 %v4412, %v4119
  %v4586 = vmul.f32 %v4417, %v4122
  %v4587 = vmul.f32 %v4422, %v4127
  %v4588 = vmul.f32 %v4427, %v4130
  %v4589 = vmul.f32 %v4432, %v4135
  %v4590 = vmul.f32 %v4437, %v4138
  %v4591 = vmul.f32 %v4442, %v4143
  %v4592 = vmul.f32 %v4447, %v4146
  %v4593 = vmul.f32 %v4452, %v4151
  %v4594 = vmul.f32 %v4457, %v4154
  %v4595 = vmul.f32 %v4462, %v4159
  %v4596 = vmul.f32 %v4467, %v4162
  %v4597 = vmul.f32 %v4472, %v4167
  %v4598 = vmul.f32 %v4477, %v4170
  %v4599 = vmul.f32 %v4482, %v4175
  %v4600 = vmul.f32 %v4487, %v4178
  %v4601 = vmul.f32 %v4492, %v4183
  %v4602 = vmul.f32 %v4497, %v4186
  %v4603 = vmul.f32 %v4502, %v4191
  %v4604 = vmul.f32 %v4507, %v4194
  %v4605 = vmul.f32 %v4512, %v4199
  %v4606 = vmul.f32 %v4517, %v4202
  %v4607 = vmul.f32 %v4522, %v4207
  %v4608 = vmul.f32 %v4527, %v4210
  %v4609 = vmul.f32 %v4532, %v4215
  %v4610 = vmul.f32 %v4537, %v4218
  %v4611 = vmul.f32 %v4542, %v4223
  %v4612 = vmul.f32 %v4547, %v4226
  %v4613 = vadd.f32 %v3714, %v4549
  %v4614 = vadd.f32 %v3715, %v4550
  %v4615 = vadd.f32 %v3716, %v4551
  %v4616 = vadd.f32 %v3717, %v4552
  %v4617 = vadd.f32 %v3718, %v4553
  %v4618 = vadd.f32 %v3719, %v4554
  %v4619 = vadd.f32 %v3720, %v4555
  %v4620 = vadd.f32 %v3721, %v4556
  %v4621 = vadd.f32 %v3722, %v4557
  %v4622 = vadd.f32 %v3723, %v4558
  %v4623 = vadd.f32 %v3724, %v4559
  %v4624 = vadd.f32 %v3725, %v4560
  %v4625 = vadd.f32 %v3726, %v4561
  %v4626 = vadd.f32 %v3727, %v4562
  %v4627 = vadd.f32 %v3728, %v4563
  %v4628 = vadd.f32 %v3729, %v4564
  %v4629 = vadd.f32 %v3730, %v4565
  %v4630 = vadd.f32 %v3731, %v4566
  %v4631 = vadd.f32 %v3732, %v4567
  %v4632 = vadd.f32 %v3733, %v4568
  %v4633 = vadd.f32 %v3734, %v4569
  %v4634 = vadd.f32 %v3735, %v4570
  %v4635 = vadd.f32 %v3736, %v4571
  %v4636 = vadd.f32 %v3737, %v4572
  %v4637 = vadd.f32 %v3738, %v4573
  %v4638 = vadd.f32 %v3739, %v4574
  %v4639 = vadd.f32 %v3740, %v4575
  %v4640 = vadd.f32 %v3741, %v4576
  %v4641 = vadd.f32 %v3742, %v4577
  %v4642 = vadd.f32 %v3743, %v4578
  %v4643 = vadd.f32 %v3744, %v4579
  %v4644 = vadd.f32 %v3745, %v4580
  %v4645 = vadd.f32 %v3746, %v4581
  %v4646 = vadd.f32 %v3747, %v4582
  %v4647 = vadd.f32 %v3748, %v4583
  %v4648 = vadd.f32 %v3749, %v4584
  %v4649 = vadd.f32 %v3750, %v4585
  %v4650 = vadd.f32 %v3751, %v4586
  %v4651 = vadd.f32 %v3752, %v4587
  %v4652 = vadd.f32 %v3753, %v4588
  %v4653 = vadd.f32 %v3754, %v4589
  %v4654 = vadd.f32 %v3755, %v4590
  %v4655 = vadd.f32 %v3756, %v4591
  %v4656 = vadd.f32 %v3757, %v4592
  %v4657 = vadd.f32 %v3758, %v4593
  %v4658 = vadd.f32 %v3759, %v4594
  %v4659 = vadd.f32 %v3760, %v4595
  %v4660 = vadd.f32 %v3761, %v4596
  %v4661 = vadd.f32 %v3762, %v4597
  %v4662 = vadd.f32 %v3763, %v4598
  %v4663 = vadd.f32 %v3764, %v4599
  %v4664 = vadd.f32 %v3765, %v4600
  %v4665 = vadd.f32 %v3766, %v4601
  %v4666 = vadd.f32 %v3767, %v4602
  %v4667 = vadd.f32 %v3768, %v4603
  %v4668 = vadd.f32 %v3769, %v4604
  %v4669 = vadd.f32 %v3770, %v4605
  %v4670 = vadd.f32 %v3771, %v4606
  %v4671 = vadd.f32 %v3772, %v4607
  %v4672 = vadd.f32 %v3773, %v4608
  %v4673 = vadd.f32 %v3774, %v4609
  %v4674 = vadd.f32 %v3775, %v4610
  %v4675 = vadd.f32 %v3776, %v4611
  %v4676 = vadd.f32 %v3777, %v4612
  %v4677 = vld [vmem:[%s5] sm:$0x1]
  %v4679 = vlaneseq
  %v4680 = vshrl.u32 %v4679, 7
  %v4681 = vsub.s32 0, %v4680
  %v4682 = vrot.slane %v4677, %v4681
  %v4684 = vadd.f32 %v4613, %v4682
  %v4685 = vadd.f32 %v4614, %v4682
  %v4686 = vadd.f32 %v4615, %v4682
  %v4687 = vadd.f32 %v4616, %v4682
  %v4688 = vadd.f32 %v4617, %v4682
  %v4689 = vadd.f32 %v4618, %v4682
  %v4690 = vadd.f32 %v4619, %v4682
  %v4691 = vadd.f32 %v4620, %v4682
  %v4692 = vadd.f32 %v4621, %v4682
  %v4693 = vadd.f32 %v4622, %v4682
  %v4694 = vadd.f32 %v4623, %v4682
  %v4695 = vadd.f32 %v4624, %v4682
  %v4696 = vadd.f32 %v4625, %v4682
  %v4697 = vadd.f32 %v4626, %v4682
  %v4698 = vadd.f32 %v4627, %v4682
  %v4699 = vadd.f32 %v4628, %v4682
  %v4700 = vadd.f32 %v4629, %v4682
  %v4701 = vadd.f32 %v4630, %v4682
  %v4702 = vadd.f32 %v4631, %v4682
  %v4703 = vadd.f32 %v4632, %v4682
  %v4704 = vadd.f32 %v4633, %v4682
  %v4705 = vadd.f32 %v4634, %v4682
  %v4706 = vadd.f32 %v4635, %v4682
  %v4707 = vadd.f32 %v4636, %v4682
  %v4708 = vadd.f32 %v4637, %v4682
  %v4709 = vadd.f32 %v4638, %v4682
  %v4710 = vadd.f32 %v4639, %v4682
  %v4711 = vadd.f32 %v4640, %v4682
  %v4712 = vadd.f32 %v4641, %v4682
  %v4713 = vadd.f32 %v4642, %v4682
  %v4714 = vadd.f32 %v4643, %v4682
  %v4715 = vadd.f32 %v4644, %v4682
  %v4716 = vadd.f32 %v4645, %v4682
  %v4717 = vadd.f32 %v4646, %v4682
  %v4718 = vadd.f32 %v4647, %v4682
  %v4719 = vadd.f32 %v4648, %v4682
  %v4720 = vadd.f32 %v4649, %v4682
  %v4721 = vadd.f32 %v4650, %v4682
  %v4722 = vadd.f32 %v4651, %v4682
  %v4723 = vadd.f32 %v4652, %v4682
  %v4724 = vadd.f32 %v4653, %v4682
  %v4725 = vadd.f32 %v4654, %v4682
  %v4726 = vadd.f32 %v4655, %v4682
  %v4727 = vadd.f32 %v4656, %v4682
  %v4728 = vadd.f32 %v4657, %v4682
  %v4729 = vadd.f32 %v4658, %v4682
  %v4730 = vadd.f32 %v4659, %v4682
  %v4731 = vadd.f32 %v4660, %v4682
  %v4732 = vadd.f32 %v4661, %v4682
  %v4733 = vadd.f32 %v4662, %v4682
  %v4734 = vadd.f32 %v4663, %v4682
  %v4735 = vadd.f32 %v4664, %v4682
  %v4736 = vadd.f32 %v4665, %v4682
  %v4737 = vadd.f32 %v4666, %v4682
  %v4738 = vadd.f32 %v4667, %v4682
  %v4739 = vadd.f32 %v4668, %v4682
  %v4740 = vadd.f32 %v4669, %v4682
  %v4741 = vadd.f32 %v4670, %v4682
  %v4742 = vadd.f32 %v4671, %v4682
  %v4743 = vadd.f32 %v4672, %v4682
  %v4744 = vadd.f32 %v4673, %v4682
  %v4745 = vadd.f32 %v4674, %v4682
  %v4746 = vadd.f32 %v4675, %v4682
  %v4747 = vadd.f32 %v4676, %v4682
  %v4748 = vmax.f32 %v4684, 0.0
  %v4749 = vmax.f32 %v4685, 0.0
  %v4750 = vmax.f32 %v4686, 0.0
  %v4751 = vmax.f32 %v4687, 0.0
  %v4752 = vmax.f32 %v4688, 0.0
  %v4753 = vmax.f32 %v4689, 0.0
  %v4754 = vmax.f32 %v4690, 0.0
  %v4755 = vmax.f32 %v4691, 0.0
  %v4756 = vmax.f32 %v4692, 0.0
  %v4757 = vmax.f32 %v4693, 0.0
  %v4758 = vmax.f32 %v4694, 0.0
  %v4759 = vmax.f32 %v4695, 0.0
  %v4760 = vmax.f32 %v4696, 0.0
  %v4761 = vmax.f32 %v4697, 0.0
  %v4762 = vmax.f32 %v4698, 0.0
  %v4763 = vmax.f32 %v4699, 0.0
  %v4764 = vmax.f32 %v4700, 0.0
  %v4765 = vmax.f32 %v4701, 0.0
  %v4766 = vmax.f32 %v4702, 0.0
  %v4767 = vmax.f32 %v4703, 0.0
  %v4768 = vmax.f32 %v4704, 0.0
  %v4769 = vmax.f32 %v4705, 0.0
  %v4770 = vmax.f32 %v4706, 0.0
  %v4771 = vmax.f32 %v4707, 0.0
  %v4772 = vmax.f32 %v4708, 0.0
  %v4773 = vmax.f32 %v4709, 0.0
  %v4774 = vmax.f32 %v4710, 0.0
  %v4775 = vmax.f32 %v4711, 0.0
  %v4776 = vmax.f32 %v4712, 0.0
  %v4777 = vmax.f32 %v4713, 0.0
  %v4778 = vmax.f32 %v4714, 0.0
  %v4779 = vmax.f32 %v4715, 0.0
  %v4780 = vmax.f32 %v4716, 0.0
  %v4781 = vmax.f32 %v4717, 0.0
  %v4782 = vmax.f32 %v4718, 0.0
  %v4783 = vmax.f32 %v4719, 0.0
  %v4784 = vmax.f32 %v4720, 0.0
  %v4785 = vmax.f32 %v4721, 0.0
  %v4786 = vmax.f32 %v4722, 0.0
  %v4787 = vmax.f32 %v4723, 0.0
  %v4788 = vmax.f32 %v4724, 0.0
  %v4789 = vmax.f32 %v4725, 0.0
  %v4790 = vmax.f32 %v4726, 0.0
  %v4791 = vmax.f32 %v4727, 0.0
  %v4792 = vmax.f32 %v4728, 0.0
  %v4793 = vmax.f32 %v4729, 0.0
  %v4794 = vmax.f32 %v4730, 0.0
  %v4795 = vmax.f32 %v4731, 0.0
  %v4796 = vmax.f32 %v4732, 0.0
  %v4797 = vmax.f32 %v4733, 0.0
  %v4798 = vmax.f32 %v4734, 0.0
  %v4799 = vmax.f32 %v4735, 0.0
  %v4800 = vmax.f32 %v4736, 0.0
  %v4801 = vmax.f32 %v4737, 0.0
  %v4802 = vmax.f32 %v4738, 0.0
  %v4803 = vmax.f32 %v4739, 0.0
  %v4804 = vmax.f32 %v4740, 0.0
  %v4805 = vmax.f32 %v4741, 0.0
  %v4806 = vmax.f32 %v4742, 0.0
  %v4807 = vmax.f32 %v4743, 0.0
  %v4808 = vmax.f32 %v4744, 0.0
  %v4809 = vmax.f32 %v4745, 0.0
  %v4810 = vmax.f32 %v4746, 0.0
  %v4811 = vmax.f32 %v4747, 0.0
  %4812 = vxpose.xlu0.b32.start [1/16] %v4748, 128
  %4813 = vxpose.xlu0.b32.cont [2/16] %v4749, 128
  %4814 = vxpose.xlu0.b32.cont [3/16] %v4750, 128
  %4815 = vxpose.xlu0.b32.cont [4/16] %v4751, 128
  %4816 = vxpose.xlu0.b32.cont [5/16] %v4752, 128
  %4817 = vxpose.xlu0.b32.cont [6/16] %v4753, 128
  %4818 = vxpose.xlu0.b32.cont [7/16] %v4754, 128
  %4819 = vxpose.xlu0.b32.cont [8/16] %v4755, 128
  %4820 = vxpose.xlu0.b32.cont [9/16] %v4756, 128
  %4821 = vxpose.xlu0.b32.cont [10/16] %v4757, 128
  %4822 = vxpose.xlu0.b32.cont [11/16] %v4758, 128
  %4823 = vxpose.xlu0.b32.cont [12/16] %v4759, 128
  %4824 = vxpose.xlu0.b32.cont [13/16] %v4760, 128
  %4825 = vxpose.xlu0.b32.cont [14/16] %v4761, 128
  %4826 = vxpose.xlu0.b32.cont [15/16] %v4762, 128
  %4827 = vxpose.xlu0.b32.end [16/16] %v4763, 128
  %v4828 = vpop.trf.xlu0
  %v4829 = vpop.trf.xlu0
  %v4830 = vpop.trf.xlu0
  %v4831 = vpop.trf.xlu0
  %v4832 = vpop.trf.xlu0
  %v4833 = vpop.trf.xlu0
  %v4834 = vpop.trf.xlu0
  %v4835 = vpop.trf.xlu0
  %v4836 = vpop.trf.xlu0
  %v4837 = vpop.trf.xlu0
  %v4838 = vpop.trf.xlu0
  %v4839 = vpop.trf.xlu0
  %v4840 = vpop.trf.xlu0
  %v4841 = vpop.trf.xlu0
  %v4842 = vpop.trf.xlu0
  %v4843 = vpop.trf.xlu0
  %4844 = vxpose.xlu0.b32.start [1/16] %v4764, 128
  %4845 = vxpose.xlu0.b32.cont [2/16] %v4765, 128
  %4846 = vxpose.xlu0.b32.cont [3/16] %v4766, 128
  %4847 = vxpose.xlu0.b32.cont [4/16] %v4767, 128
  %4848 = vxpose.xlu0.b32.cont [5/16] %v4768, 128
  %4849 = vxpose.xlu0.b32.cont [6/16] %v4769, 128
  %4850 = vxpose.xlu0.b32.cont [7/16] %v4770, 128
  %4851 = vxpose.xlu0.b32.cont [8/16] %v4771, 128
  %4852 = vxpose.xlu0.b32.cont [9/16] %v4772, 128
  %4853 = vxpose.xlu0.b32.cont [10/16] %v4773, 128
  %4854 = vxpose.xlu0.b32.cont [11/16] %v4774, 128
  %4855 = vxpose.xlu0.b32.cont [12/16] %v4775, 128
  %4856 = vxpose.xlu0.b32.cont [13/16] %v4776, 128
  %4857 = vxpose.xlu0.b32.cont [14/16] %v4777, 128
  %4858 = vxpose.xlu0.b32.cont [15/16] %v4778, 128
  %4859 = vxpose.xlu0.b32.end [16/16] %v4779, 128
  %v4860 = vpop.trf.xlu0
  %v4861 = vpop.trf.xlu0
  %v4862 = vpop.trf.xlu0
  %v4863 = vpop.trf.xlu0
  %v4864 = vpop.trf.xlu0
  %v4865 = vpop.trf.xlu0
  %v4866 = vpop.trf.xlu0
  %v4867 = vpop.trf.xlu0
  %v4868 = vpop.trf.xlu0
  %v4869 = vpop.trf.xlu0
  %v4870 = vpop.trf.xlu0
  %v4871 = vpop.trf.xlu0
  %v4872 = vpop.trf.xlu0
  %v4873 = vpop.trf.xlu0
  %v4874 = vpop.trf.xlu0
  %v4875 = vpop.trf.xlu0
  %4876 = vst [vmem:[%s6] sm:$0xff] %v4828
  %4877 = vst [vmem:[%s6 + $0x8] sm:$0xff] %v4860
  %4878 = vst [vmem:[%s6 + $0x10] sm:$0xff] %v4829
  %4879 = vst [vmem:[%s6 + $0x18] sm:$0xff] %v4861
  %4880 = vst [vmem:[%s6 + $0x20] sm:$0xff] %v4830
  %4881 = vst [vmem:[%s6 + $0x28] sm:$0xff] %v4862
  %4882 = vst [vmem:[%s6 + $0x30] sm:$0xff] %v4831
  %4883 = vst [vmem:[%s6 + $0x38] sm:$0xff] %v4863
  %4884 = vst [vmem:[%s6 + $0x40] sm:$0xff] %v4832
  %4885 = vst [vmem:[%s6 + $0x48] sm:$0xff] %v4864
  %4886 = vst [vmem:[%s6 + $0x50] sm:$0xff] %v4833
  %4887 = vst [vmem:[%s6 + $0x58] sm:$0xff] %v4865
  %4888 = vst [vmem:[%s6 + $0x60] sm:$0xff] %v4834
  %4889 = vst [vmem:[%s6 + $0x68] sm:$0xff] %v4866
  %4890 = vst [vmem:[%s6 + $0x70] sm:$0xff] %v4835
  %4891 = vst [vmem:[%s6 + $0x78] sm:$0xff] %v4867
  %4892 = vst [vmem:[%s6 + $0x80] sm:$0xff] %v4836
  %4893 = vst [vmem:[%s6 + $0x88] sm:$0xff] %v4868
  %4894 = vst [vmem:[%s6 + $0x90] sm:$0xff] %v4837
  %4895 = vst [vmem:[%s6 + $0x98] sm:$0xff] %v4869
  %4896 = vst [vmem:[%s6 + $0xa0] sm:$0xff] %v4838
  %4897 = vst [vmem:[%s6 + $0xa8] sm:$0xff] %v4870
  %4898 = vst [vmem:[%s6 + $0xb0] sm:$0xff] %v4839
  %4899 = vst [vmem:[%s6 + $0xb8] sm:$0xff] %v4871
  %4900 = vst [vmem:[%s6 + $0xc0] sm:$0xff] %v4840
  %4901 = vst [vmem:[%s6 + $0xc8] sm:$0xff] %v4872
  %4902 = vst [vmem:[%s6 + $0xd0] sm:$0xff] %v4841
  %4903 = vst [vmem:[%s6 + $0xd8] sm:$0xff] %v4873
  %4904 = vst [vmem:[%s6 + $0xe0] sm:$0xff] %v4842
  %4905 = vst [vmem:[%s6 + $0xe8] sm:$0xff] %v4874
  %4906 = vst [vmem:[%s6 + $0xf0] sm:$0xff] %v4843
  %4907 = vst [vmem:[%s6 + $0xf8] sm:$0xff] %v4875
  %4908 = vxpose.xlu0.b32.start [1/16] %v4780, 128
  %4909 = vxpose.xlu0.b32.cont [2/16] %v4781, 128
  %4910 = vxpose.xlu0.b32.cont [3/16] %v4782, 128
  %4911 = vxpose.xlu0.b32.cont [4/16] %v4783, 128
  %4912 = vxpose.xlu0.b32.cont [5/16] %v4784, 128
  %4913 = vxpose.xlu0.b32.cont [6/16] %v4785, 128
  %4914 = vxpose.xlu0.b32.cont [7/16] %v4786, 128
  %4915 = vxpose.xlu0.b32.cont [8/16] %v4787, 128
  %4916 = vxpose.xlu0.b32.cont [9/16] %v4788, 128
  %4917 = vxpose.xlu0.b32.cont [10/16] %v4789, 128
  %4918 = vxpose.xlu0.b32.cont [11/16] %v4790, 128
  %4919 = vxpose.xlu0.b32.cont [12/16] %v4791, 128
  %4920 = vxpose.xlu0.b32.cont [13/16] %v4792, 128
  %4921 = vxpose.xlu0.b32.cont [14/16] %v4793, 128
  %4922 = vxpose.xlu0.b32.cont [15/16] %v4794, 128
  %4923 = vxpose.xlu0.b32.end [16/16] %v4795, 128
  %v4924 = vpop.trf.xlu0
  %v4925 = vpop.trf.xlu0
  %v4926 = vpop.trf.xlu0
  %v4927 = vpop.trf.xlu0
  %v4928 = vpop.trf.xlu0
  %v4929 = vpop.trf.xlu0
  %v4930 = vpop.trf.xlu0
  %v4931 = vpop.trf.xlu0
  %v4932 = vpop.trf.xlu0
  %v4933 = vpop.trf.xlu0
  %v4934 = vpop.trf.xlu0
  %v4935 = vpop.trf.xlu0
  %v4936 = vpop.trf.xlu0
  %v4937 = vpop.trf.xlu0
  %v4938 = vpop.trf.xlu0
  %v4939 = vpop.trf.xlu0
  %4940 = vxpose.xlu0.b32.start [1/16] %v4796, 128
  %4941 = vxpose.xlu0.b32.cont [2/16] %v4797, 128
  %4942 = vxpose.xlu0.b32.cont [3/16] %v4798, 128
  %4943 = vxpose.xlu0.b32.cont [4/16] %v4799, 128
  %4944 = vxpose.xlu0.b32.cont [5/16] %v4800, 128
  %4945 = vxpose.xlu0.b32.cont [6/16] %v4801, 128
  %4946 = vxpose.xlu0.b32.cont [7/16] %v4802, 128
  %4947 = vxpose.xlu0.b32.cont [8/16] %v4803, 128
  %4948 = vxpose.xlu0.b32.cont [9/16] %v4804, 128
  %4949 = vxpose.xlu0.b32.cont [10/16] %v4805, 128
  %4950 = vxpose.xlu0.b32.cont [11/16] %v4806, 128
  %4951 = vxpose.xlu0.b32.cont [12/16] %v4807, 128
  %4952 = vxpose.xlu0.b32.cont [13/16] %v4808, 128
  %4953 = vxpose.xlu0.b32.cont [14/16] %v4809, 128
  %4954 = vxpose.xlu0.b32.cont [15/16] %v4810, 128
  %4955 = vxpose.xlu0.b32.end [16/16] %v4811, 128
  %v4956 = vpop.trf.xlu0
  %v4957 = vpop.trf.xlu0
  %v4958 = vpop.trf.xlu0
  %v4959 = vpop.trf.xlu0
  %v4960 = vpop.trf.xlu0
  %v4961 = vpop.trf.xlu0
  %v4962 = vpop.trf.xlu0
  %v4963 = vpop.trf.xlu0
  %v4964 = vpop.trf.xlu0
  %v4965 = vpop.trf.xlu0
  %v4966 = vpop.trf.xlu0
  %v4967 = vpop.trf.xlu0
  %v4968 = vpop.trf.xlu0
  %v4969 = vpop.trf.xlu0
  %v4970 = vpop.trf.xlu0
  %v4971 = vpop.trf.xlu0
  %s4972 = scalar_lea.vmem %s6, 256
  %4973 = vst [vmem:[%s4972] sm:$0xff] %v4924
  %4974 = vst [vmem:[%s4972 + $0x8] sm:$0xff] %v4956
  %4975 = vst [vmem:[%s4972 + $0x10] sm:$0xff] %v4925
  %4976 = vst [vmem:[%s4972 + $0x18] sm:$0xff] %v4957
  %4977 = vst [vmem:[%s4972 + $0x20] sm:$0xff] %v4926
  %4978 = vst [vmem:[%s4972 + $0x28] sm:$0xff] %v4958
  %4979 = vst [vmem:[%s4972 + $0x30] sm:$0xff] %v4927
  %4980 = vst [vmem:[%s4972 + $0x38] sm:$0xff] %v4959
  %4981 = vst [vmem:[%s4972 + $0x40] sm:$0xff] %v4928
  %4982 = vst [vmem:[%s4972 + $0x48] sm:$0xff] %v4960
  %4983 = vst [vmem:[%s4972 + $0x50] sm:$0xff] %v4929
  %4984 = vst [vmem:[%s4972 + $0x58] sm:$0xff] %v4961
  %4985 = vst [vmem:[%s4972 + $0x60] sm:$0xff] %v4930
  %4986 = vst [vmem:[%s4972 + $0x68] sm:$0xff] %v4962
  %4987 = vst [vmem:[%s4972 + $0x70] sm:$0xff] %v4931
  %4988 = vst [vmem:[%s4972 + $0x78] sm:$0xff] %v4963
  %4989 = vst [vmem:[%s4972 + $0x80] sm:$0xff] %v4932
  %4990 = vst [vmem:[%s4972 + $0x88] sm:$0xff] %v4964
  %4991 = vst [vmem:[%s4972 + $0x90] sm:$0xff] %v4933
  %4992 = vst [vmem:[%s4972 + $0x98] sm:$0xff] %v4965
  %4993 = vst [vmem:[%s4972 + $0xa0] sm:$0xff] %v4934
  %4994 = vst [vmem:[%s4972 + $0xa8] sm:$0xff] %v4966
  %4995 = vst [vmem:[%s4972 + $0xb0] sm:$0xff] %v4935
  %4996 = vst [vmem:[%s4972 + $0xb8] sm:$0xff] %v4967
  %4997 = vst [vmem:[%s4972 + $0xc0] sm:$0xff] %v4936
  %4998 = vst [vmem:[%s4972 + $0xc8] sm:$0xff] %v4968
  %4999 = vst [vmem:[%s4972 + $0xd0] sm:$0xff] %v4937
  %5000 = vst [vmem:[%s4972 + $0xd8] sm:$0xff] %v4969
  %5001 = vst [vmem:[%s4972 + $0xe0] sm:$0xff] %v4938
  %5002 = vst [vmem:[%s4972 + $0xe8] sm:$0xff] %v4970
  %5003 = vst [vmem:[%s4972 + $0xf0] sm:$0xff] %v4939
  %5004 = vst [vmem:[%s4972 + $0xf8] sm:$0xff] %v4971
  // Predicated region
  $region26: #{encoder_forward.1} parent=0 // pred_check
    _
  $region27: #{encoder_forward.1} parent=0 // pred_check_branch
    %5006 = sbr.rel (0) target = $region29
  $region28: #{encoder_forward.1} parent=0 // pred_region
    _
  $region29: #{encoder_forward.1} parent=0 // pred_fallthru
    _
  // Predicated region
  $region30: #{encoder_forward.1} parent=0 // pred_check
    _
  $region31: #{encoder_forward.1} parent=0 // pred_check_branch
    %5008 = sbr.rel (0) target = $region33
  $region32: #{encoder_forward.1} parent=0 // pred_region
    _
  $region33: #{encoder_forward.1} parent=0 // pred_fallthru
    _

</llo_original>
